<compile_context>
chip_gen: v7x
topology: tpu7x:2x2x1
jax: 0.10.0
libtpu: 0.0.40
codegen_flags: <defaults>
</compile_context>

<pallas_src>
import functools
import inspect
import math

import numpy as np
import jax
import jax.numpy as jnp
from jax.experimental import pallas as pl
from jax.experimental.pallas import tpu as pltpu


# --------------------------------------------------------------------------- #
# Small helpers
# --------------------------------------------------------------------------- #
def _round_up(x, m):
    return ((x + m - 1) // m) * m


def _supports_single_buffered_blocks():
    if not hasattr(pl, "Buffered"):
        return False
    try:
        return "pipeline_mode" in inspect.signature(pl.BlockSpec).parameters
    except (TypeError, ValueError):
        return False


_SINGLE_BUFFER_OK = _supports_single_buffered_blocks()


def _layer_norm(x, eps=1e-5):
    # LayerNorm(elementwise_affine=False), biased variance like PyTorch.
    mean = jnp.mean(x, axis=-1, keepdims=True)
    var = jnp.mean((x - mean) ** 2, axis=-1, keepdims=True)
    return (x - mean) * jax.lax.rsqrt(var + eps)


def _head_mask(nr_heads, head_dim, dtype):
    # (H, H*D) block mask: mask[h, j] = 1 if j in [h*D, (h+1)*D) else 0.
    hd = nr_heads * head_dim
    j_idx = jax.lax.broadcasted_iota(jnp.int32, (nr_heads, hd), 1)
    h_idx = jax.lax.broadcasted_iota(jnp.int32, (nr_heads, hd), 0)
    return ((j_idx >= h_idx * head_dim) & (j_idx < (h_idx + 1) * head_dim)).astype(dtype)


def _pad_batch(x, b_pad, pad_value=0):
    b = x.shape[0]
    if b == b_pad:
        return x
    pad_width = [(0, b_pad - b)] + [(0, 0)] * (x.ndim - 1)
    return jnp.pad(x, pad_width, constant_values=pad_value)


def _plan_batch_tiling(B, S, D, H, Dc, L, *, seq_bytes, w_bytes, has_attn,
                       vmem_limit_bytes):
    """Pick the batch tile TB from a VMEM budget; return (TB, weight_bytes, per_ex)."""
    per_ex = 2 * S * D * seq_bytes                         # double-buffered seq block
    if has_attn:
        per_ex += (S * H * D * 4                           # f32 K projection
                   + S * D * 4                             # f32 temporaries on seq data
                   + 3 * H * S * 4                         # scores / softmax
                   + 3 * H * D * 4                         # att / qe-sized temporaries
                   + 4 * Dc * 4)                           # x / output row
        weight_bytes = ((2 * D * H * D + H * D * Dc + L * Dc * Dc) * w_bytes
                        + (2 * H * D + Dc + L * Dc) * 4)
        weight_bytes *= 1 if _SINGLE_BUFFER_OK else 2      # single vs double buffered
    else:
        per_ex += 3 * D * 4
        weight_bytes = 0

    budget = max(vmem_limit_bytes - weight_bytes - (8 << 20), 1 << 20)
    tb = budget // max(per_ex, 1)
    # Keep >= 2 grid blocks when possible so ("parallel",) shards across both
    # TensorCores of a v7x megacore.
    tb = min(tb, 512, _round_up(max((B + 1) // 2, 1), 8))
    tb = max(8, (int(tb) // 8) * 8)
    return int(tb), int(weight_bytes), int(per_ex)


# --------------------------------------------------------------------------- #
# Kernels
# --------------------------------------------------------------------------- #
def attn_combiner_kernel(lens_ref,                          # VMEM (TB, 1, 1) int32
                         seq_ref,                           # VMEM (TB, S, D)
                         wq_ref, bq_ref,                    # (D, H*D), (1, H*D)
                         wk_ref, bk_ref,                    # (D, H*D), (1, H*D)
                         wo_ref, bo_ref,                    # (H*D, Dc), (1, Dc)
                         wproj_ref, bproj_ref,              # (L, Dc, Dc), (L, 1, Dc)
                         out_ref,                           # VMEM (TB, Dc)
                         *, nr_heads, nr_reduction_layers, approx_reciprocal):
    TB, S, D = seq_ref.shape
    H = nr_heads

    seq = seq_ref[...]                                       # (TB, S, D)
    lens = lens_ref[...]                                     # (TB, 1, 1) int32

    # --- query = first_token + last_token ('ends'), vectorized over TB ---
    pos_s = jax.lax.broadcasted_iota(jnp.int32, (TB, S, 1), 1)
    w_ends = ((pos_s == 0).astype(seq.dtype)
              + (pos_s == (lens - 1)).astype(seq.dtype))     # (TB, S, 1)
    query = jnp.sum(seq * w_ends, axis=1)                    # (TB, D)

    # --- projections: one big matmul for K; 1/sqrt(D) folded into Q ---
    scale = jnp.float32(1.0 / math.sqrt(D))
    qh = (jnp.dot(query, wq_ref[...],
                  preferred_element_type=jnp.float32) + bq_ref[...]) * scale   # (TB, H*D)
    k = (jnp.dot(seq.reshape(TB * S, D), wk_ref[...],
                 preferred_element_type=jnp.float32)
         + bk_ref[...]).reshape(TB, S, H * D)                # (TB, S, H*D)

    # --- all-head scores via block-diagonal query expansion + one batched dot ---
    hmask = _head_mask(H, D, jnp.float32)                    # (H, H*D)
    qe = qh[:, None, :] * hmask[None, :, :]                  # (TB, H, H*D)
    scores = jnp.einsum('thj,tsj->ths', qe, k,
                        preferred_element_type=jnp.float32)  # (TB, H, S)

    # --- masked softmax over S (lane axis) ---
    pos_k = jax.lax.broadcasted_iota(jnp.int32, (1, 1, S), 2)
    valid = pos_k < lens                                     # (TB, 1, S)
    scores = jnp.where(valid, scores, jnp.float32(-1e30))
    m = jnp.max(scores, axis=-1, keepdims=True)              # (TB, H, 1)
    p = jnp.exp(scores - m)
    p = jnp.where(valid, p, 0.0)
    # EUP approximate reciprocal (free slot); exact divide when approx_reciprocal=False.
    p = p * pl.reciprocal(jnp.sum(p, axis=-1, keepdims=True),
                          approx=approx_reciprocal)

    # --- attention output: values are the raw encodings (project_attn_values=False) ---
    att = jnp.einsum('ths,tsd->thd', p.astype(seq.dtype), seq,
                     preferred_element_type=jnp.float32)     # (TB, H, D)

    # --- concat heads along lanes: H static slices + one lane concat (O(H*D)) ---
    att_cat = jnp.concatenate([att[:, h, :] for h in range(H)], axis=-1)  # (TB, H*D)

    # --- output projection ---
    x = (jnp.dot(att_cat.astype(wo_ref.dtype), wo_ref[...],
                 preferred_element_type=jnp.float32) + bo_ref[...])       # (TB, Dc)

    # --- dim-reduction stack: LayerNorm -> Linear -> ReLU -> dropout(identity) ---
    for l in range(nr_reduction_layers):
        x = _layer_norm(x)
        x = (jnp.dot(x.astype(wproj_ref.dtype), wproj_ref[l],
                     preferred_element_type=jnp.float32) + bproj_ref[l])
        x = jnp.maximum(x, 0.0)

    out_ref[...] = x.astype(out_ref.dtype)


def simple_combiner_kernel(lens_ref, seq_ref, out_ref, *, method):
    seq = seq_ref[...]                                       # (TB, S, D)
    lens = lens_ref[...]                                     # (TB, 1, 1) int32
    TB, S, D = seq.shape
    pos_s = jax.lax.broadcasted_iota(jnp.int32, (TB, S, 1), 1)
    if method in ("mean", "sum"):
        w = (pos_s < lens).astype(seq.dtype)                 # masked_fill(~mask, 0)
    elif method == "last":
        w = (pos_s == (lens - 1)).astype(seq.dtype)
    else:  # 'ends'
        w = ((pos_s == 0).astype(seq.dtype)
             + (pos_s == (lens - 1)).astype(seq.dtype))
    res = jnp.sum(seq * w, axis=1)                           # (TB, D)
    if method == "mean":
        # torch.mean over dim=1 divides by full S (not by lengths).
        res = res / jnp.asarray(S, res.dtype)
    out_ref[...] = res.astype(out_ref.dtype)


def gather_last_kernel(lens_sm, blk_ref, out_ref, *, ts):
    # blk_ref: (1, ts, D) — the S-block containing token (len-1); out_ref: (1, 1, D).
    b = pl.program_id(0)
    r = (lens_sm[b] - 1) % ts
    pos = jax.lax.broadcasted_iota(jnp.int32, (1, ts, 1), 1)
    sel = (pos == r).astype(blk_ref.dtype)
    out_ref[...] = jnp.sum(blk_ref[...] * sel, axis=1, keepdims=True).astype(out_ref.dtype)


def gather_ends_kernel(lens_sm, first_blk_ref, last_blk_ref, out_ref, *, ts):
    b = pl.program_id(0)
    r = (lens_sm[b] - 1) % ts
    pos = jax.lax.broadcasted_iota(jnp.int32, (1, ts, 1), 1)
    sel = (pos == r).astype(last_blk_ref.dtype)
    last_tok = jnp.sum(last_blk_ref[...] * sel, axis=1, keepdims=True)   # (1, 1, D)
    first_tok = first_blk_ref[...][:, 0:1, :]                            # (1, 1, D)
    out_ref[...] = (first_tok + last_tok).astype(out_ref.dtype)


# --------------------------------------------------------------------------- #
# Wrappers
# --------------------------------------------------------------------------- #
def _gather_last_or_ends(seq, lens, *, method, ts=8):
    """'last'/'ends' via scalar-prefetch gather: reads only the needed S-blocks."""
    B, S, D = seq.shape
    assert S % ts == 0
    lens = lens.reshape(B).astype(jnp.int32)

    last_spec = pl.BlockSpec((1, ts, D),
                             lambda b, lens_ref: (b, (lens_ref[b] - 1) // ts, 0))
    first_spec = pl.BlockSpec((1, ts, D), lambda b, lens_ref: (b, 0, 0))
    out_spec = pl.BlockSpec((1, 1, D), lambda b, lens_ref: (b, 0, 0))

    if method == "last":
        kernel = functools.partial(gather_last_kernel, ts=ts)
        in_specs = [last_spec]
        args = (lens, seq)
    else:  # 'ends'
        kernel = functools.partial(gather_ends_kernel, ts=ts)
        in_specs = [first_spec, last_spec]
        args = (lens, seq, seq)

    out = pl.pallas_call(
        kernel,
        out_shape=jax.ShapeDtypeStruct((B, 1, D), seq.dtype),
        grid_spec=pltpu.PrefetchScalarGridSpec(
            num_scalar_prefetch=1,
            grid=(B,),
            in_specs=in_specs,
            out_specs=out_spec,
        ),
        compiler_params=pltpu.CompilerParams(dimension_semantics=("arbitrary",)),
    )(*args)
    return out[:, 0, :]


def _attn_pallas_call(*, lens, seq, params, H, L, Dc, TB, B_pad, n_blocks,
                      approx_reciprocal, compute_dtype, cparams,
                      lens_spec, seq_spec, single_buffer):
    _, S, D = seq.shape

    def const_spec(*dims):
        index_map = lambda i: (0,) * len(dims)
        if single_buffer:
            return pl.BlockSpec(dims, index_map, pipeline_mode=pl.Buffered(1))
        return pl.BlockSpec(dims, index_map)

    def cast_w(w):  # weight matrices may run in bf16 on v6e/v7x; biases stay f32
        return w.astype(compute_dtype) if compute_dtype is not None else w

    return pl.pallas_call(
        functools.partial(attn_combiner_kernel,
                          nr_heads=H, nr_reduction_layers=L,
                          approx_reciprocal=approx_reciprocal),
        out_shape=jax.ShapeDtypeStruct((B_pad, Dc), jnp.float32),
        grid_spec=pltpu.PrefetchScalarGridSpec(
            num_scalar_prefetch=0,
            grid=(n_blocks,),
            in_specs=[
                lens_spec, seq_spec,
                const_spec(D, H * D), const_spec(1, H * D),    # Wq, bq
                const_spec(D, H * D), const_spec(1, H * D),    # Wk, bk
                const_spec(H * D, Dc), const_spec(1, Dc),      # Wo, bo
                const_spec(L, Dc, Dc), const_spec(L, 1, Dc),   # reduction Linears
            ],
            out_specs=pl.BlockSpec((TB, Dc), lambda i: (i, 0)),
        ),
        compiler_params=cparams,
    )(lens, seq,
      cast_w(params["wq"]), params["bq"], cast_w(params["wk"]), params["bk"],
      cast_w(params["wo"]), params["bo"],
      cast_w(params["wproj"]), params["bproj"])


def sequence_combiner(sequence_encodings, sequence_lengths, params=None, *,
                      method="attn", nr_heads=2, nr_reduction_layers=2,
                      block_b=None, compute_dtype=None, approx_reciprocal=True,
                      gather="auto", vmem_limit_bytes=48 * 2**20):
    """Forward pass of SequenceCombiner. sequence_encodings: (B, S, D), batch_first."""
    B, S, D = sequence_encodings.shape

    # ---- gather path for 'last'/'ends': only the needed rows come from HBM ----
    if method in ("last", "ends"):
        use_gather = (gather is True) or (gather == "auto" and S >= 32 and S % 8 == 0)
        if use_gather:
            return _gather_last_or_ends(sequence_encodings,
                                        sequence_lengths.astype(jnp.int32),
                                        method=method, ts=8)

    seq = sequence_encodings
    if method == "attn" and compute_dtype is not None:
        seq = seq.astype(compute_dtype)

    H, L = nr_heads, nr_reduction_layers
    Dc = params["wo"].shape[1] if method == "attn" else D

    TB, weight_bytes, per_ex = _plan_batch_tiling(
        B, S, D, H, Dc, L,
        seq_bytes=seq.dtype.itemsize,
        w_bytes=(np.dtype(compute_dtype).itemsize if compute_dtype is not None else 4),
        has_attn=(method == "attn"),
        vmem_limit_bytes=vmem_limit_bytes)
    if block_b is not None:
        TB = max(8, (int(block_b) // 8) * 8)

    B_pad = _round_up(B, TB)
    n_blocks = B_pad // TB
    vmem_limit = int(max(vmem_limit_bytes,
                         weight_bytes + TB * per_ex
                         + 2 * TB * max(Dc, D) * 4 + (2 << 20)))

    seq_p = _pad_batch(seq, B_pad)
    lens_p = _pad_batch(sequence_lengths.astype(jnp.int32).reshape(B, 1, 1), B_pad, 1)

    lens_spec = pl.BlockSpec((TB, 1, 1), lambda i: (i, 0, 0))
    seq_spec = pl.BlockSpec((TB, S, D), lambda i: (i, 0, 0))
    cparams = pltpu.CompilerParams(dimension_semantics=("parallel",),
                                   vmem_limit_bytes=vmem_limit)

    if method in ("mean", "sum", "last", "ends"):
        out = pl.pallas_call(
            functools.partial(simple_combiner_kernel, method=method),
            out_shape=jax.ShapeDtypeStruct((B_pad, D), seq.dtype),
            grid_spec=pltpu.PrefetchScalarGridSpec(
                num_scalar_prefetch=0,
                grid=(n_blocks,),
                in_specs=[lens_spec, seq_spec],
                out_specs=pl.BlockSpec((TB, D), lambda i: (i, 0)),
            ),
            compiler_params=cparams,
        )(lens_p, seq_p)
        return out[:B]

    if method != "attn":
        raise ValueError(f"Unsupported combining method `{method}`.")

    call = functools.partial(
        _attn_pallas_call,
        lens=lens_p, seq=seq_p, params=params, H=H, L=L, Dc=Dc,
        TB=TB, B_pad=B_pad, n_blocks=n_blocks,
        approx_reciprocal=approx_reciprocal, compute_dtype=compute_dtype,
        cparams=cparams, lens_spec=lens_spec, seq_spec=seq_spec)
    if _SINGLE_BUFFER_OK:
        try:
            return call(single_buffer=True)[:B]
        except Exception:  # pragma: no cover — fall back if Buffered(1) is rejected
            pass
    return call(single_buffer=False)[:B]


def init_params(key, D, H, Dc, L):
    """Deterministic PyTorch-Linear-style init: U(-1/sqrt(fan_in), 1/sqrt(fan_in))."""
    ks = jax.random.split(key, 8)

    def lin(kw, kb, fan_in, shape_w, shape_b):
        bound = 1.0 / jnp.sqrt(jnp.float32(fan_in))
        w = jax.random.uniform(kw, shape_w, jnp.float32, -bound, bound)
        b = jax.random.uniform(kb, shape_b, jnp.float32, -bound, bound)
        return w, b

    wq, bq = lin(ks[0], ks[1], D, (D, H * D), (1, H * D))
    wk, bk = lin(ks[2], ks[3], D, (D, H * D), (1, H * D))
    wo, bo = lin(ks[4], ks[5], H * D, (H * D, Dc), (1, Dc))
    wproj, bproj = lin(ks[6], ks[7], Dc, (L, Dc, Dc), (L, 1, Dc))
    return dict(wq=wq, bq=bq, wk=wk, bk=bk, wo=wo, bo=bo, wproj=wproj, bproj=bproj)


# --------------------------------------------------------------------------- #
# Pure-JAX reference (for correctness checking only)
# --------------------------------------------------------------------------- #
def reference_attn(seq, lengths, params, H, L):
    B, S, D = seq.shape
    mask = jnp.arange(S)[None, :] < lengths[:, None]
    first = seq[:, 0, :]
    last = seq[jnp.arange(B), lengths - 1, :]
    query = first + last
    qh = query @ params["wq"] + params["bq"][0]
    k = jnp.einsum("bsd,de->bse", seq, params["wk"]) + params["bk"][0]
    scale = 1.0 / jnp.sqrt(jnp.float32(D))
    heads = []
    for h in range(H):
        q_h = qh[:, h * D:(h + 1) * D]
        k_h = k[:, :, h * D:(h + 1) * D]
        scores = jnp.einsum("bd,bsd->bs", q_h, k_h) * scale
        scores = jnp.where(mask, scores, -jnp.inf)
        p = jax.nn.softmax(scores, axis=-1)
        heads.append(jnp.einsum("bs,bsd->bd", p, seq))
    x = jnp.concatenate(heads, axis=-1) @ params["wo"] + params["bo"][0]
    for l in range(L):
        mu = x.mean(-1, keepdims=True)
        var = ((x - mu) ** 2).mean(-1, keepdims=True)
        x = (x - mu) / jnp.sqrt(var + 1e-5)
        x = jnp.maximum(x @ params["wproj"][l] + params["bproj"][l, 0], 0.0)
    return x


# --------------------------------------------------------------------------- #
if __name__ == "__main__":
    B, S, D = 2, 8, 32        # batch, sequence, encoding_dim
    H, Dc, L = 2, 32, 2       # nr_attn_heads, combined_dim, nr_dim_reduction_layers

    key = jax.random.PRNGKey(0)
    k_seq, k_par, k_seq2 = jax.random.split(key, 3)
    seq = jax.random.normal(k_seq, (B, S, D), jnp.float32)
    lengths = jnp.array([5, 8], jnp.int32)
    params = init_params(k_par, D, H, Dc, L)

    ref = reference_attn(seq, lengths, params, H, L)

    # 1) exact f32 path (approx_reciprocal=False) -> tight tolerance.
    out_exact = sequence_combiner(seq, lengths, params, method="attn",
                                  nr_heads=H, nr_reduction_layers=L,
                                  approx_reciprocal=False)
    jax.block_until_ready(out_exact)
    assert out_exact.shape == (B, Dc)
    assert jnp.allclose(out_exact, ref, rtol=1e-4, atol=1e-4), "attn (exact) mismatch"

    # 2) default fast path: EUP approximate reciprocal for the softmax denominator.
    out_fast = sequence_combiner(seq, lengths, params, method="attn",
                                 nr_heads=H, nr_reduction_layers=L)
    jax.block_until_ready(out_fast)
    assert jnp.allclose(out_fast, ref, rtol=2e-2, atol=2e-2), "attn (approx) mismatch"

    # 3) bf16 streaming of seq + weight matrices (f32 MXU accumulation kept).
    out_bf16 = sequence_combiner(seq, lengths, params, method="attn",
                                 nr_heads=H, nr_reduction_layers=L,
                                 compute_dtype=jnp.bfloat16)
    jax.block_until_ready(out_bf16)
    assert jnp.allclose(out_bf16, ref, rtol=6e-2, atol=6e-2), "attn (bf16) mismatch"

    # Simple masked-reduction methods (batched masked path; S is small here).
    mask = jnp.arange(S)[None, :] < lengths[:, None]
    masked = jnp.where(mask[..., None], seq, 0.0)
    ref_last = seq[jnp.arange(B), lengths - 1, :]

    out_mean = sequence_combiner(seq, lengths, method="mean")
    out_sum = sequence_combiner(seq, lengths, method="sum")
    out_last = sequence_combiner(seq, lengths, method="last")
    out_ends = sequence_combiner(seq, lengths, method="ends")
    jax.block_until_ready((out_mean, out_sum, out_last, out_ends))
    assert jnp.allclose(out_mean, masked.sum(1) / S, rtol=1e-5, atol=1e-5), "mean mismatch"
    assert jnp.allclose(out_sum, masked.sum(1), rtol=1e-5, atol=1e-5), "sum mismatch"
    assert jnp.allclose(out_last, ref_last, rtol=1e-5, atol=1e-5), "last mismatch"
    assert jnp.allclose(out_ends, seq[:, 0, :] + ref_last,
                        rtol=1e-5, atol=1e-5), "ends mismatch"

    # Gather path for 'last'/'ends' at longer S (reads only the needed S-blocks).
    B2, S2 = 3, 64
    seq2 = jax.random.normal(k_seq2, (B2, S2, D), jnp.float32)
    lengths2 = jnp.array([1, 37, 64], jnp.int32)
    out_last2 = sequence_combiner(seq2, lengths2, method="last")
    out_ends2 = sequence_combiner(seq2, lengths2, method="ends")
    jax.block_until_ready((out_last2, out_ends2))
    ref_last2 = seq2[jnp.arange(B2), lengths2 - 1, :]
    assert jnp.allclose(out_last2, ref_last2, rtol=1e-5, atol=1e-5), "last (gather) mismatch"
    assert jnp.allclose(out_ends2, seq2[:, 0, :] + ref_last2,
                        rtol=1e-5, atol=1e-5), "ends (gather) mismatch"

    print("KERNEL_OK")
</pallas_src>

<mosaic_0001>
module attributes {stable_mosaic.version = 11 : i64} {
  func.func @attn_combiner_kernel(%arg0: i32, %arg1: memref<8x1x1xi32, #tpu.memory_space<vmem>>, %arg2: memref<8x8x32xf32, #tpu.memory_space<vmem>>, %arg3: memref<32x64xf32, #tpu.memory_space<vmem>>, %arg4: memref<1x64xf32, #tpu.memory_space<vmem>>, %arg5: memref<32x64xf32, #tpu.memory_space<vmem>>, %arg6: memref<1x64xf32, #tpu.memory_space<vmem>>, %arg7: memref<64x32xf32, #tpu.memory_space<vmem>>, %arg8: memref<1x32xf32, #tpu.memory_space<vmem>>, %arg9: memref<2x32x32xf32, #tpu.memory_space<vmem>>, %arg10: memref<2x1x32xf32, #tpu.memory_space<vmem>>, %arg11: memref<8x32xf32, #tpu.memory_space<vmem>>) attributes {dimension_semantics = [#tpu.dimension_semantics<parallel>], iteration_bounds = array<i64: 1>, scalar_prefetch = 0 : i64, scratch_operands = 0 : i64, tpu.core_type = #tpu.core_type<tc>, window_params = [{transform_indices = @transform_0, window_bounds = array<i64: 8, 1, 1>}, {transform_indices = @transform_1, window_bounds = array<i64: 8, 8, 32>}, {pipeline_mode = #tpu.pipeline_mode<synchronous>, transform_indices = @transform_2, window_bounds = array<i64: 32, 64>}, {pipeline_mode = #tpu.pipeline_mode<synchronous>, transform_indices = @transform_3, window_bounds = array<i64: 1, 64>}, {pipeline_mode = #tpu.pipeline_mode<synchronous>, transform_indices = @transform_4, window_bounds = array<i64: 32, 64>}, {pipeline_mode = #tpu.pipeline_mode<synchronous>, transform_indices = @transform_5, window_bounds = array<i64: 1, 64>}, {pipeline_mode = #tpu.pipeline_mode<synchronous>, transform_indices = @transform_6, window_bounds = array<i64: 64, 32>}, {pipeline_mode = #tpu.pipeline_mode<synchronous>, transform_indices = @transform_7, window_bounds = array<i64: 1, 32>}, {pipeline_mode = #tpu.pipeline_mode<synchronous>, transform_indices = @transform_8, window_bounds = array<i64: 2, 32, 32>}, {pipeline_mode = #tpu.pipeline_mode<synchronous>, transform_indices = @transform_9, window_bounds = array<i64: 2, 1, 32>}, {transform_indices = @transform_10, window_bounds = array<i64: 8, 32>}]} {
    %c0 = arith.constant 0 : index
    %c0_0 = arith.constant 0 : index
    %c0_1 = arith.constant 0 : index
    %0 = vector.load %arg2[%c0, %c0_0, %c0_1] : memref<8x8x32xf32, #tpu.memory_space<vmem>>, vector<8x8x32xf32>
    %c0_2 = arith.constant 0 : index
    %c0_3 = arith.constant 0 : index
    %c0_4 = arith.constant 0 : index
    %1 = vector.load %arg1[%c0_2, %c0_3, %c0_4] : memref<8x1x1xi32, #tpu.memory_space<vmem>>, vector<8x1x1xi32>
    %2 = tpu.iota {dimensions = array<i32: 1>} : vector<8x8x1xi32>
    %c0_i32 = arith.constant 0 : i32
    %3 = vector.broadcast %c0_i32 : i32 to vector<8x8x1xi32>
    %4 = arith.cmpi eq, %2, %3 : vector<8x8x1xi32>
    %5 = arith.extui %4 : vector<8x8x1xi1> to vector<8x8x1xi32>
    %6 = arith.sitofp %5 : vector<8x8x1xi32> to vector<8x8x1xf32>
    %c1_i32 = arith.constant 1 : i32
    %7 = vector.broadcast %c1_i32 : i32 to vector<8x1x1xi32>
    %8 = arith.subi %1, %7 : vector<8x1x1xi32>
    %9 = vector.broadcast %8 : vector<8x1x1xi32> to vector<8x8x1xi32>
    %10 = arith.cmpi eq, %2, %9 : vector<8x8x1xi32>
    %11 = arith.extui %10 : vector<8x8x1xi1> to vector<8x8x1xi32>
    %12 = arith.sitofp %11 : vector<8x8x1xi32> to vector<8x8x1xf32>
    %13 = arith.addf %6, %12 : vector<8x8x1xf32>
    %14 = vector.broadcast %13 : vector<8x8x1xf32> to vector<8x8x32xf32>
    %15 = arith.mulf %0, %14 : vector<8x8x32xf32>
    %cst = arith.constant dense<0.000000e+00> : vector<8x32xf32>
    %16 = vector.multi_reduction <add>, %15, %cst [1] : vector<8x8x32xf32> to vector<8x32xf32>
    %c0_5 = arith.constant 0 : index
    %c0_6 = arith.constant 0 : index
    %17 = vector.load %arg3[%c0_5, %c0_6] : memref<32x64xf32, #tpu.memory_space<vmem>>, vector<32x64xf32>
    %cst_7 = arith.constant dense<0.000000e+00> : vector<8x64xf32>
    %18 = tpu.matmul %16, %17, %cst_7 {dimension_numbers = #tpu.dot_dimension_numbers<[1], [0], [0], [1], [0, 0, 1, 1], [], []>} : vector<8x32xf32>, vector<32x64xf32>, vector<8x64xf32> -> vector<8x64xf32>
    %c0_8 = arith.constant 0 : index
    %c0_9 = arith.constant 0 : index
    %19 = vector.load %arg4[%c0_8, %c0_9] : memref<1x64xf32, #tpu.memory_space<vmem>>, vector<1x64xf32>
    %20 = vector.broadcast %19 : vector<1x64xf32> to vector<8x64xf32>
    %21 = arith.addf %18, %20 : vector<8x64xf32>
    %cst_10 = arith.constant 0.176776692 : f32
    %22 = vector.broadcast %cst_10 : f32 to vector<8x64xf32>
    %23 = arith.mulf %21, %22 : vector<8x64xf32>
    %24 = vector.shape_cast %0 : vector<8x8x32xf32> to vector<64x32xf32>
    %c0_11 = arith.constant 0 : index
    %c0_12 = arith.constant 0 : index
    %25 = vector.load %arg5[%c0_11, %c0_12] : memref<32x64xf32, #tpu.memory_space<vmem>>, vector<32x64xf32>
    %cst_13 = arith.constant dense<0.000000e+00> : vector<64x64xf32>
    %26 = tpu.matmul %24, %25, %cst_13 {dimension_numbers = #tpu.dot_dimension_numbers<[1], [0], [0], [1], [0, 0, 1, 1], [], []>} : vector<64x32xf32>, vector<32x64xf32>, vector<64x64xf32> -> vector<64x64xf32>
    %c0_14 = arith.constant 0 : index
    %c0_15 = arith.constant 0 : index
    %27 = vector.load %arg6[%c0_14, %c0_15] : memref<1x64xf32, #tpu.memory_space<vmem>>, vector<1x64xf32>
    %28 = vector.broadcast %27 : vector<1x64xf32> to vector<64x64xf32>
    %29 = arith.addf %26, %28 : vector<64x64xf32>
    %30 = vector.shape_cast %29 : vector<64x64xf32> to vector<8x8x64xf32>
    %31 = tpu.iota {dimensions = array<i32: 1>} : vector<2x64xi32>
    %32 = tpu.iota {dimensions = array<i32: 0>} : vector<2x64xi32>
    %c32_i32 = arith.constant 32 : i32
    %33 = vector.broadcast %c32_i32 : i32 to vector<2x64xi32>
    %34 = arith.muli %32, %33 : vector<2x64xi32>
    %35 = arith.cmpi sge, %31, %34 : vector<2x64xi32>
    %c1_i32_16 = arith.constant 1 : i32
    %36 = vector.broadcast %c1_i32_16 : i32 to vector<2x64xi32>
    %37 = arith.addi %32, %36 : vector<2x64xi32>
    %c32_i32_17 = arith.constant 32 : i32
    %38 = vector.broadcast %c32_i32_17 : i32 to vector<2x64xi32>
    %39 = arith.muli %37, %38 : vector<2x64xi32>
    %40 = arith.cmpi slt, %31, %39 : vector<2x64xi32>
    %41 = arith.andi %35, %40 : vector<2x64xi1>
    %42 = arith.extui %41 : vector<2x64xi1> to vector<2x64xi32>
    %43 = arith.sitofp %42 : vector<2x64xi32> to vector<2x64xf32>
    %44 = vector.shape_cast %23 : vector<8x64xf32> to vector<8x1x64xf32>
    %45 = vector.shape_cast %43 : vector<2x64xf32> to vector<1x2x64xf32>
    %46 = vector.broadcast %44 : vector<8x1x64xf32> to vector<8x2x64xf32>
    %47 = vector.broadcast %45 : vector<1x2x64xf32> to vector<8x2x64xf32>
    %48 = arith.mulf %46, %47 : vector<8x2x64xf32>
    "tpu.trace_start"() <{level = 10 : i32, message = "thj,tsj->ths"}> : () -> ()
    %cst_18 = arith.constant dense<0.000000e+00> : vector<8x2x8xf32>
    %49 = tpu.matmul %48, %30, %cst_18 {dimension_numbers = #tpu.dot_dimension_numbers<[2], [2], [1], [1], [0, 0, 0, 1, 1, 1], [0], [0]>} : vector<8x2x64xf32>, vector<8x8x64xf32>, vector<8x2x8xf32> -> vector<8x2x8xf32>
    "tpu.trace_stop"() : () -> ()
    %50 = tpu.iota {dimensions = array<i32: 2>} : vector<1x1x8xi32>
    %51 = vector.broadcast %50 : vector<1x1x8xi32> to vector<8x1x8xi32>
    %52 = vector.broadcast %1 : vector<8x1x1xi32> to vector<8x1x8xi32>
    %53 = arith.cmpi slt, %51, %52 : vector<8x1x8xi32>
    %cst_19 = arith.constant -1.000000e+30 : f32
    %54 = vector.shape_cast %53 : vector<8x1x8xi1> to vector<8x1x8xi1>
    %55 = vector.broadcast %54 : vector<8x1x8xi1> to vector<8x2x8xi1>
    %56 = vector.broadcast %cst_19 : f32 to vector<8x2x8xf32>
    %57 = arith.select %55, %49, %56 : vector<8x2x8xi1>, vector<8x2x8xf32>
    %cst_20 = arith.constant dense<0xFF800000> : vector<8x2xf32>
    %58 = vector.multi_reduction <maximumf>, %57, %cst_20 [2] : vector<8x2x8xf32> to vector<8x2xf32>
    %59 = vector.shape_cast %58 : vector<8x2xf32> to vector<8x2x1xf32>
    %60 = vector.broadcast %59 : vector<8x2x1xf32> to vector<8x2x8xf32>
    %61 = arith.subf %57, %60 : vector<8x2x8xf32>
    %62 = math.exp %61 : vector<8x2x8xf32>
    %cst_21 = arith.constant 0.000000e+00 : f32
    %63 = vector.shape_cast %53 : vector<8x1x8xi1> to vector<8x1x8xi1>
    %64 = vector.broadcast %63 : vector<8x1x8xi1> to vector<8x2x8xi1>
    %65 = vector.broadcast %cst_21 : f32 to vector<8x2x8xf32>
    %66 = arith.select %64, %62, %65 : vector<8x2x8xi1>, vector<8x2x8xf32>
    %cst_22 = arith.constant dense<0.000000e+00> : vector<8x2xf32>
    %67 = vector.multi_reduction <add>, %66, %cst_22 [2] : vector<8x2x8xf32> to vector<8x2xf32>
    %68 = vector.shape_cast %67 : vector<8x2xf32> to vector<8x2x1xf32>
    %69 = tpu.reciprocal %68 : vector<8x2x1xf32> -> vector<8x2x1xf32>
    %70 = vector.broadcast %69 : vector<8x2x1xf32> to vector<8x2x8xf32>
    %71 = arith.mulf %66, %70 : vector<8x2x8xf32>
    "tpu.trace_start"() <{level = 10 : i32, message = "ths,tsd->thd"}> : () -> ()
    %cst_23 = arith.constant dense<0.000000e+00> : vector<8x2x32xf32>
    %72 = tpu.matmul %71, %0, %cst_23 {dimension_numbers = #tpu.dot_dimension_numbers<[2], [1], [1], [2], [0, 0, 0, 1, 1, 2], [0], [0]>} : vector<8x2x8xf32>, vector<8x8x32xf32>, vector<8x2x32xf32> -> vector<8x2x32xf32>
    "tpu.trace_stop"() : () -> ()
    %73 = vector.extract_strided_slice %72 {offsets = [0, 0, 0], sizes = [8, 1, 32], strides = [1, 1, 1]} : vector<8x2x32xf32> to vector<8x1x32xf32>
    %74 = vector.shape_cast %73 : vector<8x1x32xf32> to vector<8x32xf32>
    %75 = vector.extract_strided_slice %72 {offsets = [0, 1, 0], sizes = [8, 1, 32], strides = [1, 1, 1]} : vector<8x2x32xf32> to vector<8x1x32xf32>
    %76 = vector.shape_cast %75 : vector<8x1x32xf32> to vector<8x32xf32>
    %77 = tpu.concatenate %74, %76 in 1 : vector<8x32xf32>, vector<8x32xf32> -> vector<8x64xf32>
    %c0_24 = arith.constant 0 : index
    %c0_25 = arith.constant 0 : index
    %78 = vector.load %arg7[%c0_24, %c0_25] : memref<64x32xf32, #tpu.memory_space<vmem>>, vector<64x32xf32>
    %cst_26 = arith.constant dense<0.000000e+00> : vector<8x32xf32>
    %79 = tpu.matmul %77, %78, %cst_26 {dimension_numbers = #tpu.dot_dimension_numbers<[1], [0], [0], [1], [0, 0, 1, 1], [], []>} : vector<8x64xf32>, vector<64x32xf32>, vector<8x32xf32> -> vector<8x32xf32>
    %c0_27 = arith.constant 0 : index
    %c0_28 = arith.constant 0 : index
    %80 = vector.load %arg8[%c0_27, %c0_28] : memref<1x32xf32, #tpu.memory_space<vmem>>, vector<1x32xf32>
    %81 = vector.broadcast %80 : vector<1x32xf32> to vector<8x32xf32>
    %82 = arith.addf %79, %81 : vector<8x32xf32>
    %cst_29 = arith.constant dense<0.000000e+00> : vector<8xf32>
    %83 = vector.multi_reduction <add>, %82, %cst_29 [1] : vector<8x32xf32> to vector<8xf32>
    %84 = vector.shape_cast %83 : vector<8xf32> to vector<8x1xf32>
    %cst_30 = arith.constant 3.200000e+01 : f32
    %85 = vector.broadcast %cst_30 : f32 to vector<8x1xf32>
    %86 = arith.divf %84, %85 : vector<8x1xf32>
    %87 = vector.broadcast %86 : vector<8x1xf32> to vector<8x32xf32>
    %88 = arith.subf %82, %87 : vector<8x32xf32>
    %89 = arith.mulf %88, %88 : vector<8x32xf32>
    %cst_31 = arith.constant dense<0.000000e+00> : vector<8xf32>
    %90 = vector.multi_reduction <add>, %89, %cst_31 [1] : vector<8x32xf32> to vector<8xf32>
    %91 = vector.shape_cast %90 : vector<8xf32> to vector<8x1xf32>
    %cst_32 = arith.constant 3.200000e+01 : f32
    %92 = vector.broadcast %cst_32 : f32 to vector<8x1xf32>
    %93 = arith.divf %91, %92 : vector<8x1xf32>
    %94 = vector.broadcast %86 : vector<8x1xf32> to vector<8x32xf32>
    %95 = arith.subf %82, %94 : vector<8x32xf32>
    %cst_33 = arith.constant 9.99999974E-6 : f32
    %96 = vector.broadcast %cst_33 : f32 to vector<8x1xf32>
    %97 = arith.addf %93, %96 : vector<8x1xf32>
    %98 = math.rsqrt %97 : vector<8x1xf32>
    %99 = vector.broadcast %98 : vector<8x1xf32> to vector<8x32xf32>
    %100 = arith.mulf %95, %99 : vector<8x32xf32>
    %c0_34 = arith.constant 0 : index
    %c0_35 = arith.constant 0 : index
    %c0_36 = arith.constant 0 : index
    %101 = vector.load %arg9[%c0_34, %c0_35, %c0_36] : memref<2x32x32xf32, #tpu.memory_space<vmem>>, vector<1x32x32xf32>
    %102 = vector.shape_cast %101 : vector<1x32x32xf32> to vector<32x32xf32>
    %cst_37 = arith.constant dense<0.000000e+00> : vector<8x32xf32>
    %103 = tpu.matmul %100, %102, %cst_37 {dimension_numbers = #tpu.dot_dimension_numbers<[1], [0], [0], [1], [0, 0, 1, 1], [], []>} : vector<8x32xf32>, vector<32x32xf32>, vector<8x32xf32> -> vector<8x32xf32>
    %c0_38 = arith.constant 0 : index
    %c0_39 = arith.constant 0 : index
    %c0_40 = arith.constant 0 : index
    %104 = vector.load %arg10[%c0_38, %c0_39, %c0_40] : memref<2x1x32xf32, #tpu.memory_space<vmem>>, vector<1x1x32xf32>
    %105 = vector.shape_cast %104 : vector<1x1x32xf32> to vector<1x32xf32>
    %106 = vector.broadcast %105 : vector<1x32xf32> to vector<8x32xf32>
    %107 = arith.addf %103, %106 : vector<8x32xf32>
    %cst_41 = arith.constant 0.000000e+00 : f32
    %108 = vector.broadcast %cst_41 : f32 to vector<8x32xf32>
    %109 = arith.maximumf %107, %108 : vector<8x32xf32>
    %cst_42 = arith.constant dense<0.000000e+00> : vector<8xf32>
    %110 = vector.multi_reduction <add>, %109, %cst_42 [1] : vector<8x32xf32> to vector<8xf32>
    %111 = vector.shape_cast %110 : vector<8xf32> to vector<8x1xf32>
    %cst_43 = arith.constant 3.200000e+01 : f32
    %112 = vector.broadcast %cst_43 : f32 to vector<8x1xf32>
    %113 = arith.divf %111, %112 : vector<8x1xf32>
    %114 = vector.broadcast %113 : vector<8x1xf32> to vector<8x32xf32>
    %115 = arith.subf %109, %114 : vector<8x32xf32>
    %116 = arith.mulf %115, %115 : vector<8x32xf32>
    %cst_44 = arith.constant dense<0.000000e+00> : vector<8xf32>
    %117 = vector.multi_reduction <add>, %116, %cst_44 [1] : vector<8x32xf32> to vector<8xf32>
    %118 = vector.shape_cast %117 : vector<8xf32> to vector<8x1xf32>
    %cst_45 = arith.constant 3.200000e+01 : f32
    %119 = vector.broadcast %cst_45 : f32 to vector<8x1xf32>
    %120 = arith.divf %118, %119 : vector<8x1xf32>
    %121 = vector.broadcast %113 : vector<8x1xf32> to vector<8x32xf32>
    %122 = arith.subf %109, %121 : vector<8x32xf32>
    %cst_46 = arith.constant 9.99999974E-6 : f32
    %123 = vector.broadcast %cst_46 : f32 to vector<8x1xf32>
    %124 = arith.addf %120, %123 : vector<8x1xf32>
    %125 = math.rsqrt %124 : vector<8x1xf32>
    %126 = vector.broadcast %125 : vector<8x1xf32> to vector<8x32xf32>
    %127 = arith.mulf %122, %126 : vector<8x32xf32>
    %c1 = arith.constant 1 : index
    %c0_47 = arith.constant 0 : index
    %c0_48 = arith.constant 0 : index
    %128 = vector.load %arg9[%c1, %c0_47, %c0_48] : memref<2x32x32xf32, #tpu.memory_space<vmem>>, vector<1x32x32xf32>
    %129 = vector.shape_cast %128 : vector<1x32x32xf32> to vector<32x32xf32>
    %cst_49 = arith.constant dense<0.000000e+00> : vector<8x32xf32>
    %130 = tpu.matmul %127, %129, %cst_49 {dimension_numbers = #tpu.dot_dimension_numbers<[1], [0], [0], [1], [0, 0, 1, 1], [], []>} : vector<8x32xf32>, vector<32x32xf32>, vector<8x32xf32> -> vector<8x32xf32>
    %c1_50 = arith.constant 1 : index
    %c0_51 = arith.constant 0 : index
    %c0_52 = arith.constant 0 : index
    %131 = vector.load %arg10[%c1_50, %c0_51, %c0_52] : memref<2x1x32xf32, #tpu.memory_space<vmem>>, vector<1x1x32xf32>
    %132 = vector.shape_cast %131 : vector<1x1x32xf32> to vector<1x32xf32>
    %133 = vector.broadcast %132 : vector<1x32xf32> to vector<8x32xf32>
    %134 = arith.addf %130, %133 : vector<8x32xf32>
    %cst_53 = arith.constant 0.000000e+00 : f32
    %135 = vector.broadcast %cst_53 : f32 to vector<8x32xf32>
    %136 = arith.maximumf %134, %135 : vector<8x32xf32>
    %c0_54 = arith.constant 0 : index
    %c0_55 = arith.constant 0 : index
    %137 = vector.load %arg11[%c0_54, %c0_55] : memref<8x32xf32, #tpu.memory_space<vmem>>, vector<8x32xf32>
    tpu.vector_store %arg11[%c0_54, %c0_55], %136 {strides = array<i32>} : memref<8x32xf32, #tpu.memory_space<vmem>>, vector<8x32xf32>,
    return
  }
  func.func @transform_0(%arg0: i32) -> (i32, i32, i32) {
    %c0_i32 = arith.constant 0 : i32
    %c0_i32_0 = arith.constant 0 : i32
    %c0_i32_1 = arith.constant 0 : i32
    return %arg0, %c0_i32, %c0_i32_0 : i32, i32, i32
  }
  func.func @transform_1(%arg0: i32) -> (i32, i32, i32) {
    %c0_i32 = arith.constant 0 : i32
    %c0_i32_0 = arith.constant 0 : i32
    %c0_i32_1 = arith.constant 0 : i32
    return %arg0, %c0_i32, %c0_i32_0 : i32, i32, i32
  }
  func.func @transform_2(%arg0: i32) -> (i32, i32) {
    %c0_i32 = arith.constant 0 : i32
    %c0_i32_0 = arith.constant 0 : i32
    %c0_i32_1 = arith.constant 0 : i32
    return %c0_i32, %c0_i32_0 : i32, i32
  }
  func.func @transform_3(%arg0: i32) -> (i32, i32) {
    %c0_i32 = arith.constant 0 : i32
    %c0_i32_0 = arith.constant 0 : i32
    %c0_i32_1 = arith.constant 0 : i32
    return %c0_i32, %c0_i32_0 : i32, i32
  }
  func.func @transform_4(%arg0: i32) -> (i32, i32) {
    %c0_i32 = arith.constant 0 : i32
    %c0_i32_0 = arith.constant 0 : i32
    %c0_i32_1 = arith.constant 0 : i32
    return %c0_i32, %c0_i32_0 : i32, i32
  }
  func.func @transform_5(%arg0: i32) -> (i32, i32) {
    %c0_i32 = arith.constant 0 : i32
    %c0_i32_0 = arith.constant 0 : i32
    %c0_i32_1 = arith.constant 0 : i32
    return %c0_i32, %c0_i32_0 : i32, i32
  }
  func.func @transform_6(%arg0: i32) -> (i32, i32) {
    %c0_i32 = arith.constant 0 : i32
    %c0_i32_0 = arith.constant 0 : i32
    %c0_i32_1 = arith.constant 0 : i32
    return %c0_i32, %c0_i32_0 : i32, i32
  }
  func.func @transform_7(%arg0: i32) -> (i32, i32) {
    %c0_i32 = arith.constant 0 : i32
    %c0_i32_0 = arith.constant 0 : i32
    %c0_i32_1 = arith.constant 0 : i32
    return %c0_i32, %c0_i32_0 : i32, i32
  }
  func.func @transform_8(%arg0: i32) -> (i32, i32, i32) {
    %c0_i32 = arith.constant 0 : i32
    %c0_i32_0 = arith.constant 0 : i32
    %c0_i32_1 = arith.constant 0 : i32
    %c0_i32_2 = arith.constant 0 : i32
    return %c0_i32, %c0_i32_0, %c0_i32_1 : i32, i32, i32
  }
  func.func @transform_9(%arg0: i32) -> (i32, i32, i32) {
    %c0_i32 = arith.constant 0 : i32
    %c0_i32_0 = arith.constant 0 : i32
    %c0_i32_1 = arith.constant 0 : i32
    %c0_i32_2 = arith.constant 0 : i32
    return %c0_i32, %c0_i32_0, %c0_i32_1 : i32, i32, i32
  }
  func.func @transform_10(%arg0: i32) -> (i32, i32) {
    %c0_i32 = arith.constant 0 : i32
    %c0_i32_0 = arith.constant 0 : i32
    return %arg0, %c0_i32 : i32, i32
  }
}

module attributes {stable_mosaic.version = 11 : i64} {
  func.func @attn_combiner_kernel(%arg0: i32, %arg1: memref<8x1x1xi32, #tpu.memory_space<vmem>>, %arg2: memref<8x8x32xf32, #tpu.memory_space<vmem>>, %arg3: memref<32x64xf32, #tpu.memory_space<vmem>>, %arg4: memref<1x64xf32, #tpu.memory_space<vmem>>, %arg5: memref<32x64xf32, #tpu.memory_space<vmem>>, %arg6: memref<1x64xf32, #tpu.memory_space<vmem>>, %arg7: memref<64x32xf32, #tpu.memory_space<vmem>>, %arg8: memref<1x32xf32, #tpu.memory_space<vmem>>, %arg9: memref<2x32x32xf32, #tpu.memory_space<vmem>>, %arg10: memref<2x1x32xf32, #tpu.memory_space<vmem>>, %arg11: memref<8x32xf32, #tpu.memory_space<vmem>>) attributes {dimension_semantics = [#tpu.dimension_semantics<parallel>], iteration_bounds = array<i64: 1>, scalar_prefetch = 0 : i64, scratch_operands = 0 : i64, tpu.core_type = #tpu.core_type<tc>, window_params = [{transform_indices = @transform_0, window_bounds = array<i64: 8, 1, 1>}, {transform_indices = @transform_1, window_bounds = array<i64: 8, 8, 32>}, {pipeline_mode = #tpu.pipeline_mode<synchronous>, transform_indices = @transform_2, window_bounds = array<i64: 32, 64>}, {pipeline_mode = #tpu.pipeline_mode<synchronous>, transform_indices = @transform_3, window_bounds = array<i64: 1, 64>}, {pipeline_mode = #tpu.pipeline_mode<synchronous>, transform_indices = @transform_4, window_bounds = array<i64: 32, 64>}, {pipeline_mode = #tpu.pipeline_mode<synchronous>, transform_indices = @transform_5, window_bounds = array<i64: 1, 64>}, {pipeline_mode = #tpu.pipeline_mode<synchronous>, transform_indices = @transform_6, window_bounds = array<i64: 64, 32>}, {pipeline_mode = #tpu.pipeline_mode<synchronous>, transform_indices = @transform_7, window_bounds = array<i64: 1, 32>}, {pipeline_mode = #tpu.pipeline_mode<synchronous>, transform_indices = @transform_8, window_bounds = array<i64: 2, 32, 32>}, {pipeline_mode = #tpu.pipeline_mode<synchronous>, transform_indices = @transform_9, window_bounds = array<i64: 2, 1, 32>}, {transform_indices = @transform_10, window_bounds = array<i64: 8, 32>}]} {
    %c0 = arith.constant 0 : index
    %c0_0 = arith.constant 0 : index
    %c0_1 = arith.constant 0 : index
    %0 = vector.load %arg2[%c0, %c0_0, %c0_1] : memref<8x8x32xf32, #tpu.memory_space<vmem>>, vector<8x8x32xf32>
    %c0_2 = arith.constant 0 : index
    %c0_3 = arith.constant 0 : index
    %c0_4 = arith.constant 0 : index
    %1 = vector.load %arg1[%c0_2, %c0_3, %c0_4] : memref<8x1x1xi32, #tpu.memory_space<vmem>>, vector<8x1x1xi32>
    %2 = tpu.iota {dimensions = array<i32: 1>} : vector<8x8x1xi32>
    %c0_i32 = arith.constant 0 : i32
    %3 = vector.broadcast %c0_i32 : i32 to vector<8x8x1xi32>
    %4 = arith.cmpi eq, %2, %3 : vector<8x8x1xi32>
    %5 = arith.extui %4 : vector<8x8x1xi1> to vector<8x8x1xi32>
    %6 = arith.sitofp %5 : vector<8x8x1xi32> to vector<8x8x1xf32>
    %c1_i32 = arith.constant 1 : i32
    %7 = vector.broadcast %c1_i32 : i32 to vector<8x1x1xi32>
    %8 = arith.subi %1, %7 : vector<8x1x1xi32>
    %9 = vector.broadcast %8 : vector<8x1x1xi32> to vector<8x8x1xi32>
    %10 = arith.cmpi eq, %2, %9 : vector<8x8x1xi32>
    %11 = arith.extui %10 : vector<8x8x1xi1> to vector<8x8x1xi32>
    %12 = arith.sitofp %11 : vector<8x8x1xi32> to vector<8x8x1xf32>
    %13 = arith.addf %6, %12 : vector<8x8x1xf32>
    %14 = vector.broadcast %13 : vector<8x8x1xf32> to vector<8x8x32xf32>
    %15 = arith.mulf %0, %14 : vector<8x8x32xf32>
    %cst = arith.constant dense<0.000000e+00> : vector<8x32xf32>
    %16 = vector.multi_reduction <add>, %15, %cst [1] : vector<8x8x32xf32> to vector<8x32xf32>
    %c0_5 = arith.constant 0 : index
    %c0_6 = arith.constant 0 : index
    %17 = vector.load %arg3[%c0_5, %c0_6] : memref<32x64xf32, #tpu.memory_space<vmem>>, vector<32x64xf32>
    %cst_7 = arith.constant dense<0.000000e+00> : vector<8x64xf32>
    %18 = tpu.matmul %16, %17, %cst_7 {dimension_numbers = #tpu.dot_dimension_numbers<[1], [0], [0], [1], [0, 0, 1, 1], [], []>} : vector<8x32xf32>, vector<32x64xf32>, vector<8x64xf32> -> vector<8x64xf32>
    %c0_8 = arith.constant 0 : index
    %c0_9 = arith.constant 0 : index
    %19 = vector.load %arg4[%c0_8, %c0_9] : memref<1x64xf32, #tpu.memory_space<vmem>>, vector<1x64xf32>
    %20 = vector.broadcast %19 : vector<1x64xf32> to vector<8x64xf32>
    %21 = arith.addf %18, %20 : vector<8x64xf32>
    %cst_10 = arith.constant 0.176776692 : f32
    %22 = vector.broadcast %cst_10 : f32 to vector<8x64xf32>
    %23 = arith.mulf %21, %22 : vector<8x64xf32>
    %24 = vector.shape_cast %0 : vector<8x8x32xf32> to vector<64x32xf32>
    %c0_11 = arith.constant 0 : index
    %c0_12 = arith.constant 0 : index
    %25 = vector.load %arg5[%c0_11, %c0_12] : memref<32x64xf32, #tpu.memory_space<vmem>>, vector<32x64xf32>
    %cst_13 = arith.constant dense<0.000000e+00> : vector<64x64xf32>
    %26 = tpu.matmul %24, %25, %cst_13 {dimension_numbers = #tpu.dot_dimension_numbers<[1], [0], [0], [1], [0, 0, 1, 1], [], []>} : vector<64x32xf32>, vector<32x64xf32>, vector<64x64xf32> -> vector<64x64xf32>
    %c0_14 = arith.constant 0 : index
    %c0_15 = arith.constant 0 : index
    %27 = vector.load %arg6[%c0_14, %c0_15] : memref<1x64xf32, #tpu.memory_space<vmem>>, vector<1x64xf32>
    %28 = vector.broadcast %27 : vector<1x64xf32> to vector<64x64xf32>
    %29 = arith.addf %26, %28 : vector<64x64xf32>
    %30 = vector.shape_cast %29 : vector<64x64xf32> to vector<8x8x64xf32>
    %31 = tpu.iota {dimensions = array<i32: 1>} : vector<2x64xi32>
    %32 = tpu.iota {dimensions = array<i32: 0>} : vector<2x64xi32>
    %c32_i32 = arith.constant 32 : i32
    %33 = vector.broadcast %c32_i32 : i32 to vector<2x64xi32>
    %34 = arith.muli %32, %33 : vector<2x64xi32>
    %35 = arith.cmpi sge, %31, %34 : vector<2x64xi32>
    %c1_i32_16 = arith.constant 1 : i32
    %36 = vector.broadcast %c1_i32_16 : i32 to vector<2x64xi32>
    %37 = arith.addi %32, %36 : vector<2x64xi32>
    %c32_i32_17 = arith.constant 32 : i32
    %38 = vector.broadcast %c32_i32_17 : i32 to vector<2x64xi32>
    %39 = arith.muli %37, %38 : vector<2x64xi32>
    %40 = arith.cmpi slt, %31, %39 : vector<2x64xi32>
    %41 = arith.andi %35, %40 : vector<2x64xi1>
    %42 = arith.extui %41 : vector<2x64xi1> to vector<2x64xi32>
    %43 = arith.sitofp %42 : vector<2x64xi32> to vector<2x64xf32>
    %44 = vector.shape_cast %23 : vector<8x64xf32> to vector<8x1x64xf32>
    %45 = vector.shape_cast %43 : vector<2x64xf32> to vector<1x2x64xf32>
    %46 = vector.broadcast %44 : vector<8x1x64xf32> to vector<8x2x64xf32>
    %47 = vector.broadcast %45 : vector<1x2x64xf32> to vector<8x2x64xf32>
    %48 = arith.mulf %46, %47 : vector<8x2x64xf32>
    "tpu.trace_start"() <{level = 10 : i32, message = "thj,tsj->ths"}> : () -> ()
    %cst_18 = arith.constant dense<0.000000e+00> : vector<8x2x8xf32>
    %49 = tpu.matmul %48, %30, %cst_18 {dimension_numbers = #tpu.dot_dimension_numbers<[2], [2], [1], [1], [0, 0, 0, 1, 1, 1], [0], [0]>} : vector<8x2x64xf32>, vector<8x8x64xf32>, vector<8x2x8xf32> -> vector<8x2x8xf32>
    "tpu.trace_stop"() : () -> ()
    %50 = tpu.iota {dimensions = array<i32: 2>} : vector<1x1x8xi32>
    %51 = vector.broadcast %50 : vector<1x1x8xi32> to vector<8x1x8xi32>
    %52 = vector.broadcast %1 : vector<8x1x1xi32> to vector<8x1x8xi32>
    %53 = arith.cmpi slt, %51, %52 : vector<8x1x8xi32>
    %cst_19 = arith.constant -1.000000e+30 : f32
    %54 = vector.shape_cast %53 : vector<8x1x8xi1> to vector<8x1x8xi1>
    %55 = vector.broadcast %54 : vector<8x1x8xi1> to vector<8x2x8xi1>
    %56 = vector.broadcast %cst_19 : f32 to vector<8x2x8xf32>
    %57 = arith.select %55, %49, %56 : vector<8x2x8xi1>, vector<8x2x8xf32>
    %cst_20 = arith.constant dense<0xFF800000> : vector<8x2xf32>
    %58 = vector.multi_reduction <maximumf>, %57, %cst_20 [2] : vector<8x2x8xf32> to vector<8x2xf32>
    %59 = vector.shape_cast %58 : vector<8x2xf32> to vector<8x2x1xf32>
    %60 = vector.broadcast %59 : vector<8x2x1xf32> to vector<8x2x8xf32>
    %61 = arith.subf %57, %60 : vector<8x2x8xf32>
    %62 = math.exp %61 : vector<8x2x8xf32>
    %cst_21 = arith.constant 0.000000e+00 : f32
    %63 = vector.shape_cast %53 : vector<8x1x8xi1> to vector<8x1x8xi1>
    %64 = vector.broadcast %63 : vector<8x1x8xi1> to vector<8x2x8xi1>
    %65 = vector.broadcast %cst_21 : f32 to vector<8x2x8xf32>
    %66 = arith.select %64, %62, %65 : vector<8x2x8xi1>, vector<8x2x8xf32>
    %cst_22 = arith.constant dense<0.000000e+00> : vector<8x2xf32>
    %67 = vector.multi_reduction <add>, %66, %cst_22 [2] : vector<8x2x8xf32> to vector<8x2xf32>
    %68 = vector.shape_cast %67 : vector<8x2xf32> to vector<8x2x1xf32>
    %69 = tpu.reciprocal %68 : vector<8x2x1xf32> -> vector<8x2x1xf32>
    %70 = vector.broadcast %69 : vector<8x2x1xf32> to vector<8x2x8xf32>
    %71 = arith.mulf %66, %70 : vector<8x2x8xf32>
    "tpu.trace_start"() <{level = 10 : i32, message = "ths,tsd->thd"}> : () -> ()
    %cst_23 = arith.constant dense<0.000000e+00> : vector<8x2x32xf32>
    %72 = tpu.matmul %71, %0, %cst_23 {dimension_numbers = #tpu.dot_dimension_numbers<[2], [1], [1], [2], [0, 0, 0, 1, 1, 2], [0], [0]>} : vector<8x2x8xf32>, vector<8x8x32xf32>, vector<8x2x32xf32> -> vector<8x2x32xf32>
    "tpu.trace_stop"() : () -> ()
    %73 = vector.extract_strided_slice %72 {offsets = [0, 0, 0], sizes = [8, 1, 32], strides = [1, 1, 1]} : vector<8x2x32xf32> to vector<8x1x32xf32>
    %74 = vector.shape_cast %73 : vector<8x1x32xf32> to vector<8x32xf32>
    %75 = vector.extract_strided_slice %72 {offsets = [0, 1, 0], sizes = [8, 1, 32], strides = [1, 1, 1]} : vector<8x2x32xf32> to vector<8x1x32xf32>
    %76 = vector.shape_cast %75 : vector<8x1x32xf32> to vector<8x32xf32>
    %77 = tpu.concatenate %74, %76 in 1 : vector<8x32xf32>, vector<8x32xf32> -> vector<8x64xf32>
    %c0_24 = arith.constant 0 : index
    %c0_25 = arith.constant 0 : index
    %78 = vector.load %arg7[%c0_24, %c0_25] : memref<64x32xf32, #tpu.memory_space<vmem>>, vector<64x32xf32>
    %cst_26 = arith.constant dense<0.000000e+00> : vector<8x32xf32>
    %79 = tpu.matmul %77, %78, %cst_26 {dimension_numbers = #tpu.dot_dimension_numbers<[1], [0], [0], [1], [0, 0, 1, 1], [], []>} : vector<8x64xf32>, vector<64x32xf32>, vector<8x32xf32> -> vector<8x32xf32>
    %c0_27 = arith.constant 0 : index
    %c0_28 = arith.constant 0 : index
    %80 = vector.load %arg8[%c0_27, %c0_28] : memref<1x32xf32, #tpu.memory_space<vmem>>, vector<1x32xf32>
    %81 = vector.broadcast %80 : vector<1x32xf32> to vector<8x32xf32>
    %82 = arith.addf %79, %81 : vector<8x32xf32>
    %cst_29 = arith.constant dense<0.000000e+00> : vector<8xf32>
    %83 = vector.multi_reduction <add>, %82, %cst_29 [1] : vector<8x32xf32> to vector<8xf32>
    %84 = vector.shape_cast %83 : vector<8xf32> to vector<8x1xf32>
    %cst_30 = arith.constant 3.200000e+01 : f32
    %85 = vector.broadcast %cst_30 : f32 to vector<8x1xf32>
    %86 = arith.divf %84, %85 : vector<8x1xf32>
    %87 = vector.broadcast %86 : vector<8x1xf32> to vector<8x32xf32>
    %88 = arith.subf %82, %87 : vector<8x32xf32>
    %89 = arith.mulf %88, %88 : vector<8x32xf32>
    %cst_31 = arith.constant dense<0.000000e+00> : vector<8xf32>
    %90 = vector.multi_reduction <add>, %89, %cst_31 [1] : vector<8x32xf32> to vector<8xf32>
    %91 = vector.shape_cast %90 : vector<8xf32> to vector<8x1xf32>
    %cst_32 = arith.constant 3.200000e+01 : f32
    %92 = vector.broadcast %cst_32 : f32 to vector<8x1xf32>
    %93 = arith.divf %91, %92 : vector<8x1xf32>
    %94 = vector.broadcast %86 : vector<8x1xf32> to vector<8x32xf32>
    %95 = arith.subf %82, %94 : vector<8x32xf32>
    %cst_33 = arith.constant 9.99999974E-6 : f32
    %96 = vector.broadcast %cst_33 : f32 to vector<8x1xf32>
    %97 = arith.addf %93, %96 : vector<8x1xf32>
    %98 = math.rsqrt %97 : vector<8x1xf32>
    %99 = vector.broadcast %98 : vector<8x1xf32> to vector<8x32xf32>
    %100 = arith.mulf %95, %99 : vector<8x32xf32>
    %c0_34 = arith.constant 0 : index
    %c0_35 = arith.constant 0 : index
    %c0_36 = arith.constant 0 : index
    %101 = vector.load %arg9[%c0_34, %c0_35, %c0_36] : memref<2x32x32xf32, #tpu.memory_space<vmem>>, vector<1x32x32xf32>
    %102 = vector.shape_cast %101 : vector<1x32x32xf32> to vector<32x32xf32>
    %cst_37 = arith.constant dense<0.000000e+00> : vector<8x32xf32>
    %103 = tpu.matmul %100, %102, %cst_37 {dimension_numbers = #tpu.dot_dimension_numbers<[1], [0], [0], [1], [0, 0, 1, 1], [], []>} : vector<8x32xf32>, vector<32x32xf32>, vector<8x32xf32> -> vector<8x32xf32>
    %c0_38 = arith.constant 0 : index
    %c0_39 = arith.constant 0 : index
    %c0_40 = arith.constant 0 : index
    %104 = vector.load %arg10[%c0_38, %c0_39, %c0_40] : memref<2x1x32xf32, #tpu.memory_space<vmem>>, vector<1x1x32xf32>
    %105 = vector.shape_cast %104 : vector<1x1x32xf32> to vector<1x32xf32>
    %106 = vector.broadcast %105 : vector<1x32xf32> to vector<8x32xf32>
    %107 = arith.addf %103, %106 : vector<8x32xf32>
    %cst_41 = arith.constant 0.000000e+00 : f32
    %108 = vector.broadcast %cst_41 : f32 to vector<8x32xf32>
    %109 = arith.maximumf %107, %108 : vector<8x32xf32>
    %cst_42 = arith.constant dense<0.000000e+00> : vector<8xf32>
    %110 = vector.multi_reduction <add>, %109, %cst_42 [1] : vector<8x32xf32> to vector<8xf32>
    %111 = vector.shape_cast %110 : vector<8xf32> to vector<8x1xf32>
    %cst_43 = arith.constant 3.200000e+01 : f32
    %112 = vector.broadcast %cst_43 : f32 to vector<8x1xf32>
    %113 = arith.divf %111, %112 : vector<8x1xf32>
    %114 = vector.broadcast %113 : vector<8x1xf32> to vector<8x32xf32>
    %115 = arith.subf %109, %114 : vector<8x32xf32>
    %116 = arith.mulf %115, %115 : vector<8x32xf32>
    %cst_44 = arith.constant dense<0.000000e+00> : vector<8xf32>
    %117 = vector.multi_reduction <add>, %116, %cst_44 [1] : vector<8x32xf32> to vector<8xf32>
    %118 = vector.shape_cast %117 : vector<8xf32> to vector<8x1xf32>
    %cst_45 = arith.constant 3.200000e+01 : f32
    %119 = vector.broadcast %cst_45 : f32 to vector<8x1xf32>
    %120 = arith.divf %118, %119 : vector<8x1xf32>
    %121 = vector.broadcast %113 : vector<8x1xf32> to vector<8x32xf32>
    %122 = arith.subf %109, %121 : vector<8x32xf32>
    %cst_46 = arith.constant 9.99999974E-6 : f32
    %123 = vector.broadcast %cst_46 : f32 to vector<8x1xf32>
    %124 = arith.addf %120, %123 : vector<8x1xf32>
    %125 = math.rsqrt %124 : vector<8x1xf32>
    %126 = vector.broadcast %125 : vector<8x1xf32> to vector<8x32xf32>
    %127 = arith.mulf %122, %126 : vector<8x32xf32>
    %c1 = arith.constant 1 : index
    %c0_47 = arith.constant 0 : index
    %c0_48 = arith.constant 0 : index
    %128 = vector.load %arg9[%c1, %c0_47, %c0_48] : memref<2x32x32xf32, #tpu.memory_space<vmem>>, vector<1x32x32xf32>
    %129 = vector.shape_cast %128 : vector<1x32x32xf32> to vector<32x32xf32>
    %cst_49 = arith.constant dense<0.000000e+00> : vector<8x32xf32>
    %130 = tpu.matmul %127, %129, %cst_49 {dimension_numbers = #tpu.dot_dimension_numbers<[1], [0], [0], [1], [0, 0, 1, 1], [], []>} : vector<8x32xf32>, vector<32x32xf32>, vector<8x32xf32> -> vector<8x32xf32>
    %c1_50 = arith.constant 1 : index
    %c0_51 = arith.constant 0 : index
    %c0_52 = arith.constant 0 : index
    %131 = vector.load %arg10[%c1_50, %c0_51, %c0_52] : memref<2x1x32xf32, #tpu.memory_space<vmem>>, vector<1x1x32xf32>
    %132 = vector.shape_cast %131 : vector<1x1x32xf32> to vector<1x32xf32>
    %133 = vector.broadcast %132 : vector<1x32xf32> to vector<8x32xf32>
    %134 = arith.addf %130, %133 : vector<8x32xf32>
    %cst_53 = arith.constant 0.000000e+00 : f32
    %135 = vector.broadcast %cst_53 : f32 to vector<8x32xf32>
    %136 = arith.maximumf %134, %135 : vector<8x32xf32>
    %c0_54 = arith.constant 0 : index
    %c0_55 = arith.constant 0 : index
    %137 = vector.load %arg11[%c0_54, %c0_55] : memref<8x32xf32, #tpu.memory_space<vmem>>, vector<8x32xf32>
    tpu.vector_store %arg11[%c0_54, %c0_55], %136 {strides = array<i32>} : memref<8x32xf32, #tpu.memory_space<vmem>>, vector<8x32xf32>,
    return
  }
  func.func @transform_0(%arg0: i32) -> (i32, i32, i32) {
    %c0_i32 = arith.constant 0 : i32
    %c0_i32_0 = arith.constant 0 : i32
    %c0_i32_1 = arith.constant 0 : i32
    return %arg0, %c0_i32, %c0_i32_0 : i32, i32, i32
  }
  func.func @transform_1(%arg0: i32) -> (i32, i32, i32) {
    %c0_i32 = arith.constant 0 : i32
    %c0_i32_0 = arith.constant 0 : i32
    %c0_i32_1 = arith.constant 0 : i32
    return %arg0, %c0_i32, %c0_i32_0 : i32, i32, i32
  }
  func.func @transform_2(%arg0: i32) -> (i32, i32) {
    %c0_i32 = arith.constant 0 : i32
    %c0_i32_0 = arith.constant 0 : i32
    %c0_i32_1 = arith.constant 0 : i32
    return %c0_i32, %c0_i32_0 : i32, i32
  }
  func.func @transform_3(%arg0: i32) -> (i32, i32) {
    %c0_i32 = arith.constant 0 : i32
    %c0_i32_0 = arith.constant 0 : i32
    %c0_i32_1 = arith.constant 0 : i32
    return %c0_i32, %c0_i32_0 : i32, i32
  }
  func.func @transform_4(%arg0: i32) -> (i32, i32) {
    %c0_i32 = arith.constant 0 : i32
    %c0_i32_0 = arith.constant 0 : i32
    %c0_i32_1 = arith.constant 0 : i32
    return %c0_i32, %c0_i32_0 : i32, i32
  }
  func.func @transform_5(%arg0: i32) -> (i32, i32) {
    %c0_i32 = arith.constant 0 : i32
    %c0_i32_0 = arith.constant 0 : i32
    %c0_i32_1 = arith.constant 0 : i32
    return %c0_i32, %c0_i32_0 : i32, i32
  }
  func.func @transform_6(%arg0: i32) -> (i32, i32) {
    %c0_i32 = arith.constant 0 : i32
    %c0_i32_0 = arith.constant 0 : i32
    %c0_i32_1 = arith.constant 0 : i32
    return %c0_i32, %c0_i32_0 : i32, i32
  }
  func.func @transform_7(%arg0: i32) -> (i32, i32) {
    %c0_i32 = arith.constant 0 : i32
    %c0_i32_0 = arith.constant 0 : i32
    %c0_i32_1 = arith.constant 0 : i32
    return %c0_i32, %c0_i32_0 : i32, i32
  }
  func.func @transform_8(%arg0: i32) -> (i32, i32, i32) {
    %c0_i32 = arith.constant 0 : i32
    %c0_i32_0 = arith.constant 0 : i32
    %c0_i32_1 = arith.constant 0 : i32
    %c0_i32_2 = arith.constant 0 : i32
    return %c0_i32, %c0_i32_0, %c0_i32_1 : i32, i32, i32
  }
  func.func @transform_9(%arg0: i32) -> (i32, i32, i32) {
    %c0_i32 = arith.constant 0 : i32
    %c0_i32_0 = arith.constant 0 : i32
    %c0_i32_1 = arith.constant 0 : i32
    %c0_i32_2 = arith.constant 0 : i32
    return %c0_i32, %c0_i32_0, %c0_i32_1 : i32, i32, i32
  }
  func.func @transform_10(%arg0: i32) -> (i32, i32) {
    %c0_i32 = arith.constant 0 : i32
    %c0_i32_0 = arith.constant 0 : i32
    return %arg0, %c0_i32 : i32, i32
  }
}

</mosaic_0001>

<llo_original>
// kernel: tpu_custom_call.1
$region0: #{tpu_custom_call.1}
  #allocation0 [shape = 'u32[]', space=smem, size = 0x4, offset = 0x4, fixed_abs, tag = 'smem constant byte address 0x4 - core index']
  #allocation1 [shape = 'u32[144,128]{1,0:T(1,128)}', space=vmem, size = 0x12000, scoped, tag = 'internal scratch']
  %s0 = inlined_call_operand.vmem [shape: s32[8,1,1], index: 0, kind: input, shape index: {}]
  %s1 = inlined_call_operand.vmem [shape: f32[8,8,32], index: 1, kind: input, shape index: {}]
  %s2 = inlined_call_operand.hbm [shape: f32[32,64], index: 2, kind: input, shape index: {}]
  %s3 = inlined_call_operand.vmem [shape: f32[1,64], index: 3, kind: input, shape index: {}]
  %s4 = inlined_call_operand.hbm [shape: f32[32,64], index: 4, kind: input, shape index: {}]
  %s5 = inlined_call_operand.hbm [shape: f32[1,64], index: 5, kind: input, shape index: {}]
  %s6 = inlined_call_operand.vmem [shape: f32[64,32], index: 6, kind: input, shape index: {}]
  %s7 = inlined_call_operand.hbm [shape: f32[1,32], index: 7, kind: input, shape index: {}]
  %s8 = inlined_call_operand.vmem [shape: f32[2,32,32], index: 8, kind: input, shape index: {}]
  %s9 = inlined_call_operand.vmem [shape: f32[2,1,32], index: 9, kind: input, shape index: {}]
  %s10 = inlined_call_operand.hbm [shape: f32[8,32], index: 10, kind: output, shape index: {}]
  %s11 = sld [smem:[#allocation0]]
  $region66: #{tpu_custom_call.1} parent=0
    _
  %s13 = ssub.s32 1, %s11
  %s14 = scalar_select 0, %s13, %s11
  $region1: #{tpu_custom_call.1} parent=0
    #allocation2 [shape = 'u8[16384]{0}', space=vmem, size = 0x4000, scoped, tag = 'input window, operand 2, single buffered']
    #allocation3 [shape = 's32[1]{0}', space=sflag, size = 0x4, scoped, tag = 'scoped memory for tpu_custom_call.1']
    #allocation4 [shape = 's32[1]{0}', space=sflag, size = 0x4, scoped, tag = 'scoped memory for tpu_custom_call.1']
    #allocation5 [shape = 'u8[16384]{0}', space=vmem, size = 0x4000, scoped, tag = 'input window, operand 4, single buffered']
    #allocation6 [shape = 's32[1]{0}', space=sflag, size = 0x4, scoped, tag = 'scoped memory for tpu_custom_call.1']
    #allocation7 [shape = 'u8[512]{0}', space=vmem, size = 0x400, scoped, tag = 'input window, operand 5, single buffered']
    #allocation8 [shape = 'u8[512]{0}', space=vmem, size = 0x400, scoped, tag = 'input window, operand 7, single buffered']
    #allocation9 [shape = 's32[1]{0}', space=sflag, size = 0x4, scoped, tag = 'scoped memory for tpu_custom_call.1']
    #allocation10 [shape = 'u8[4096]{0}', space=vmem, size = 0x1000, scoped, tag = 'output window, operand 0, single buffered']
    %15 = vsyncpa [#allocation3], 0
    %16 = vsyncpa [#allocation6], 0
    %17 = vsyncpa [#allocation9], 0
    %18 = vsyncpa [#allocation4], 0
    // Predicated region
    $region2: #{tpu_custom_call.1} parent=1 // pred_check
      _
    $region3: #{tpu_custom_call.1} parent=1 // pred_check_branch
      %20 = sbr.rel (0) target = $region5
    $region4: #{tpu_custom_call.1} parent=1 // pred_region
      _
    $region5: #{tpu_custom_call.1} parent=1 // pred_fallthru
      _
    // Predicated region
    $region6: #{tpu_custom_call.1} parent=1 // pred_check
      _
    $region7: #{tpu_custom_call.1} parent=1 // pred_check_branch
      %22 = sbr.rel (0) target = $region9
    $region8: #{tpu_custom_call.1} parent=1 // pred_region
      _
    $region9: #{tpu_custom_call.1} parent=1 // pred_fallthru
      _
    // Predicated region
    $region10: #{tpu_custom_call.1} parent=1 // pred_check
      _
    $region11: #{tpu_custom_call.1} parent=1 // pred_check_branch
      %24 = sbr.rel (0) target = $region13
    $region12: #{tpu_custom_call.1} parent=1 // pred_region
      %s26 = ssub.s32 512, 512
      %27 = vsyncadd [#allocation3], %s26
      %s28 = sshll.u32 [#allocation2], 4
      %s29 = int_to_ptr.vmem [resolvable:$true] %s28
      %34 = dma.hbm_to_vmem [thread:$0]  %s2, 512, %s29, [#allocation3], 128, 128, 8
    $region13: #{tpu_custom_call.1} parent=1 // pred_fallthru
      _
    // Predicated region
    $region14: #{tpu_custom_call.1} parent=1 // pred_check
      _
    $region15: #{tpu_custom_call.1} parent=1 // pred_check_branch
      %36 = sbr.rel (0) target = $region17
    $region16: #{tpu_custom_call.1} parent=1 // pred_region
      _
    $region17: #{tpu_custom_call.1} parent=1 // pred_fallthru
      _
    // Predicated region
    $region18: #{tpu_custom_call.1} parent=1 // pred_check
      _
    $region19: #{tpu_custom_call.1} parent=1 // pred_check_branch
      %38 = sbr.rel (0) target = $region21
    $region20: #{tpu_custom_call.1} parent=1 // pred_region
      %s40 = ssub.s32 512, 512
      %41 = vsyncadd [#allocation6], %s40
      %s42 = sshll.u32 [#allocation5], 4
      %s43 = int_to_ptr.vmem [resolvable:$true] %s42
      %48 = dma.hbm_to_vmem [thread:$0]  %s4, 512, %s43, [#allocation6], 128, 128, 8
    $region21: #{tpu_custom_call.1} parent=1 // pred_fallthru
      _
    // Predicated region
    $region22: #{tpu_custom_call.1} parent=1 // pred_check
      _
    $region23: #{tpu_custom_call.1} parent=1 // pred_check_branch
      %50 = sbr.rel (0) target = $region25
    $region24: #{tpu_custom_call.1} parent=1 // pred_region
      %s52 = ssub.s32 16, 16
      %53 = vsyncadd [#allocation6], %s52
      %s55 = sshll.u32 [#allocation7], 4
      %s56 = int_to_ptr.vmem [resolvable:$true] %s55
      %58 = dma.hbm_to_vmem [thread:$0]  %s5, 16, %s56, [#allocation6]
    $region25: #{tpu_custom_call.1} parent=1 // pred_fallthru
      _
    // Predicated region
    $region26: #{tpu_custom_call.1} parent=1 // pred_check
      _
    $region27: #{tpu_custom_call.1} parent=1 // pred_check_branch
      %60 = sbr.rel (0) target = $region29
    $region28: #{tpu_custom_call.1} parent=1 // pred_region
      _
    $region29: #{tpu_custom_call.1} parent=1 // pred_fallthru
      _
    // Predicated region
    $region30: #{tpu_custom_call.1} parent=1 // pred_check
      _
    $region31: #{tpu_custom_call.1} parent=1 // pred_check_branch
      %62 = sbr.rel (0) target = $region33
    $region32: #{tpu_custom_call.1} parent=1 // pred_region
      %s64 = ssub.s32 16, 16
      %65 = vsyncadd [#allocation9], %s64
      %s67 = sshll.u32 [#allocation8], 4
      %s68 = int_to_ptr.vmem [resolvable:$true] %s67
      %70 = dma.hbm_to_vmem [thread:$0]  %s7, 16, %s68, [#allocation9]
    $region33: #{tpu_custom_call.1} parent=1 // pred_fallthru
      _
    // Predicated region
    $region34: #{tpu_custom_call.1} parent=1 // pred_check
      _
    $region35: #{tpu_custom_call.1} parent=1 // pred_check_branch
      %72 = sbr.rel (0) target = $region37
    $region36: #{tpu_custom_call.1} parent=1 // pred_region
      _
    $region37: #{tpu_custom_call.1} parent=1 // pred_fallthru
      _
    // Predicated region
    $region38: #{tpu_custom_call.1} parent=1 // pred_check
      _
    $region39: #{tpu_custom_call.1} parent=1 // pred_check_branch
      %74 = sbr.rel (0) target = $region41
    $region40: #{tpu_custom_call.1} parent=1 // pred_region
      _
    $region41: #{tpu_custom_call.1} parent=1 // pred_fallthru
      _
    // Predicated region
    $region42: #{tpu_custom_call.1} parent=1 // pred_check
      _
    $region43: #{tpu_custom_call.1} parent=1 // pred_check_branch
      %76 = sbr.rel (0) target = $region45
    $region44: #{tpu_custom_call.1} parent=1 // pred_region
      %77 = dma.done [#allocation3], 512
    $region45: #{tpu_custom_call.1} parent=1 // pred_fallthru
      _
    // Predicated region
    $region46: #{tpu_custom_call.1} parent=1 // pred_check
      _
    $region47: #{tpu_custom_call.1} parent=1 // pred_check_branch
      %79 = sbr.rel (0) target = $region49
    $region48: #{tpu_custom_call.1} parent=1 // pred_region
      %80 = dma.done [#allocation6], 512
    $region49: #{tpu_custom_call.1} parent=1 // pred_fallthru
      _
    // Predicated region
    $region50: #{tpu_custom_call.1} parent=1 // pred_check
      _
    $region51: #{tpu_custom_call.1} parent=1 // pred_check_branch
      %82 = sbr.rel (0) target = $region53
    $region52: #{tpu_custom_call.1} parent=1 // pred_region
      %83 = dma.done [#allocation6], 16
    $region53: #{tpu_custom_call.1} parent=1 // pred_fallthru
      _
    // Predicated region
    $region54: #{tpu_custom_call.1} parent=1 // pred_check
      _
    $region55: #{tpu_custom_call.1} parent=1 // pred_check_branch
      %85 = sbr.rel (0) target = $region57
    $region56: #{tpu_custom_call.1} parent=1 // pred_region
      %86 = dma.done [#allocation9], 16
    $region57: #{tpu_custom_call.1} parent=1 // pred_fallthru
      _
    %v87 = vld [vmem:[%s1] sm:$0xff]
    %v88 = vld [vmem:[%s1 + $0x8] sm:$0xff]
    %v89 = vld [vmem:[%s1 + $0x10] sm:$0xff]
    %v90 = vld [vmem:[%s1 + $0x18] sm:$0xff]
    %v91 = vld [vmem:[%s1 + $0x20] sm:$0xff]
    %v92 = vld [vmem:[%s1 + $0x28] sm:$0xff]
    %v93 = vld [vmem:[%s1 + $0x30] sm:$0xff]
    %v94 = vld [vmem:[%s1 + $0x38] sm:$0xff]
    %v95 = vld [vmem:[%s0] sm:$0x1]
    %v96 = vld [vmem:[%s0 + $0x1] sm:$0x1]
    %v97 = vld [vmem:[%s0 + $0x2] sm:$0x1]
    %v98 = vld [vmem:[%s0 + $0x3] sm:$0x1]
    %v99 = vld [vmem:[%s0 + $0x4] sm:$0x1]
    %v100 = vld [vmem:[%s0 + $0x5] sm:$0x1]
    %v101 = vld [vmem:[%s0 + $0x6] sm:$0x1]
    %v102 = vld [vmem:[%s0 + $0x7] sm:$0x1]
    %v103 = vlaneseq
    %v104 = vshrl.u32 %v103, 7
    %vm105 = vcmp.eq.s32.totalorder %v104, 0
    %v106 = vsel %vm105, 1, 0
    %v107 = vcvt.s32.f32 %v106
    %v108 = vsub.s32 %v95, 1
    %v109 = vsub.s32 %v96, 1
    %v110 = vsub.s32 %v97, 1
    %v111 = vsub.s32 %v98, 1
    %v112 = vsub.s32 %v99, 1
    %v113 = vsub.s32 %v100, 1
    %v114 = vsub.s32 %v101, 1
    %v115 = vsub.s32 %v102, 1
    %v116 = vlaneseq
    %v117 = vshrl.u32 %v116, 7
    %v118 = vsub.s32 0, %v117
    %v119 = vrot.slane %v108, %v118
    %v120 = vlaneseq
    %v121 = vshrl.u32 %v120, 7
    %v122 = vsub.s32 0, %v121
    %v123 = vrot.slane %v109, %v122
    %v124 = vlaneseq
    %v125 = vshrl.u32 %v124, 7
    %v126 = vsub.s32 0, %v125
    %v127 = vrot.slane %v110, %v126
    %v128 = vlaneseq
    %v129 = vshrl.u32 %v128, 7
    %v130 = vsub.s32 0, %v129
    %v131 = vrot.slane %v111, %v130
    %v132 = vlaneseq
    %v133 = vshrl.u32 %v132, 7
    %v134 = vsub.s32 0, %v133
    %v135 = vrot.slane %v112, %v134
    %v136 = vlaneseq
    %v137 = vshrl.u32 %v136, 7
    %v138 = vsub.s32 0, %v137
    %v139 = vrot.slane %v113, %v138
    %v140 = vlaneseq
    %v141 = vshrl.u32 %v140, 7
    %v142 = vsub.s32 0, %v141
    %v143 = vrot.slane %v114, %v142
    %v144 = vlaneseq
    %v145 = vshrl.u32 %v144, 7
    %v146 = vsub.s32 0, %v145
    %v147 = vrot.slane %v115, %v146
    %vm148 = vcmp.eq.s32.totalorder %v104, %v119
    %vm149 = vcmp.eq.s32.totalorder %v104, %v123
    %vm150 = vcmp.eq.s32.totalorder %v104, %v127
    %vm151 = vcmp.eq.s32.totalorder %v104, %v131
    %vm152 = vcmp.eq.s32.totalorder %v104, %v135
    %vm153 = vcmp.eq.s32.totalorder %v104, %v139
    %vm154 = vcmp.eq.s32.totalorder %v104, %v143
    %vm155 = vcmp.eq.s32.totalorder %v104, %v147
    %v156 = vsel %vm148, 1, 0
    %v157 = vsel %vm149, 1, 0
    %v158 = vsel %vm150, 1, 0
    %v159 = vsel %vm151, 1, 0
    %v160 = vsel %vm152, 1, 0
    %v161 = vsel %vm153, 1, 0
    %v162 = vsel %vm154, 1, 0
    %v163 = vsel %vm155, 1, 0
    %v164 = vcvt.s32.f32 %v156
    %v165 = vcvt.s32.f32 %v157
    %v166 = vcvt.s32.f32 %v158
    %v167 = vcvt.s32.f32 %v159
    %v168 = vcvt.s32.f32 %v160
    %v169 = vcvt.s32.f32 %v161
    %v170 = vcvt.s32.f32 %v162
    %v171 = vcvt.s32.f32 %v163
    %v172 = vadd.f32 %v107, %v164
    %v173 = vadd.f32 %v107, %v165
    %v174 = vadd.f32 %v107, %v166
    %v175 = vadd.f32 %v107, %v167
    %v176 = vadd.f32 %v107, %v168
    %v177 = vadd.f32 %v107, %v169
    %v178 = vadd.f32 %v107, %v170
    %v179 = vadd.f32 %v107, %v171
    %181 = vset.pattern.permute.xlu0 0
    %182 = vperm.xlu0 %181, %v172
    %v183 = vpop.permute.xlu0 %182
    %186 = vset.pattern.permute.xlu0 0
    %187 = vperm.xlu0 %186, %v173
    %v188 = vpop.permute.xlu0 %187
    %191 = vset.pattern.permute.xlu0 0
    %192 = vperm.xlu0 %191, %v174
    %v193 = vpop.permute.xlu0 %192
    %196 = vset.pattern.permute.xlu0 0
    %197 = vperm.xlu0 %196, %v175
    %v198 = vpop.permute.xlu0 %197
    %201 = vset.pattern.permute.xlu0 0
    %202 = vperm.xlu0 %201, %v176
    %v203 = vpop.permute.xlu0 %202
    %206 = vset.pattern.permute.xlu0 0
    %207 = vperm.xlu0 %206, %v177
    %v208 = vpop.permute.xlu0 %207
    %211 = vset.pattern.permute.xlu0 0
    %212 = vperm.xlu0 %211, %v178
    %v213 = vpop.permute.xlu0 %212
    %216 = vset.pattern.permute.xlu0 0
    %217 = vperm.xlu0 %216, %v179
    %v218 = vpop.permute.xlu0 %217
    %v220 = vmul.f32 %v87, %v183
    %v221 = vmul.f32 %v88, %v188
    %v222 = vmul.f32 %v89, %v193
    %v223 = vmul.f32 %v90, %v198
    %v224 = vmul.f32 %v91, %v203
    %v225 = vmul.f32 %v92, %v208
    %v226 = vmul.f32 %v93, %v213
    %v227 = vmul.f32 %v94, %v218
    %vm228 = vcmask 261120
    %v229 = vsel %vm228, %v220, 0.0
    %v230 = vrot.slane %v229, 4
    %v231 = vadd.f32 %v229, %v230
    %v232 = vrot.slane %v231, 2
    %v233 = vadd.f32 %v231, %v232
    %v234 = vrot.slane %v233, 1
    %v235 = vadd.f32 %v233, %v234
    %v236 = vsel %vm228, %v221, 0.0
    %v237 = vrot.slane %v236, 4
    %v238 = vadd.f32 %v236, %v237
    %v239 = vrot.slane %v238, 2
    %v240 = vadd.f32 %v238, %v239
    %v241 = vrot.slane %v240, 1
    %v242 = vadd.f32 %v240, %v241
    %v243 = vsel %vm228, %v222, 0.0
    %v244 = vrot.slane %v243, 4
    %v245 = vadd.f32 %v243, %v244
    %v246 = vrot.slane %v245, 2
    %v247 = vadd.f32 %v245, %v246
    %v248 = vrot.slane %v247, 1
    %v249 = vadd.f32 %v247, %v248
    %v250 = vsel %vm228, %v223, 0.0
    %v251 = vrot.slane %v250, 4
    %v252 = vadd.f32 %v250, %v251
    %v253 = vrot.slane %v252, 2
    %v254 = vadd.f32 %v252, %v253
    %v255 = vrot.slane %v254, 1
    %v256 = vadd.f32 %v254, %v255
    %v257 = vsel %vm228, %v224, 0.0
    %v258 = vrot.slane %v257, 4
    %v259 = vadd.f32 %v257, %v258
    %v260 = vrot.slane %v259, 2
    %v261 = vadd.f32 %v259, %v260
    %v262 = vrot.slane %v261, 1
    %v263 = vadd.f32 %v261, %v262
    %v264 = vsel %vm228, %v225, 0.0
    %v265 = vrot.slane %v264, 4
    %v266 = vadd.f32 %v264, %v265
    %v267 = vrot.slane %v266, 2
    %v268 = vadd.f32 %v266, %v267
    %v269 = vrot.slane %v268, 1
    %v270 = vadd.f32 %v268, %v269
    %v271 = vsel %vm228, %v226, 0.0
    %v272 = vrot.slane %v271, 4
    %v273 = vadd.f32 %v271, %v272
    %v274 = vrot.slane %v273, 2
    %v275 = vadd.f32 %v273, %v274
    %v276 = vrot.slane %v275, 1
    %v277 = vadd.f32 %v275, %v276
    %v278 = vsel %vm228, %v227, 0.0
    %v279 = vrot.slane %v278, 4
    %v280 = vadd.f32 %v278, %v279
    %v281 = vrot.slane %v280, 2
    %v282 = vadd.f32 %v280, %v281
    %v283 = vrot.slane %v282, 1
    %v284 = vadd.f32 %v282, %v283
    %v285 = vld [vmem:[#allocation2] sm:$0xff]
    %v286 = vld [vmem:[#allocation2 + $0x8] sm:$0xff]
    %v287 = vld [vmem:[#allocation2 + $0x10] sm:$0xff]
    %v288 = vld [vmem:[#allocation2 + $0x18] sm:$0xff]
    %v289 = vld [vmem:[%s3] sm:$0x1]
    %v291 = vlaneseq
    %v292 = vshrl.u32 %v291, 7
    %v293 = vsub.s32 0, %v292
    %v294 = vrot.slane %v289, %v293
    %vm304 = vcmask 1041409
    %v305 = vsel %vm304, %v242, %v235
    %vm306 = vcmask 1042434
    %v307 = vsel %vm306, %v249, %v305
    %vm308 = vcmask 1043459
    %v309 = vsel %vm308, %v256, %v307
    %vm310 = vcmask 1044484
    %v311 = vsel %vm310, %v263, %v309
    %vm312 = vcmask 1045509
    %v313 = vsel %vm312, %v270, %v311
    %vm314 = vcmask 1046534
    %v315 = vsel %vm314, %v277, %v313
    %vm316 = vcmask 1047559
    %v317 = vsel %vm316, %v284, %v315
    %v318 = vsel %vm228, %v317, 0
    %320 = vmatprep.subr.mxu0 0.0
    %321 = vmatpush1.msra.mxu0 %v285
    %322 = vmatprep.subr.mxu0 0.0
    %323 = vmatpush1.msra.mxu0 %v286
    %324 = vmatprep.subr.mxu0 0.0
    %325 = vmatpush1.msra.mxu0 %v287
    %326 = vmatprep.subr.mxu0 0.0
    %327 = vmatpush1.msra.mxu0 %v288
    %328 = vmatprep.subr.mxu0 0.0
    %329 = vmatpush1.msra.mxu0 0.0
    %330 = vmatprep.subr.mxu0 0.0
    %331 = vmatpush1.msra.mxu0 0.0
    %332 = vmatprep.subr.mxu0 0.0
    %333 = vmatpush1.msra.mxu0 0.0
    %334 = vmatprep.subr.mxu0 0.0
    %335 = vmatpush1.msra.mxu0 0.0
    %336 = vmatprep.subr.mxu0 0.0
    %337 = vmatpush1.msra.mxu0 0.0
    %338 = vmatprep.subr.mxu0 0.0
    %339 = vmatpush1.msra.mxu0 0.0
    %340 = vmatprep.subr.mxu0 0.0
    %341 = vmatpush1.msra.mxu0 0.0
    %342 = vmatprep.subr.mxu0 0.0
    %343 = vmatpush1.msra.mxu0 0.0
    %344 = vmatprep.subr.mxu0 0.0
    %345 = vmatpush1.msra.mxu0 0.0
    %346 = vmatprep.subr.mxu0 0.0
    %347 = vmatpush1.msra.mxu0 0.0
    %348 = vmatprep.subr.mxu0 0.0
    %349 = vmatpush1.msra.mxu0 0.0
    %350 = vmatprep.subr.mxu0 0.0
    %351 = vmatpush1.msra.mxu0 0.0
    %352 = vmatprep.subr.mxu0 0.0
    %353 = vmatpush1.msra.mxu0 0.0
    %354 = vmatprep.subr.mxu0 0.0
    %355 = vmatpush1.msra.mxu0 0.0
    %356 = vmatprep.subr.mxu0 0.0
    %357 = vmatpush1.msra.mxu0 0.0
    %358 = vmatprep.subr.mxu0 0.0
    %359 = vmatpush1.msra.mxu0 0.0
    %360 = vmatprep.subr.mxu0 0.0
    %361 = vmatpush1.msra.mxu0 0.0
    %362 = vmatprep.subr.mxu0 0.0
    %363 = vmatpush1.msra.mxu0 0.0
    %364 = vmatprep.subr.mxu0 0.0
    %365 = vmatpush1.msra.mxu0 0.0
    %366 = vmatprep.subr.mxu0 0.0
    %367 = vmatpush1.msra.mxu0 0.0
    %368 = vmatprep.subr.mxu0 0.0
    %369 = vmatpush1.msra.mxu0 0.0
    %370 = vmatprep.subr.mxu0 0.0
    %371 = vmatpush1.msra.mxu0 0.0
    %372 = vmatprep.subr.mxu0 0.0
    %373 = vmatpush1.msra.mxu0 0.0
    %374 = vmatprep.subr.mxu0 0.0
    %375 = vmatpush1.msra.mxu0 0.0
    %376 = vmatprep.subr.mxu0 0.0
    %377 = vmatpush1.msra.mxu0 0.0
    %378 = vmatprep.subr.mxu0 0.0
    %379 = vmatpush1.msra.mxu0 0.0
    %380 = vmatprep.subr.mxu0 0.0
    %381 = vmatpush1.msra.mxu0 0.0
    %382 = vmatprep.subr.mxu0 0.0
    %383 = vmatpush1.msra.mxu0 0.0
    %384 = vmatprep.mubr.f32.mxu0 0.0
    %385 = vmatmul.mubr.f32.gmra.mrb[0].mxu0 %v318
    %v386 = vpop.f32.mrb[0].mxu0
    %v387 = vadd.f32 %v294, %v386
    %v388 = vpop.f32.mrb[0].mxu0
    %389 = vdwg.mxu0
    %v390 = vmul.f32 %v387, 0.17677669
    %v391 = vld [vmem:[#allocation5] sm:$0xff]
    %v392 = vld [vmem:[#allocation5 + $0x8] sm:$0xff]
    %v393 = vld [vmem:[#allocation5 + $0x10] sm:$0xff]
    %v394 = vld [vmem:[#allocation5 + $0x18] sm:$0xff]
    %v395 = vld [vmem:[#allocation7] sm:$0x1]
    %v397 = vlaneseq
    %v398 = vshrl.u32 %v397, 7
    %v399 = vsub.s32 0, %v398
    %v400 = vrot.slane %v395, %v399
    %v403 = vsel %vm228, %v87, 0
    %v406 = vsel %vm228, %v88, 0
    %v409 = vsel %vm228, %v89, 0
    %v412 = vsel %vm228, %v90, 0
    %v415 = vsel %vm228, %v91, 0
    %v418 = vsel %vm228, %v92, 0
    %v421 = vsel %vm228, %v93, 0
    %v424 = vsel %vm228, %v94, 0
    %426 = vmatprep.subr.mxu0 0.0
    %427 = vmatpush1.msra.mxu0 %v391
    %428 = vmatprep.subr.mxu0 0.0
    %429 = vmatpush1.msra.mxu0 %v392
    %430 = vmatprep.subr.mxu0 0.0
    %431 = vmatpush1.msra.mxu0 %v393
    %432 = vmatprep.subr.mxu0 0.0
    %433 = vmatpush1.msra.mxu0 %v394
    %434 = vmatprep.subr.mxu0 0.0
    %435 = vmatpush1.msra.mxu0 0.0
    %436 = vmatprep.subr.mxu0 0.0
    %437 = vmatpush1.msra.mxu0 0.0
    %438 = vmatprep.subr.mxu0 0.0
    %439 = vmatpush1.msra.mxu0 0.0
    %440 = vmatprep.subr.mxu0 0.0
    %441 = vmatpush1.msra.mxu0 0.0
    %442 = vmatprep.subr.mxu0 0.0
    %443 = vmatpush1.msra.mxu0 0.0
    %444 = vmatprep.subr.mxu0 0.0
    %445 = vmatpush1.msra.mxu0 0.0
    %446 = vmatprep.subr.mxu0 0.0
    %447 = vmatpush1.msra.mxu0 0.0
    %448 = vmatprep.subr.mxu0 0.0
    %449 = vmatpush1.msra.mxu0 0.0
    %450 = vmatprep.subr.mxu0 0.0
    %451 = vmatpush1.msra.mxu0 0.0
    %452 = vmatprep.subr.mxu0 0.0
    %453 = vmatpush1.msra.mxu0 0.0
    %454 = vmatprep.subr.mxu0 0.0
    %455 = vmatpush1.msra.mxu0 0.0
    %456 = vmatprep.subr.mxu0 0.0
    %457 = vmatpush1.msra.mxu0 0.0
    %458 = vmatprep.subr.mxu0 0.0
    %459 = vmatpush1.msra.mxu0 0.0
    %460 = vmatprep.subr.mxu0 0.0
    %461 = vmatpush1.msra.mxu0 0.0
    %462 = vmatprep.subr.mxu0 0.0
    %463 = vmatpush1.msra.mxu0 0.0
    %464 = vmatprep.subr.mxu0 0.0
    %465 = vmatpush1.msra.mxu0 0.0
    %466 = vmatprep.subr.mxu0 0.0
    %467 = vmatpush1.msra.mxu0 0.0
    %468 = vmatprep.subr.mxu0 0.0
    %469 = vmatpush1.msra.mxu0 0.0
    %470 = vmatprep.subr.mxu0 0.0
    %471 = vmatpush1.msra.mxu0 0.0
    %472 = vmatprep.subr.mxu0 0.0
    %473 = vmatpush1.msra.mxu0 0.0
    %474 = vmatprep.subr.mxu0 0.0
    %475 = vmatpush1.msra.mxu0 0.0
    %476 = vmatprep.subr.mxu0 0.0
    %477 = vmatpush1.msra.mxu0 0.0
    %478 = vmatprep.subr.mxu0 0.0
    %479 = vmatpush1.msra.mxu0 0.0
    %480 = vmatprep.subr.mxu0 0.0
    %481 = vmatpush1.msra.mxu0 0.0
    %482 = vmatprep.subr.mxu0 0.0
    %483 = vmatpush1.msra.mxu0 0.0
    %484 = vmatprep.subr.mxu0 0.0
    %485 = vmatpush1.msra.mxu0 0.0
    %486 = vmatprep.subr.mxu0 0.0
    %487 = vmatpush1.msra.mxu0 0.0
    %488 = vmatprep.subr.mxu0 0.0
    %489 = vmatpush1.msra.mxu0 0.0
    %490 = vmatprep.mubr.f32.mxu0 0.0
    %491 = vmatmul.mubr.f32.gmra.mrb[0].mxu0 %v403
    %v492 = vpop.f32.mrb[0].mxu0
    %v493 = vadd.f32 %v400, %v492
    %v494 = vpop.f32.mrb[0].mxu0
    %495 = vmatprep.mubr.f32.mxu0 0.0
    %496 = vmatmul.mubr.f32.gmra.mrb[0].mxu0 %v406
    %v497 = vpop.f32.mrb[0].mxu0
    %v498 = vadd.f32 %v400, %v497
    %v499 = vpop.f32.mrb[0].mxu0
    %500 = vmatprep.mubr.f32.mxu0 0.0
    %501 = vmatmul.mubr.f32.gmra.mrb[0].mxu0 %v409
    %v502 = vpop.f32.mrb[0].mxu0
    %v503 = vadd.f32 %v400, %v502
    %v504 = vpop.f32.mrb[0].mxu0
    %505 = vmatprep.mubr.f32.mxu0 0.0
    %506 = vmatmul.mubr.f32.gmra.mrb[0].mxu0 %v412
    %v507 = vpop.f32.mrb[0].mxu0
    %v508 = vadd.f32 %v400, %v507
    %v509 = vpop.f32.mrb[0].mxu0
    %510 = vmatprep.mubr.f32.mxu0 0.0
    %511 = vmatmul.mubr.f32.gmra.mrb[0].mxu0 %v415
    %v512 = vpop.f32.mrb[0].mxu0
    %v513 = vadd.f32 %v400, %v512
    %v514 = vpop.f32.mrb[0].mxu0
    %515 = vmatprep.mubr.f32.mxu0 0.0
    %516 = vmatmul.mubr.f32.gmra.mrb[0].mxu0 %v418
    %v517 = vpop.f32.mrb[0].mxu0
    %v518 = vadd.f32 %v400, %v517
    %v519 = vpop.f32.mrb[0].mxu0
    %520 = vmatprep.mubr.f32.mxu0 0.0
    %521 = vmatmul.mubr.f32.gmra.mrb[0].mxu0 %v421
    %v522 = vpop.f32.mrb[0].mxu0
    %v523 = vadd.f32 %v400, %v522
    %v524 = vpop.f32.mrb[0].mxu0
    %525 = vmatprep.mubr.f32.mxu0 0.0
    %526 = vmatmul.mubr.f32.gmra.mrb[0].mxu0 %v424
    %v527 = vpop.f32.mrb[0].mxu0
    %v528 = vadd.f32 %v400, %v527
    %v529 = vpop.f32.mrb[0].mxu0
    %530 = vdwg.mxu0
    %v531 = vlaneseq
    %v532 = vand.u32 %v531, 127
    %v533 = vmul.u32 %v104, 32
    %vm534 = vcmp.ge.s32.totalorder %v532, %v533
    %v535 = vadd.s32 %v104, 1
    %v536 = vmul.u32 %v535, 32
    %vm537 = vcmp.lt.s32.totalorder %v532, %v536
    %vm538 = vmand %vm534, %vm537
    %v539 = vsel %vm538, 1, 0
    %v540 = vcvt.s32.f32 %v539
    %v542 = vcombine.high %v390, %v390
    %v544 = vunpack.c.l.s4 1966171168
    %v545 = vunpack.c.0.s8 %v544
    %v546 = vlaneseq
    %v547 = vshrl.u32 %v546, 7
    %v548 = vsub.s32 %v545, %v547
    %v549 = vrot.slane %v390, %v548
    %v551 = vunpack.c.l.s4 1966171168
    %v552 = vunpack.c.0.s8 %v551
    %v553 = vlaneseq
    %v554 = vshrl.u32 %v553, 7
    %v555 = vsub.s32 %v552, %v554
    %v556 = vrot.slane %v542, %v555
    %v557 = vcombine.high %v549, %v549
    %v558 = vcombine.high %v556, %v556
    %v560 = vunpack.c.l.s4 1966171168
    %v561 = vunpack.c.0.s8 %v560
    %v562 = vlaneseq
    %v563 = vshrl.u32 %v562, 7
    %v564 = vsub.s32 %v561, %v563
    %v565 = vrot.slane %v549, %v564
    %v567 = vunpack.c.l.s4 1966171168
    %v568 = vunpack.c.0.s8 %v567
    %v569 = vlaneseq
    %v570 = vshrl.u32 %v569, 7
    %v571 = vsub.s32 %v568, %v570
    %v572 = vrot.slane %v556, %v571
    %v574 = vunpack.c.l.s4 1966171168
    %v575 = vunpack.c.0.s8 %v574
    %v576 = vlaneseq
    %v577 = vshrl.u32 %v576, 7
    %v578 = vsub.s32 %v575, %v577
    %v579 = vrot.slane %v557, %v578
    %v581 = vunpack.c.l.s4 1966171168
    %v582 = vunpack.c.0.s8 %v581
    %v583 = vlaneseq
    %v584 = vshrl.u32 %v583, 7
    %v585 = vsub.s32 %v582, %v584
    %v586 = vrot.slane %v558, %v585
    %v587 = vcombine.high %v565, %v565
    %v588 = vcombine.high %v572, %v572
    %v589 = vcombine.high %v579, %v579
    %v590 = vcombine.high %v586, %v586
    %v591 = vlaneseq
    %v592 = vshrl.u32 %v591, 7
    %v593 = vsub.s32 0, %v592
    %v594 = vrot.slane %v565, %v593
    %v595 = vlaneseq
    %v596 = vshrl.u32 %v595, 7
    %v597 = vsub.s32 0, %v596
    %v598 = vrot.slane %v579, %v597
    %v599 = vlaneseq
    %v600 = vshrl.u32 %v599, 7
    %v601 = vsub.s32 0, %v600
    %v602 = vrot.slane %v587, %v601
    %v603 = vlaneseq
    %v604 = vshrl.u32 %v603, 7
    %v605 = vsub.s32 0, %v604
    %v606 = vrot.slane %v589, %v605
    %v607 = vlaneseq
    %v608 = vshrl.u32 %v607, 7
    %v609 = vsub.s32 0, %v608
    %v610 = vrot.slane %v572, %v609
    %v611 = vlaneseq
    %v612 = vshrl.u32 %v611, 7
    %v613 = vsub.s32 0, %v612
    %v614 = vrot.slane %v586, %v613
    %v615 = vlaneseq
    %v616 = vshrl.u32 %v615, 7
    %v617 = vsub.s32 0, %v616
    %v618 = vrot.slane %v588, %v617
    %v619 = vlaneseq
    %v620 = vshrl.u32 %v619, 7
    %v621 = vsub.s32 0, %v620
    %v622 = vrot.slane %v590, %v621
    %v631 = vmul.f32 %v594, %v540
    %v632 = vmul.f32 %v598, %v540
    %v633 = vmul.f32 %v602, %v540
    %v634 = vmul.f32 %v606, %v540
    %v635 = vmul.f32 %v610, %v540
    %v636 = vmul.f32 %v614, %v540
    %v637 = vmul.f32 %v618, %v540
    %v638 = vmul.f32 %v622, %v540
    %vm639 = vcmask 523264
    %v641 = vsel %vm639, %v631, 0
    %v644 = vsel %vm639, %v493, 0
    %646 = vmatprep.subr.mxu0 0.0
    %647 = vmatpush1.xpose.msra.mxu0 %v644
    %648 = vmatprep.subr.mxu0 0.0
    %649 = vmatpush1.xpose.msra.mxu0 0.0
    %650 = vmatprep.subr.mxu0 0.0
    %651 = vmatpush1.xpose.msra.mxu0 0.0
    %652 = vmatprep.subr.mxu0 0.0
    %653 = vmatpush1.xpose.msra.mxu0 0.0
    %654 = vmatprep.subr.mxu0 0.0
    %655 = vmatpush1.xpose.msra.mxu0 0.0
    %656 = vmatprep.subr.mxu0 0.0
    %657 = vmatpush1.xpose.msra.mxu0 0.0
    %658 = vmatprep.subr.mxu0 0.0
    %659 = vmatpush1.xpose.msra.mxu0 0.0
    %660 = vmatprep.subr.mxu0 0.0
    %661 = vmatpush1.xpose.msra.mxu0 0.0
    %662 = vmatprep.subr.mxu0 0.0
    %663 = vmatpush1.xpose.msra.mxu0 0.0
    %664 = vmatprep.subr.mxu0 0.0
    %665 = vmatpush1.xpose.msra.mxu0 0.0
    %666 = vmatprep.subr.mxu0 0.0
    %667 = vmatpush1.xpose.msra.mxu0 0.0
    %668 = vmatprep.subr.mxu0 0.0
    %669 = vmatpush1.xpose.msra.mxu0 0.0
    %670 = vmatprep.subr.mxu0 0.0
    %671 = vmatpush1.xpose.msra.mxu0 0.0
    %672 = vmatprep.subr.mxu0 0.0
    %673 = vmatpush1.xpose.msra.mxu0 0.0
    %674 = vmatprep.subr.mxu0 0.0
    %675 = vmatpush1.xpose.msra.mxu0 0.0
    %676 = vmatprep.subr.mxu0 0.0
    %677 = vmatpush1.xpose.msra.mxu0 0.0
    %678 = vmatprep.subr.mxu0 0.0
    %679 = vmatpush1.xpose.msra.mxu0 0.0
    %680 = vmatprep.subr.mxu0 0.0
    %681 = vmatpush1.xpose.msra.mxu0 0.0
    %682 = vmatprep.subr.mxu0 0.0
    %683 = vmatpush1.xpose.msra.mxu0 0.0
    %684 = vmatprep.subr.mxu0 0.0
    %685 = vmatpush1.xpose.msra.mxu0 0.0
    %686 = vmatprep.subr.mxu0 0.0
    %687 = vmatpush1.xpose.msra.mxu0 0.0
    %688 = vmatprep.subr.mxu0 0.0
    %689 = vmatpush1.xpose.msra.mxu0 0.0
    %690 = vmatprep.subr.mxu0 0.0
    %691 = vmatpush1.xpose.msra.mxu0 0.0
    %692 = vmatprep.subr.mxu0 0.0
    %693 = vmatpush1.xpose.msra.mxu0 0.0
    %694 = vmatprep.subr.mxu0 0.0
    %695 = vmatpush1.xpose.msra.mxu0 0.0
    %696 = vmatprep.subr.mxu0 0.0
    %697 = vmatpush1.xpose.msra.mxu0 0.0
    %698 = vmatprep.subr.mxu0 0.0
    %699 = vmatpush1.xpose.msra.mxu0 0.0
    %700 = vmatprep.subr.mxu0 0.0
    %701 = vmatpush1.xpose.msra.mxu0 0.0
    %702 = vmatprep.subr.mxu0 0.0
    %703 = vmatpush1.xpose.msra.mxu0 0.0
    %704 = vmatprep.subr.mxu0 0.0
    %705 = vmatpush1.xpose.msra.mxu0 0.0
    %706 = vmatprep.subr.mxu0 0.0
    %707 = vmatpush1.xpose.msra.mxu0 0.0
    %708 = vmatprep.subr.mxu0 0.0
    %709 = vmatpush1.xpose.msra.mxu0 0.0
    %710 = vmatprep.mubr.f32.mxu0 0.0
    %711 = vmatmul.mubr.f32.gmra.mrb[0].mxu0 %v641
    %v712 = vpop.f32.mrb[0].mxu0
    %v713 = vadd.f32 0.0, %v712
    %v714 = vpop.f32.mrb[0].mxu0
    %715 = vdwg.mxu0
    %v717 = vsel %vm639, %v632, 0
    %v720 = vsel %vm639, %v498, 0
    %722 = vmatprep.subr.mxu0 0.0
    %723 = vmatpush1.xpose.msra.mxu0 %v720
    %724 = vmatprep.subr.mxu0 0.0
    %725 = vmatpush1.xpose.msra.mxu0 0.0
    %726 = vmatprep.subr.mxu0 0.0
    %727 = vmatpush1.xpose.msra.mxu0 0.0
    %728 = vmatprep.subr.mxu0 0.0
    %729 = vmatpush1.xpose.msra.mxu0 0.0
    %730 = vmatprep.subr.mxu0 0.0
    %731 = vmatpush1.xpose.msra.mxu0 0.0
    %732 = vmatprep.subr.mxu0 0.0
    %733 = vmatpush1.xpose.msra.mxu0 0.0
    %734 = vmatprep.subr.mxu0 0.0
    %735 = vmatpush1.xpose.msra.mxu0 0.0
    %736 = vmatprep.subr.mxu0 0.0
    %737 = vmatpush1.xpose.msra.mxu0 0.0
    %738 = vmatprep.subr.mxu0 0.0
    %739 = vmatpush1.xpose.msra.mxu0 0.0
    %740 = vmatprep.subr.mxu0 0.0
    %741 = vmatpush1.xpose.msra.mxu0 0.0
    %742 = vmatprep.subr.mxu0 0.0
    %743 = vmatpush1.xpose.msra.mxu0 0.0
    %744 = vmatprep.subr.mxu0 0.0
    %745 = vmatpush1.xpose.msra.mxu0 0.0
    %746 = vmatprep.subr.mxu0 0.0
    %747 = vmatpush1.xpose.msra.mxu0 0.0
    %748 = vmatprep.subr.mxu0 0.0
    %749 = vmatpush1.xpose.msra.mxu0 0.0
    %750 = vmatprep.subr.mxu0 0.0
    %751 = vmatpush1.xpose.msra.mxu0 0.0
    %752 = vmatprep.subr.mxu0 0.0
    %753 = vmatpush1.xpose.msra.mxu0 0.0
    %754 = vmatprep.subr.mxu0 0.0
    %755 = vmatpush1.xpose.msra.mxu0 0.0
    %756 = vmatprep.subr.mxu0 0.0
    %757 = vmatpush1.xpose.msra.mxu0 0.0
    %758 = vmatprep.subr.mxu0 0.0
    %759 = vmatpush1.xpose.msra.mxu0 0.0
    %760 = vmatprep.subr.mxu0 0.0
    %761 = vmatpush1.xpose.msra.mxu0 0.0
    %762 = vmatprep.subr.mxu0 0.0
    %763 = vmatpush1.xpose.msra.mxu0 0.0
    %764 = vmatprep.subr.mxu0 0.0
    %765 = vmatpush1.xpose.msra.mxu0 0.0
    %766 = vmatprep.subr.mxu0 0.0
    %767 = vmatpush1.xpose.msra.mxu0 0.0
    %768 = vmatprep.subr.mxu0 0.0
    %769 = vmatpush1.xpose.msra.mxu0 0.0
    %770 = vmatprep.subr.mxu0 0.0
    %771 = vmatpush1.xpose.msra.mxu0 0.0
    %772 = vmatprep.subr.mxu0 0.0
    %773 = vmatpush1.xpose.msra.mxu0 0.0
    %774 = vmatprep.subr.mxu0 0.0
    %775 = vmatpush1.xpose.msra.mxu0 0.0
    %776 = vmatprep.subr.mxu0 0.0
    %777 = vmatpush1.xpose.msra.mxu0 0.0
    %778 = vmatprep.subr.mxu0 0.0
    %779 = vmatpush1.xpose.msra.mxu0 0.0
    %780 = vmatprep.subr.mxu0 0.0
    %781 = vmatpush1.xpose.msra.mxu0 0.0
    %782 = vmatprep.subr.mxu0 0.0
    %783 = vmatpush1.xpose.msra.mxu0 0.0
    %784 = vmatprep.subr.mxu0 0.0
    %785 = vmatpush1.xpose.msra.mxu0 0.0
    %786 = vmatprep.mubr.f32.mxu0 0.0
    %787 = vmatmul.mubr.f32.gmra.mrb[0].mxu0 %v717
    %v788 = vpop.f32.mrb[0].mxu0
    %v789 = vadd.f32 0.0, %v788
    %v790 = vpop.f32.mrb[0].mxu0
    %791 = vdwg.mxu0
    %v793 = vsel %vm639, %v633, 0
    %v796 = vsel %vm639, %v503, 0
    %798 = vmatprep.subr.mxu0 0.0
    %799 = vmatpush1.xpose.msra.mxu0 %v796
    %800 = vmatprep.subr.mxu0 0.0
    %801 = vmatpush1.xpose.msra.mxu0 0.0
    %802 = vmatprep.subr.mxu0 0.0
    %803 = vmatpush1.xpose.msra.mxu0 0.0
    %804 = vmatprep.subr.mxu0 0.0
    %805 = vmatpush1.xpose.msra.mxu0 0.0
    %806 = vmatprep.subr.mxu0 0.0
    %807 = vmatpush1.xpose.msra.mxu0 0.0
    %808 = vmatprep.subr.mxu0 0.0
    %809 = vmatpush1.xpose.msra.mxu0 0.0
    %810 = vmatprep.subr.mxu0 0.0
    %811 = vmatpush1.xpose.msra.mxu0 0.0
    %812 = vmatprep.subr.mxu0 0.0
    %813 = vmatpush1.xpose.msra.mxu0 0.0
    %814 = vmatprep.subr.mxu0 0.0
    %815 = vmatpush1.xpose.msra.mxu0 0.0
    %816 = vmatprep.subr.mxu0 0.0
    %817 = vmatpush1.xpose.msra.mxu0 0.0
    %818 = vmatprep.subr.mxu0 0.0
    %819 = vmatpush1.xpose.msra.mxu0 0.0
    %820 = vmatprep.subr.mxu0 0.0
    %821 = vmatpush1.xpose.msra.mxu0 0.0
    %822 = vmatprep.subr.mxu0 0.0
    %823 = vmatpush1.xpose.msra.mxu0 0.0
    %824 = vmatprep.subr.mxu0 0.0
    %825 = vmatpush1.xpose.msra.mxu0 0.0
    %826 = vmatprep.subr.mxu0 0.0
    %827 = vmatpush1.xpose.msra.mxu0 0.0
    %828 = vmatprep.subr.mxu0 0.0
    %829 = vmatpush1.xpose.msra.mxu0 0.0
    %830 = vmatprep.subr.mxu0 0.0
    %831 = vmatpush1.xpose.msra.mxu0 0.0
    %832 = vmatprep.subr.mxu0 0.0
    %833 = vmatpush1.xpose.msra.mxu0 0.0
    %834 = vmatprep.subr.mxu0 0.0
    %835 = vmatpush1.xpose.msra.mxu0 0.0
    %836 = vmatprep.subr.mxu0 0.0
    %837 = vmatpush1.xpose.msra.mxu0 0.0
    %838 = vmatprep.subr.mxu0 0.0
    %839 = vmatpush1.xpose.msra.mxu0 0.0
    %840 = vmatprep.subr.mxu0 0.0
    %841 = vmatpush1.xpose.msra.mxu0 0.0
    %842 = vmatprep.subr.mxu0 0.0
    %843 = vmatpush1.xpose.msra.mxu0 0.0
    %844 = vmatprep.subr.mxu0 0.0
    %845 = vmatpush1.xpose.msra.mxu0 0.0
    %846 = vmatprep.subr.mxu0 0.0
    %847 = vmatpush1.xpose.msra.mxu0 0.0
    %848 = vmatprep.subr.mxu0 0.0
    %849 = vmatpush1.xpose.msra.mxu0 0.0
    %850 = vmatprep.subr.mxu0 0.0
    %851 = vmatpush1.xpose.msra.mxu0 0.0
    %852 = vmatprep.subr.mxu0 0.0
    %853 = vmatpush1.xpose.msra.mxu0 0.0
    %854 = vmatprep.subr.mxu0 0.0
    %855 = vmatpush1.xpose.msra.mxu0 0.0
    %856 = vmatprep.subr.mxu0 0.0
    %857 = vmatpush1.xpose.msra.mxu0 0.0
    %858 = vmatprep.subr.mxu0 0.0
    %859 = vmatpush1.xpose.msra.mxu0 0.0
    %860 = vmatprep.subr.mxu0 0.0
    %861 = vmatpush1.xpose.msra.mxu0 0.0
    %862 = vmatprep.mubr.f32.mxu0 0.0
    %863 = vmatmul.mubr.f32.gmra.mrb[0].mxu0 %v793
    %v864 = vpop.f32.mrb[0].mxu0
    %v865 = vadd.f32 0.0, %v864
    %v866 = vpop.f32.mrb[0].mxu0
    %867 = vdwg.mxu0
    %v869 = vsel %vm639, %v634, 0
    %v872 = vsel %vm639, %v508, 0
    %874 = vmatprep.subr.mxu0 0.0
    %875 = vmatpush1.xpose.msra.mxu0 %v872
    %876 = vmatprep.subr.mxu0 0.0
    %877 = vmatpush1.xpose.msra.mxu0 0.0
    %878 = vmatprep.subr.mxu0 0.0
    %879 = vmatpush1.xpose.msra.mxu0 0.0
    %880 = vmatprep.subr.mxu0 0.0
    %881 = vmatpush1.xpose.msra.mxu0 0.0
    %882 = vmatprep.subr.mxu0 0.0
    %883 = vmatpush1.xpose.msra.mxu0 0.0
    %884 = vmatprep.subr.mxu0 0.0
    %885 = vmatpush1.xpose.msra.mxu0 0.0
    %886 = vmatprep.subr.mxu0 0.0
    %887 = vmatpush1.xpose.msra.mxu0 0.0
    %888 = vmatprep.subr.mxu0 0.0
    %889 = vmatpush1.xpose.msra.mxu0 0.0
    %890 = vmatprep.subr.mxu0 0.0
    %891 = vmatpush1.xpose.msra.mxu0 0.0
    %892 = vmatprep.subr.mxu0 0.0
    %893 = vmatpush1.xpose.msra.mxu0 0.0
    %894 = vmatprep.subr.mxu0 0.0
    %895 = vmatpush1.xpose.msra.mxu0 0.0
    %896 = vmatprep.subr.mxu0 0.0
    %897 = vmatpush1.xpose.msra.mxu0 0.0
    %898 = vmatprep.subr.mxu0 0.0
    %899 = vmatpush1.xpose.msra.mxu0 0.0
    %900 = vmatprep.subr.mxu0 0.0
    %901 = vmatpush1.xpose.msra.mxu0 0.0
    %902 = vmatprep.subr.mxu0 0.0
    %903 = vmatpush1.xpose.msra.mxu0 0.0
    %904 = vmatprep.subr.mxu0 0.0
    %905 = vmatpush1.xpose.msra.mxu0 0.0
    %906 = vmatprep.subr.mxu0 0.0
    %907 = vmatpush1.xpose.msra.mxu0 0.0
    %908 = vmatprep.subr.mxu0 0.0
    %909 = vmatpush1.xpose.msra.mxu0 0.0
    %910 = vmatprep.subr.mxu0 0.0
    %911 = vmatpush1.xpose.msra.mxu0 0.0
    %912 = vmatprep.subr.mxu0 0.0
    %913 = vmatpush1.xpose.msra.mxu0 0.0
    %914 = vmatprep.subr.mxu0 0.0
    %915 = vmatpush1.xpose.msra.mxu0 0.0
    %916 = vmatprep.subr.mxu0 0.0
    %917 = vmatpush1.xpose.msra.mxu0 0.0
    %918 = vmatprep.subr.mxu0 0.0
    %919 = vmatpush1.xpose.msra.mxu0 0.0
    %920 = vmatprep.subr.mxu0 0.0
    %921 = vmatpush1.xpose.msra.mxu0 0.0
    %922 = vmatprep.subr.mxu0 0.0
    %923 = vmatpush1.xpose.msra.mxu0 0.0
    %924 = vmatprep.subr.mxu0 0.0
    %925 = vmatpush1.xpose.msra.mxu0 0.0
    %926 = vmatprep.subr.mxu0 0.0
    %927 = vmatpush1.xpose.msra.mxu0 0.0
    %928 = vmatprep.subr.mxu0 0.0
    %929 = vmatpush1.xpose.msra.mxu0 0.0
    %930 = vmatprep.subr.mxu0 0.0
    %931 = vmatpush1.xpose.msra.mxu0 0.0
    %932 = vmatprep.subr.mxu0 0.0
    %933 = vmatpush1.xpose.msra.mxu0 0.0
    %934 = vmatprep.subr.mxu0 0.0
    %935 = vmatpush1.xpose.msra.mxu0 0.0
    %936 = vmatprep.subr.mxu0 0.0
    %937 = vmatpush1.xpose.msra.mxu0 0.0
    %938 = vmatprep.mubr.f32.mxu0 0.0
    %939 = vmatmul.mubr.f32.gmra.mrb[0].mxu0 %v869
    %v940 = vpop.f32.mrb[0].mxu0
    %v941 = vadd.f32 0.0, %v940
    %v942 = vpop.f32.mrb[0].mxu0
    %943 = vdwg.mxu0
    %v945 = vsel %vm639, %v635, 0
    %v948 = vsel %vm639, %v513, 0
    %950 = vmatprep.subr.mxu0 0.0
    %951 = vmatpush1.xpose.msra.mxu0 %v948
    %952 = vmatprep.subr.mxu0 0.0
    %953 = vmatpush1.xpose.msra.mxu0 0.0
    %954 = vmatprep.subr.mxu0 0.0
    %955 = vmatpush1.xpose.msra.mxu0 0.0
    %956 = vmatprep.subr.mxu0 0.0
    %957 = vmatpush1.xpose.msra.mxu0 0.0
    %958 = vmatprep.subr.mxu0 0.0
    %959 = vmatpush1.xpose.msra.mxu0 0.0
    %960 = vmatprep.subr.mxu0 0.0
    %961 = vmatpush1.xpose.msra.mxu0 0.0
    %962 = vmatprep.subr.mxu0 0.0
    %963 = vmatpush1.xpose.msra.mxu0 0.0
    %964 = vmatprep.subr.mxu0 0.0
    %965 = vmatpush1.xpose.msra.mxu0 0.0
    %966 = vmatprep.subr.mxu0 0.0
    %967 = vmatpush1.xpose.msra.mxu0 0.0
    %968 = vmatprep.subr.mxu0 0.0
    %969 = vmatpush1.xpose.msra.mxu0 0.0
    %970 = vmatprep.subr.mxu0 0.0
    %971 = vmatpush1.xpose.msra.mxu0 0.0
    %972 = vmatprep.subr.mxu0 0.0
    %973 = vmatpush1.xpose.msra.mxu0 0.0
    %974 = vmatprep.subr.mxu0 0.0
    %975 = vmatpush1.xpose.msra.mxu0 0.0
    %976 = vmatprep.subr.mxu0 0.0
    %977 = vmatpush1.xpose.msra.mxu0 0.0
    %978 = vmatprep.subr.mxu0 0.0
    %979 = vmatpush1.xpose.msra.mxu0 0.0
    %980 = vmatprep.subr.mxu0 0.0
    %981 = vmatpush1.xpose.msra.mxu0 0.0
    %982 = vmatprep.subr.mxu0 0.0
    %983 = vmatpush1.xpose.msra.mxu0 0.0
    %984 = vmatprep.subr.mxu0 0.0
    %985 = vmatpush1.xpose.msra.mxu0 0.0
    %986 = vmatprep.subr.mxu0 0.0
    %987 = vmatpush1.xpose.msra.mxu0 0.0
    %988 = vmatprep.subr.mxu0 0.0
    %989 = vmatpush1.xpose.msra.mxu0 0.0
    %990 = vmatprep.subr.mxu0 0.0
    %991 = vmatpush1.xpose.msra.mxu0 0.0
    %992 = vmatprep.subr.mxu0 0.0
    %993 = vmatpush1.xpose.msra.mxu0 0.0
    %994 = vmatprep.subr.mxu0 0.0
    %995 = vmatpush1.xpose.msra.mxu0 0.0
    %996 = vmatprep.subr.mxu0 0.0
    %997 = vmatpush1.xpose.msra.mxu0 0.0
    %998 = vmatprep.subr.mxu0 0.0
    %999 = vmatpush1.xpose.msra.mxu0 0.0
    %1000 = vmatprep.subr.mxu0 0.0
    %1001 = vmatpush1.xpose.msra.mxu0 0.0
    %1002 = vmatprep.subr.mxu0 0.0
    %1003 = vmatpush1.xpose.msra.mxu0 0.0
    %1004 = vmatprep.subr.mxu0 0.0
    %1005 = vmatpush1.xpose.msra.mxu0 0.0
    %1006 = vmatprep.subr.mxu0 0.0
    %1007 = vmatpush1.xpose.msra.mxu0 0.0
    %1008 = vmatprep.subr.mxu0 0.0
    %1009 = vmatpush1.xpose.msra.mxu0 0.0
    %1010 = vmatprep.subr.mxu0 0.0
    %1011 = vmatpush1.xpose.msra.mxu0 0.0
    %1012 = vmatprep.subr.mxu0 0.0
    %1013 = vmatpush1.xpose.msra.mxu0 0.0
    %1014 = vmatprep.mubr.f32.mxu0 0.0
    %1015 = vmatmul.mubr.f32.gmra.mrb[0].mxu0 %v945
    %v1016 = vpop.f32.mrb[0].mxu0
    %v1017 = vadd.f32 0.0, %v1016
    %v1018 = vpop.f32.mrb[0].mxu0
    %1019 = vdwg.mxu0
    %v1021 = vsel %vm639, %v636, 0
    %v1024 = vsel %vm639, %v518, 0
    %1026 = vmatprep.subr.mxu0 0.0
    %1027 = vmatpush1.xpose.msra.mxu0 %v1024
    %1028 = vmatprep.subr.mxu0 0.0
    %1029 = vmatpush1.xpose.msra.mxu0 0.0
    %1030 = vmatprep.subr.mxu0 0.0
    %1031 = vmatpush1.xpose.msra.mxu0 0.0
    %1032 = vmatprep.subr.mxu0 0.0
    %1033 = vmatpush1.xpose.msra.mxu0 0.0
    %1034 = vmatprep.subr.mxu0 0.0
    %1035 = vmatpush1.xpose.msra.mxu0 0.0
    %1036 = vmatprep.subr.mxu0 0.0
    %1037 = vmatpush1.xpose.msra.mxu0 0.0
    %1038 = vmatprep.subr.mxu0 0.0
    %1039 = vmatpush1.xpose.msra.mxu0 0.0
    %1040 = vmatprep.subr.mxu0 0.0
    %1041 = vmatpush1.xpose.msra.mxu0 0.0
    %1042 = vmatprep.subr.mxu0 0.0
    %1043 = vmatpush1.xpose.msra.mxu0 0.0
    %1044 = vmatprep.subr.mxu0 0.0
    %1045 = vmatpush1.xpose.msra.mxu0 0.0
    %1046 = vmatprep.subr.mxu0 0.0
    %1047 = vmatpush1.xpose.msra.mxu0 0.0
    %1048 = vmatprep.subr.mxu0 0.0
    %1049 = vmatpush1.xpose.msra.mxu0 0.0
    %1050 = vmatprep.subr.mxu0 0.0
    %1051 = vmatpush1.xpose.msra.mxu0 0.0
    %1052 = vmatprep.subr.mxu0 0.0
    %1053 = vmatpush1.xpose.msra.mxu0 0.0
    %1054 = vmatprep.subr.mxu0 0.0
    %1055 = vmatpush1.xpose.msra.mxu0 0.0
    %1056 = vmatprep.subr.mxu0 0.0
    %1057 = vmatpush1.xpose.msra.mxu0 0.0
    %1058 = vmatprep.subr.mxu0 0.0
    %1059 = vmatpush1.xpose.msra.mxu0 0.0
    %1060 = vmatprep.subr.mxu0 0.0
    %1061 = vmatpush1.xpose.msra.mxu0 0.0
    %1062 = vmatprep.subr.mxu0 0.0
    %1063 = vmatpush1.xpose.msra.mxu0 0.0
    %1064 = vmatprep.subr.mxu0 0.0
    %1065 = vmatpush1.xpose.msra.mxu0 0.0
    %1066 = vmatprep.subr.mxu0 0.0
    %1067 = vmatpush1.xpose.msra.mxu0 0.0
    %1068 = vmatprep.subr.mxu0 0.0
    %1069 = vmatpush1.xpose.msra.mxu0 0.0
    %1070 = vmatprep.subr.mxu0 0.0
    %1071 = vmatpush1.xpose.msra.mxu0 0.0
    %1072 = vmatprep.subr.mxu0 0.0
    %1073 = vmatpush1.xpose.msra.mxu0 0.0
    %1074 = vmatprep.subr.mxu0 0.0
    %1075 = vmatpush1.xpose.msra.mxu0 0.0
    %1076 = vmatprep.subr.mxu0 0.0
    %1077 = vmatpush1.xpose.msra.mxu0 0.0
    %1078 = vmatprep.subr.mxu0 0.0
    %1079 = vmatpush1.xpose.msra.mxu0 0.0
    %1080 = vmatprep.subr.mxu0 0.0
    %1081 = vmatpush1.xpose.msra.mxu0 0.0
    %1082 = vmatprep.subr.mxu0 0.0
    %1083 = vmatpush1.xpose.msra.mxu0 0.0
    %1084 = vmatprep.subr.mxu0 0.0
    %1085 = vmatpush1.xpose.msra.mxu0 0.0
    %1086 = vmatprep.subr.mxu0 0.0
    %1087 = vmatpush1.xpose.msra.mxu0 0.0
    %1088 = vmatprep.subr.mxu0 0.0
    %1089 = vmatpush1.xpose.msra.mxu0 0.0
    %1090 = vmatprep.mubr.f32.mxu0 0.0
    %1091 = vmatmul.mubr.f32.gmra.mrb[0].mxu0 %v1021
    %v1092 = vpop.f32.mrb[0].mxu0
    %v1093 = vadd.f32 0.0, %v1092
    %v1094 = vpop.f32.mrb[0].mxu0
    %1095 = vdwg.mxu0
    %v1097 = vsel %vm639, %v637, 0
    %v1100 = vsel %vm639, %v523, 0
    %1102 = vmatprep.subr.mxu0 0.0
    %1103 = vmatpush1.xpose.msra.mxu0 %v1100
    %1104 = vmatprep.subr.mxu0 0.0
    %1105 = vmatpush1.xpose.msra.mxu0 0.0
    %1106 = vmatprep.subr.mxu0 0.0
    %1107 = vmatpush1.xpose.msra.mxu0 0.0
    %1108 = vmatprep.subr.mxu0 0.0
    %1109 = vmatpush1.xpose.msra.mxu0 0.0
    %1110 = vmatprep.subr.mxu0 0.0
    %1111 = vmatpush1.xpose.msra.mxu0 0.0
    %1112 = vmatprep.subr.mxu0 0.0
    %1113 = vmatpush1.xpose.msra.mxu0 0.0
    %1114 = vmatprep.subr.mxu0 0.0
    %1115 = vmatpush1.xpose.msra.mxu0 0.0
    %1116 = vmatprep.subr.mxu0 0.0
    %1117 = vmatpush1.xpose.msra.mxu0 0.0
    %1118 = vmatprep.subr.mxu0 0.0
    %1119 = vmatpush1.xpose.msra.mxu0 0.0
    %1120 = vmatprep.subr.mxu0 0.0
    %1121 = vmatpush1.xpose.msra.mxu0 0.0
    %1122 = vmatprep.subr.mxu0 0.0
    %1123 = vmatpush1.xpose.msra.mxu0 0.0
    %1124 = vmatprep.subr.mxu0 0.0
    %1125 = vmatpush1.xpose.msra.mxu0 0.0
    %1126 = vmatprep.subr.mxu0 0.0
    %1127 = vmatpush1.xpose.msra.mxu0 0.0
    %1128 = vmatprep.subr.mxu0 0.0
    %1129 = vmatpush1.xpose.msra.mxu0 0.0
    %1130 = vmatprep.subr.mxu0 0.0
    %1131 = vmatpush1.xpose.msra.mxu0 0.0
    %1132 = vmatprep.subr.mxu0 0.0
    %1133 = vmatpush1.xpose.msra.mxu0 0.0
    %1134 = vmatprep.subr.mxu0 0.0
    %1135 = vmatpush1.xpose.msra.mxu0 0.0
    %1136 = vmatprep.subr.mxu0 0.0
    %1137 = vmatpush1.xpose.msra.mxu0 0.0
    %1138 = vmatprep.subr.mxu0 0.0
    %1139 = vmatpush1.xpose.msra.mxu0 0.0
    %1140 = vmatprep.subr.mxu0 0.0
    %1141 = vmatpush1.xpose.msra.mxu0 0.0
    %1142 = vmatprep.subr.mxu0 0.0
    %1143 = vmatpush1.xpose.msra.mxu0 0.0
    %1144 = vmatprep.subr.mxu0 0.0
    %1145 = vmatpush1.xpose.msra.mxu0 0.0
    %1146 = vmatprep.subr.mxu0 0.0
    %1147 = vmatpush1.xpose.msra.mxu0 0.0
    %1148 = vmatprep.subr.mxu0 0.0
    %1149 = vmatpush1.xpose.msra.mxu0 0.0
    %1150 = vmatprep.subr.mxu0 0.0
    %1151 = vmatpush1.xpose.msra.mxu0 0.0
    %1152 = vmatprep.subr.mxu0 0.0
    %1153 = vmatpush1.xpose.msra.mxu0 0.0
    %1154 = vmatprep.subr.mxu0 0.0
    %1155 = vmatpush1.xpose.msra.mxu0 0.0
    %1156 = vmatprep.subr.mxu0 0.0
    %1157 = vmatpush1.xpose.msra.mxu0 0.0
    %1158 = vmatprep.subr.mxu0 0.0
    %1159 = vmatpush1.xpose.msra.mxu0 0.0
    %1160 = vmatprep.subr.mxu0 0.0
    %1161 = vmatpush1.xpose.msra.mxu0 0.0
    %1162 = vmatprep.subr.mxu0 0.0
    %1163 = vmatpush1.xpose.msra.mxu0 0.0
    %1164 = vmatprep.subr.mxu0 0.0
    %1165 = vmatpush1.xpose.msra.mxu0 0.0
    %1166 = vmatprep.mubr.f32.mxu0 0.0
    %1167 = vmatmul.mubr.f32.gmra.mrb[0].mxu0 %v1097
    %v1168 = vpop.f32.mrb[0].mxu0
    %v1169 = vadd.f32 0.0, %v1168
    %v1170 = vpop.f32.mrb[0].mxu0
    %1171 = vdwg.mxu0
    %v1173 = vsel %vm639, %v638, 0
    %v1176 = vsel %vm639, %v528, 0
    %1178 = vmatprep.subr.mxu0 0.0
    %1179 = vmatpush1.xpose.msra.mxu0 %v1176
    %1180 = vmatprep.subr.mxu0 0.0
    %1181 = vmatpush1.xpose.msra.mxu0 0.0
    %1182 = vmatprep.subr.mxu0 0.0
    %1183 = vmatpush1.xpose.msra.mxu0 0.0
    %1184 = vmatprep.subr.mxu0 0.0
    %1185 = vmatpush1.xpose.msra.mxu0 0.0
    %1186 = vmatprep.subr.mxu0 0.0
    %1187 = vmatpush1.xpose.msra.mxu0 0.0
    %1188 = vmatprep.subr.mxu0 0.0
    %1189 = vmatpush1.xpose.msra.mxu0 0.0
    %1190 = vmatprep.subr.mxu0 0.0
    %1191 = vmatpush1.xpose.msra.mxu0 0.0
    %1192 = vmatprep.subr.mxu0 0.0
    %1193 = vmatpush1.xpose.msra.mxu0 0.0
    %1194 = vmatprep.subr.mxu0 0.0
    %1195 = vmatpush1.xpose.msra.mxu0 0.0
    %1196 = vmatprep.subr.mxu0 0.0
    %1197 = vmatpush1.xpose.msra.mxu0 0.0
    %1198 = vmatprep.subr.mxu0 0.0
    %1199 = vmatpush1.xpose.msra.mxu0 0.0
    %1200 = vmatprep.subr.mxu0 0.0
    %1201 = vmatpush1.xpose.msra.mxu0 0.0
    %1202 = vmatprep.subr.mxu0 0.0
    %1203 = vmatpush1.xpose.msra.mxu0 0.0
    %1204 = vmatprep.subr.mxu0 0.0
    %1205 = vmatpush1.xpose.msra.mxu0 0.0
    %1206 = vmatprep.subr.mxu0 0.0
    %1207 = vmatpush1.xpose.msra.mxu0 0.0
    %1208 = vmatprep.subr.mxu0 0.0
    %1209 = vmatpush1.xpose.msra.mxu0 0.0
    %1210 = vmatprep.subr.mxu0 0.0
    %1211 = vmatpush1.xpose.msra.mxu0 0.0
    %1212 = vmatprep.subr.mxu0 0.0
    %1213 = vmatpush1.xpose.msra.mxu0 0.0
    %1214 = vmatprep.subr.mxu0 0.0
    %1215 = vmatpush1.xpose.msra.mxu0 0.0
    %1216 = vmatprep.subr.mxu0 0.0
    %1217 = vmatpush1.xpose.msra.mxu0 0.0
    %1218 = vmatprep.subr.mxu0 0.0
    %1219 = vmatpush1.xpose.msra.mxu0 0.0
    %1220 = vmatprep.subr.mxu0 0.0
    %1221 = vmatpush1.xpose.msra.mxu0 0.0
    %1222 = vmatprep.subr.mxu0 0.0
    %1223 = vmatpush1.xpose.msra.mxu0 0.0
    %1224 = vmatprep.subr.mxu0 0.0
    %1225 = vmatpush1.xpose.msra.mxu0 0.0
    %1226 = vmatprep.subr.mxu0 0.0
    %1227 = vmatpush1.xpose.msra.mxu0 0.0
    %1228 = vmatprep.subr.mxu0 0.0
    %1229 = vmatpush1.xpose.msra.mxu0 0.0
    %1230 = vmatprep.subr.mxu0 0.0
    %1231 = vmatpush1.xpose.msra.mxu0 0.0
    %1232 = vmatprep.subr.mxu0 0.0
    %1233 = vmatpush1.xpose.msra.mxu0 0.0
    %1234 = vmatprep.subr.mxu0 0.0
    %1235 = vmatpush1.xpose.msra.mxu0 0.0
    %1236 = vmatprep.subr.mxu0 0.0
    %1237 = vmatpush1.xpose.msra.mxu0 0.0
    %1238 = vmatprep.subr.mxu0 0.0
    %1239 = vmatpush1.xpose.msra.mxu0 0.0
    %1240 = vmatprep.subr.mxu0 0.0
    %1241 = vmatpush1.xpose.msra.mxu0 0.0
    %1242 = vmatprep.mubr.f32.mxu0 0.0
    %1243 = vmatmul.mubr.f32.gmra.mrb[0].mxu0 %v1173
    %v1244 = vpop.f32.mrb[0].mxu0
    %v1245 = vadd.f32 0.0, %v1244
    %v1246 = vpop.f32.mrb[0].mxu0
    %1247 = vdwg.mxu0
    %1248 = vset.pattern.permute.xlu0 0
    %1249 = vperm.xlu0 %1248, %v95
    %v1250 = vpop.permute.xlu0 %1249
    %v1251 = vlaneseq
    %v1252 = vshrl.u32 %v1251, 7
    %v1253 = vsub.s32 0, %v1252
    %v1254 = vrot.slane %v1250, %v1253
    %1255 = vset.pattern.permute.xlu0 0
    %1256 = vperm.xlu0 %1255, %v96
    %v1257 = vpop.permute.xlu0 %1256
    %v1258 = vlaneseq
    %v1259 = vshrl.u32 %v1258, 7
    %v1260 = vsub.s32 0, %v1259
    %v1261 = vrot.slane %v1257, %v1260
    %1262 = vset.pattern.permute.xlu0 0
    %1263 = vperm.xlu0 %1262, %v97
    %v1264 = vpop.permute.xlu0 %1263
    %v1265 = vlaneseq
    %v1266 = vshrl.u32 %v1265, 7
    %v1267 = vsub.s32 0, %v1266
    %v1268 = vrot.slane %v1264, %v1267
    %1269 = vset.pattern.permute.xlu0 0
    %1270 = vperm.xlu0 %1269, %v98
    %v1271 = vpop.permute.xlu0 %1270
    %v1272 = vlaneseq
    %v1273 = vshrl.u32 %v1272, 7
    %v1274 = vsub.s32 0, %v1273
    %v1275 = vrot.slane %v1271, %v1274
    %1276 = vset.pattern.permute.xlu0 0
    %1277 = vperm.xlu0 %1276, %v99
    %v1278 = vpop.permute.xlu0 %1277
    %v1279 = vlaneseq
    %v1280 = vshrl.u32 %v1279, 7
    %v1281 = vsub.s32 0, %v1280
    %v1282 = vrot.slane %v1278, %v1281
    %1283 = vset.pattern.permute.xlu0 0
    %1284 = vperm.xlu0 %1283, %v100
    %v1285 = vpop.permute.xlu0 %1284
    %v1286 = vlaneseq
    %v1287 = vshrl.u32 %v1286, 7
    %v1288 = vsub.s32 0, %v1287
    %v1289 = vrot.slane %v1285, %v1288
    %1290 = vset.pattern.permute.xlu0 0
    %1291 = vperm.xlu0 %1290, %v101
    %v1292 = vpop.permute.xlu0 %1291
    %v1293 = vlaneseq
    %v1294 = vshrl.u32 %v1293, 7
    %v1295 = vsub.s32 0, %v1294
    %v1296 = vrot.slane %v1292, %v1295
    %1297 = vset.pattern.permute.xlu0 0
    %1298 = vperm.xlu0 %1297, %v102
    %v1299 = vpop.permute.xlu0 %1298
    %v1300 = vlaneseq
    %v1301 = vshrl.u32 %v1300, 7
    %v1302 = vsub.s32 0, %v1301
    %v1303 = vrot.slane %v1299, %v1302
    %vm1304 = vcmp.lt.s32.totalorder %v532, %v1254
    %vm1305 = vcmp.lt.s32.totalorder %v532, %v1261
    %vm1306 = vcmp.lt.s32.totalorder %v532, %v1268
    %vm1307 = vcmp.lt.s32.totalorder %v532, %v1275
    %vm1308 = vcmp.lt.s32.totalorder %v532, %v1282
    %vm1309 = vcmp.lt.s32.totalorder %v532, %v1289
    %vm1310 = vcmp.lt.s32.totalorder %v532, %v1296
    %vm1311 = vcmp.lt.s32.totalorder %v532, %v1303
    %v1312 = vsel %vm1304, 1, 0
    %v1313 = vsel %vm1305, 1, 0
    %v1314 = vsel %vm1306, 1, 0
    %v1315 = vsel %vm1307, 1, 0
    %v1316 = vsel %vm1308, 1, 0
    %v1317 = vsel %vm1309, 1, 0
    %v1318 = vsel %vm1310, 1, 0
    %v1319 = vsel %vm1311, 1, 0
    %vm1320 = vcmp.eq.s32.totalorder %v1312, 1
    %vm1321 = vcmp.eq.s32.totalorder %v1313, 1
    %vm1322 = vcmp.eq.s32.totalorder %v1314, 1
    %vm1323 = vcmp.eq.s32.totalorder %v1315, 1
    %vm1324 = vcmp.eq.s32.totalorder %v1316, 1
    %vm1325 = vcmp.eq.s32.totalorder %v1317, 1
    %vm1326 = vcmp.eq.s32.totalorder %v1318, 1
    %vm1327 = vcmp.eq.s32.totalorder %v1319, 1
    %v1328 = vsel %vm1320, %v713, -1e+30
    %v1329 = vsel %vm1321, %v789, -1e+30
    %v1330 = vsel %vm1322, %v865, -1e+30
    %v1331 = vsel %vm1323, %v941, -1e+30
    %v1332 = vsel %vm1324, %v1017, -1e+30
    %v1333 = vsel %vm1325, %v1093, -1e+30
    %v1334 = vsel %vm1326, %v1169, -1e+30
    %v1335 = vsel %vm1327, %v1245, -1e+30
    %vm1336 = vcmask 58368
    %v1337 = vsel %vm1336, %v1328, -inf
    %1338 = vmax.xlane.f32.xlu0 %v1337
    %v1339 = vpop.xlane.xlu0 %1338
    %v1340 = vsel %vm1336, %v1329, -inf
    %1341 = vmax.xlane.f32.xlu0 %v1340
    %v1342 = vpop.xlane.xlu0 %1341
    %v1343 = vsel %vm1336, %v1330, -inf
    %1344 = vmax.xlane.f32.xlu0 %v1343
    %v1345 = vpop.xlane.xlu0 %1344
    %v1346 = vsel %vm1336, %v1331, -inf
    %1347 = vmax.xlane.f32.xlu0 %v1346
    %v1348 = vpop.xlane.xlu0 %1347
    %v1349 = vsel %vm1336, %v1332, -inf
    %1350 = vmax.xlane.f32.xlu0 %v1349
    %v1351 = vpop.xlane.xlu0 %1350
    %v1352 = vsel %vm1336, %v1333, -inf
    %1353 = vmax.xlane.f32.xlu0 %v1352
    %v1354 = vpop.xlane.xlu0 %1353
    %v1355 = vsel %vm1336, %v1334, -inf
    %1356 = vmax.xlane.f32.xlu0 %v1355
    %v1357 = vpop.xlane.xlu0 %1356
    %v1358 = vsel %vm1336, %v1335, -inf
    %1359 = vmax.xlane.f32.xlu0 %v1358
    %v1360 = vpop.xlane.xlu0 %1359
    %v1361 = vsub.f32 %v1328, %v1339
    %v1362 = vsub.f32 %v1329, %v1342
    %v1363 = vsub.f32 %v1330, %v1345
    %v1364 = vsub.f32 %v1331, %v1348
    %v1365 = vsub.f32 %v1332, %v1351
    %v1366 = vsub.f32 %v1333, %v1354
    %v1367 = vsub.f32 %v1334, %v1357
    %v1368 = vsub.f32 %v1335, %v1360
    %v1369 = vmul.f32 %v1361, 1.442695
    %v1370 = vpow.pop %v1369
    %v1371 = vmul.f32 %v1362, 1.442695
    %v1372 = vpow.pop %v1371
    %v1373 = vmul.f32 %v1363, 1.442695
    %v1374 = vpow.pop %v1373
    %v1375 = vmul.f32 %v1364, 1.442695
    %v1376 = vpow.pop %v1375
    %v1377 = vmul.f32 %v1365, 1.442695
    %v1378 = vpow.pop %v1377
    %v1379 = vmul.f32 %v1366, 1.442695
    %v1380 = vpow.pop %v1379
    %v1381 = vmul.f32 %v1367, 1.442695
    %v1382 = vpow.pop %v1381
    %v1383 = vmul.f32 %v1368, 1.442695
    %v1384 = vpow.pop %v1383
    %v1385 = vsel %vm1320, %v1370, 0.0
    %v1386 = vsel %vm1321, %v1372, 0.0
    %v1387 = vsel %vm1322, %v1374, 0.0
    %v1388 = vsel %vm1323, %v1376, 0.0
    %v1389 = vsel %vm1324, %v1378, 0.0
    %v1390 = vsel %vm1325, %v1380, 0.0
    %v1391 = vsel %vm1326, %v1382, 0.0
    %v1392 = vsel %vm1327, %v1384, 0.0
    %v1393 = vsel %vm1336, %v1385, 0.0
    %1394 = vadd.xlane.f32.xlu0 %v1393
    %v1395 = vpop.xlane.xlu0 %1394
    %v1396 = vsel %vm1336, %v1386, 0.0
    %1397 = vadd.xlane.f32.xlu0 %v1396
    %v1398 = vpop.xlane.xlu0 %1397
    %v1399 = vsel %vm1336, %v1387, 0.0
    %1400 = vadd.xlane.f32.xlu0 %v1399
    %v1401 = vpop.xlane.xlu0 %1400
    %v1402 = vsel %vm1336, %v1388, 0.0
    %1403 = vadd.xlane.f32.xlu0 %v1402
    %v1404 = vpop.xlane.xlu0 %1403
    %v1405 = vsel %vm1336, %v1389, 0.0
    %1406 = vadd.xlane.f32.xlu0 %v1405
    %v1407 = vpop.xlane.xlu0 %1406
    %v1408 = vsel %vm1336, %v1390, 0.0
    %1409 = vadd.xlane.f32.xlu0 %v1408
    %v1410 = vpop.xlane.xlu0 %1409
    %v1411 = vsel %vm1336, %v1391, 0.0
    %1412 = vadd.xlane.f32.xlu0 %v1411
    %v1413 = vpop.xlane.xlu0 %1412
    %v1414 = vsel %vm1336, %v1392, 0.0
    %1415 = vadd.xlane.f32.xlu0 %v1414
    %v1416 = vpop.xlane.xlu0 %1415
    %v1417 = vrcp.pop %v1395
    %v1418 = vrcp.pop %v1398
    %v1419 = vrcp.pop %v1401
    %v1420 = vrcp.pop %v1404
    %v1421 = vrcp.pop %v1407
    %v1422 = vrcp.pop %v1410
    %v1423 = vrcp.pop %v1413
    %v1424 = vrcp.pop %v1416
    %v1425 = vmul.f32 %v1385, %v1417
    %v1426 = vmul.f32 %v1386, %v1418
    %v1427 = vmul.f32 %v1387, %v1419
    %v1428 = vmul.f32 %v1388, %v1420
    %v1429 = vmul.f32 %v1389, %v1421
    %v1430 = vmul.f32 %v1390, %v1422
    %v1431 = vmul.f32 %v1391, %v1423
    %v1432 = vmul.f32 %v1392, %v1424
    %vm1433 = vcmask 64512
    %v1435 = vsel %vm1433, %v1425, 0
    %1437 = vmatprep.subr.mxu0 0.0
    %1438 = vmatpush1.msra.mxu0 %v87
    %1439 = vmatprep.subr.mxu0 0.0
    %1440 = vmatpush1.msra.mxu0 0.0
    %1441 = vmatprep.subr.mxu0 0.0
    %1442 = vmatpush1.msra.mxu0 0.0
    %1443 = vmatprep.subr.mxu0 0.0
    %1444 = vmatpush1.msra.mxu0 0.0
    %1445 = vmatprep.subr.mxu0 0.0
    %1446 = vmatpush1.msra.mxu0 0.0
    %1447 = vmatprep.subr.mxu0 0.0
    %1448 = vmatpush1.msra.mxu0 0.0
    %1449 = vmatprep.subr.mxu0 0.0
    %1450 = vmatpush1.msra.mxu0 0.0
    %1451 = vmatprep.subr.mxu0 0.0
    %1452 = vmatpush1.msra.mxu0 0.0
    %1453 = vmatprep.subr.mxu0 0.0
    %1454 = vmatpush1.msra.mxu0 0.0
    %1455 = vmatprep.subr.mxu0 0.0
    %1456 = vmatpush1.msra.mxu0 0.0
    %1457 = vmatprep.subr.mxu0 0.0
    %1458 = vmatpush1.msra.mxu0 0.0
    %1459 = vmatprep.subr.mxu0 0.0
    %1460 = vmatpush1.msra.mxu0 0.0
    %1461 = vmatprep.subr.mxu0 0.0
    %1462 = vmatpush1.msra.mxu0 0.0
    %1463 = vmatprep.subr.mxu0 0.0
    %1464 = vmatpush1.msra.mxu0 0.0
    %1465 = vmatprep.subr.mxu0 0.0
    %1466 = vmatpush1.msra.mxu0 0.0
    %1467 = vmatprep.subr.mxu0 0.0
    %1468 = vmatpush1.msra.mxu0 0.0
    %1469 = vmatprep.subr.mxu0 0.0
    %1470 = vmatpush1.msra.mxu0 0.0
    %1471 = vmatprep.subr.mxu0 0.0
    %1472 = vmatpush1.msra.mxu0 0.0
    %1473 = vmatprep.subr.mxu0 0.0
    %1474 = vmatpush1.msra.mxu0 0.0
    %1475 = vmatprep.subr.mxu0 0.0
    %1476 = vmatpush1.msra.mxu0 0.0
    %1477 = vmatprep.subr.mxu0 0.0
    %1478 = vmatpush1.msra.mxu0 0.0
    %1479 = vmatprep.subr.mxu0 0.0
    %1480 = vmatpush1.msra.mxu0 0.0
    %1481 = vmatprep.subr.mxu0 0.0
    %1482 = vmatpush1.msra.mxu0 0.0
    %1483 = vmatprep.subr.mxu0 0.0
    %1484 = vmatpush1.msra.mxu0 0.0
    %1485 = vmatprep.subr.mxu0 0.0
    %1486 = vmatpush1.msra.mxu0 0.0
    %1487 = vmatprep.subr.mxu0 0.0
    %1488 = vmatpush1.msra.mxu0 0.0
    %1489 = vmatprep.subr.mxu0 0.0
    %1490 = vmatpush1.msra.mxu0 0.0
    %1491 = vmatprep.subr.mxu0 0.0
    %1492 = vmatpush1.msra.mxu0 0.0
    %1493 = vmatprep.subr.mxu0 0.0
    %1494 = vmatpush1.msra.mxu0 0.0
    %1495 = vmatprep.subr.mxu0 0.0
    %1496 = vmatpush1.msra.mxu0 0.0
    %1497 = vmatprep.subr.mxu0 0.0
    %1498 = vmatpush1.msra.mxu0 0.0
    %1499 = vmatprep.subr.mxu0 0.0
    %1500 = vmatpush1.msra.mxu0 0.0
    %1501 = vmatprep.mubr.f32.mxu0 0.0
    %1502 = vmatmul.mubr.f32.gmra.mrb[0].mxu0 %v1435
    %v1503 = vpop.f32.mrb[0].mxu0
    %v1504 = vadd.f32 0.0, %v1503
    %v1505 = vpop.f32.mrb[0].mxu0
    %1506 = vdwg.mxu0
    %v1508 = vsel %vm1433, %v1426, 0
    %1510 = vmatprep.subr.mxu0 0.0
    %1511 = vmatpush1.msra.mxu0 %v88
    %1512 = vmatprep.subr.mxu0 0.0
    %1513 = vmatpush1.msra.mxu0 0.0
    %1514 = vmatprep.subr.mxu0 0.0
    %1515 = vmatpush1.msra.mxu0 0.0
    %1516 = vmatprep.subr.mxu0 0.0
    %1517 = vmatpush1.msra.mxu0 0.0
    %1518 = vmatprep.subr.mxu0 0.0
    %1519 = vmatpush1.msra.mxu0 0.0
    %1520 = vmatprep.subr.mxu0 0.0
    %1521 = vmatpush1.msra.mxu0 0.0
    %1522 = vmatprep.subr.mxu0 0.0
    %1523 = vmatpush1.msra.mxu0 0.0
    %1524 = vmatprep.subr.mxu0 0.0
    %1525 = vmatpush1.msra.mxu0 0.0
    %1526 = vmatprep.subr.mxu0 0.0
    %1527 = vmatpush1.msra.mxu0 0.0
    %1528 = vmatprep.subr.mxu0 0.0
    %1529 = vmatpush1.msra.mxu0 0.0
    %1530 = vmatprep.subr.mxu0 0.0
    %1531 = vmatpush1.msra.mxu0 0.0
    %1532 = vmatprep.subr.mxu0 0.0
    %1533 = vmatpush1.msra.mxu0 0.0
    %1534 = vmatprep.subr.mxu0 0.0
    %1535 = vmatpush1.msra.mxu0 0.0
    %1536 = vmatprep.subr.mxu0 0.0
    %1537 = vmatpush1.msra.mxu0 0.0
    %1538 = vmatprep.subr.mxu0 0.0
    %1539 = vmatpush1.msra.mxu0 0.0
    %1540 = vmatprep.subr.mxu0 0.0
    %1541 = vmatpush1.msra.mxu0 0.0
    %1542 = vmatprep.subr.mxu0 0.0
    %1543 = vmatpush1.msra.mxu0 0.0
    %1544 = vmatprep.subr.mxu0 0.0
    %1545 = vmatpush1.msra.mxu0 0.0
    %1546 = vmatprep.subr.mxu0 0.0
    %1547 = vmatpush1.msra.mxu0 0.0
    %1548 = vmatprep.subr.mxu0 0.0
    %1549 = vmatpush1.msra.mxu0 0.0
    %1550 = vmatprep.subr.mxu0 0.0
    %1551 = vmatpush1.msra.mxu0 0.0
    %1552 = vmatprep.subr.mxu0 0.0
    %1553 = vmatpush1.msra.mxu0 0.0
    %1554 = vmatprep.subr.mxu0 0.0
    %1555 = vmatpush1.msra.mxu0 0.0
    %1556 = vmatprep.subr.mxu0 0.0
    %1557 = vmatpush1.msra.mxu0 0.0
    %1558 = vmatprep.subr.mxu0 0.0
    %1559 = vmatpush1.msra.mxu0 0.0
    %1560 = vmatprep.subr.mxu0 0.0
    %1561 = vmatpush1.msra.mxu0 0.0
    %1562 = vmatprep.subr.mxu0 0.0
    %1563 = vmatpush1.msra.mxu0 0.0
    %1564 = vmatprep.subr.mxu0 0.0
    %1565 = vmatpush1.msra.mxu0 0.0
    %1566 = vmatprep.subr.mxu0 0.0
    %1567 = vmatpush1.msra.mxu0 0.0
    %1568 = vmatprep.subr.mxu0 0.0
    %1569 = vmatpush1.msra.mxu0 0.0
    %1570 = vmatprep.subr.mxu0 0.0
    %1571 = vmatpush1.msra.mxu0 0.0
    %1572 = vmatprep.subr.mxu0 0.0
    %1573 = vmatpush1.msra.mxu0 0.0
    %1574 = vmatprep.mubr.f32.mxu0 0.0
    %1575 = vmatmul.mubr.f32.gmra.mrb[0].mxu0 %v1508
    %v1576 = vpop.f32.mrb[0].mxu0
    %v1577 = vadd.f32 0.0, %v1576
    %v1578 = vpop.f32.mrb[0].mxu0
    %1579 = vdwg.mxu0
    %v1581 = vsel %vm1433, %v1427, 0
    %1583 = vmatprep.subr.mxu0 0.0
    %1584 = vmatpush1.msra.mxu0 %v89
    %1585 = vmatprep.subr.mxu0 0.0
    %1586 = vmatpush1.msra.mxu0 0.0
    %1587 = vmatprep.subr.mxu0 0.0
    %1588 = vmatpush1.msra.mxu0 0.0
    %1589 = vmatprep.subr.mxu0 0.0
    %1590 = vmatpush1.msra.mxu0 0.0
    %1591 = vmatprep.subr.mxu0 0.0
    %1592 = vmatpush1.msra.mxu0 0.0
    %1593 = vmatprep.subr.mxu0 0.0
    %1594 = vmatpush1.msra.mxu0 0.0
    %1595 = vmatprep.subr.mxu0 0.0
    %1596 = vmatpush1.msra.mxu0 0.0
    %1597 = vmatprep.subr.mxu0 0.0
    %1598 = vmatpush1.msra.mxu0 0.0
    %1599 = vmatprep.subr.mxu0 0.0
    %1600 = vmatpush1.msra.mxu0 0.0
    %1601 = vmatprep.subr.mxu0 0.0
    %1602 = vmatpush1.msra.mxu0 0.0
    %1603 = vmatprep.subr.mxu0 0.0
    %1604 = vmatpush1.msra.mxu0 0.0
    %1605 = vmatprep.subr.mxu0 0.0
    %1606 = vmatpush1.msra.mxu0 0.0
    %1607 = vmatprep.subr.mxu0 0.0
    %1608 = vmatpush1.msra.mxu0 0.0
    %1609 = vmatprep.subr.mxu0 0.0
    %1610 = vmatpush1.msra.mxu0 0.0
    %1611 = vmatprep.subr.mxu0 0.0
    %1612 = vmatpush1.msra.mxu0 0.0
    %1613 = vmatprep.subr.mxu0 0.0
    %1614 = vmatpush1.msra.mxu0 0.0
    %1615 = vmatprep.subr.mxu0 0.0
    %1616 = vmatpush1.msra.mxu0 0.0
    %1617 = vmatprep.subr.mxu0 0.0
    %1618 = vmatpush1.msra.mxu0 0.0
    %1619 = vmatprep.subr.mxu0 0.0
    %1620 = vmatpush1.msra.mxu0 0.0
    %1621 = vmatprep.subr.mxu0 0.0
    %1622 = vmatpush1.msra.mxu0 0.0
    %1623 = vmatprep.subr.mxu0 0.0
    %1624 = vmatpush1.msra.mxu0 0.0
    %1625 = vmatprep.subr.mxu0 0.0
    %1626 = vmatpush1.msra.mxu0 0.0
    %1627 = vmatprep.subr.mxu0 0.0
    %1628 = vmatpush1.msra.mxu0 0.0
    %1629 = vmatprep.subr.mxu0 0.0
    %1630 = vmatpush1.msra.mxu0 0.0
    %1631 = vmatprep.subr.mxu0 0.0
    %1632 = vmatpush1.msra.mxu0 0.0
    %1633 = vmatprep.subr.mxu0 0.0
    %1634 = vmatpush1.msra.mxu0 0.0
    %1635 = vmatprep.subr.mxu0 0.0
    %1636 = vmatpush1.msra.mxu0 0.0
    %1637 = vmatprep.subr.mxu0 0.0
    %1638 = vmatpush1.msra.mxu0 0.0
    %1639 = vmatprep.subr.mxu0 0.0
    %1640 = vmatpush1.msra.mxu0 0.0
    %1641 = vmatprep.subr.mxu0 0.0
    %1642 = vmatpush1.msra.mxu0 0.0
    %1643 = vmatprep.subr.mxu0 0.0
    %1644 = vmatpush1.msra.mxu0 0.0
    %1645 = vmatprep.subr.mxu0 0.0
    %1646 = vmatpush1.msra.mxu0 0.0
    %1647 = vmatprep.mubr.f32.mxu0 0.0
    %1648 = vmatmul.mubr.f32.gmra.mrb[0].mxu0 %v1581
    %v1649 = vpop.f32.mrb[0].mxu0
    %v1650 = vadd.f32 0.0, %v1649
    %v1651 = vpop.f32.mrb[0].mxu0
    %1652 = vdwg.mxu0
    %v1654 = vsel %vm1433, %v1428, 0
    %1656 = vmatprep.subr.mxu0 0.0
    %1657 = vmatpush1.msra.mxu0 %v90
    %1658 = vmatprep.subr.mxu0 0.0
    %1659 = vmatpush1.msra.mxu0 0.0
    %1660 = vmatprep.subr.mxu0 0.0
    %1661 = vmatpush1.msra.mxu0 0.0
    %1662 = vmatprep.subr.mxu0 0.0
    %1663 = vmatpush1.msra.mxu0 0.0
    %1664 = vmatprep.subr.mxu0 0.0
    %1665 = vmatpush1.msra.mxu0 0.0
    %1666 = vmatprep.subr.mxu0 0.0
    %1667 = vmatpush1.msra.mxu0 0.0
    %1668 = vmatprep.subr.mxu0 0.0
    %1669 = vmatpush1.msra.mxu0 0.0
    %1670 = vmatprep.subr.mxu0 0.0
    %1671 = vmatpush1.msra.mxu0 0.0
    %1672 = vmatprep.subr.mxu0 0.0
    %1673 = vmatpush1.msra.mxu0 0.0
    %1674 = vmatprep.subr.mxu0 0.0
    %1675 = vmatpush1.msra.mxu0 0.0
    %1676 = vmatprep.subr.mxu0 0.0
    %1677 = vmatpush1.msra.mxu0 0.0
    %1678 = vmatprep.subr.mxu0 0.0
    %1679 = vmatpush1.msra.mxu0 0.0
    %1680 = vmatprep.subr.mxu0 0.0
    %1681 = vmatpush1.msra.mxu0 0.0
    %1682 = vmatprep.subr.mxu0 0.0
    %1683 = vmatpush1.msra.mxu0 0.0
    %1684 = vmatprep.subr.mxu0 0.0
    %1685 = vmatpush1.msra.mxu0 0.0
    %1686 = vmatprep.subr.mxu0 0.0
    %1687 = vmatpush1.msra.mxu0 0.0
    %1688 = vmatprep.subr.mxu0 0.0
    %1689 = vmatpush1.msra.mxu0 0.0
    %1690 = vmatprep.subr.mxu0 0.0
    %1691 = vmatpush1.msra.mxu0 0.0
    %1692 = vmatprep.subr.mxu0 0.0
    %1693 = vmatpush1.msra.mxu0 0.0
    %1694 = vmatprep.subr.mxu0 0.0
    %1695 = vmatpush1.msra.mxu0 0.0
    %1696 = vmatprep.subr.mxu0 0.0
    %1697 = vmatpush1.msra.mxu0 0.0
    %1698 = vmatprep.subr.mxu0 0.0
    %1699 = vmatpush1.msra.mxu0 0.0
    %1700 = vmatprep.subr.mxu0 0.0
    %1701 = vmatpush1.msra.mxu0 0.0
    %1702 = vmatprep.subr.mxu0 0.0
    %1703 = vmatpush1.msra.mxu0 0.0
    %1704 = vmatprep.subr.mxu0 0.0
    %1705 = vmatpush1.msra.mxu0 0.0
    %1706 = vmatprep.subr.mxu0 0.0
    %1707 = vmatpush1.msra.mxu0 0.0
    %1708 = vmatprep.subr.mxu0 0.0
    %1709 = vmatpush1.msra.mxu0 0.0
    %1710 = vmatprep.subr.mxu0 0.0
    %1711 = vmatpush1.msra.mxu0 0.0
    %1712 = vmatprep.subr.mxu0 0.0
    %1713 = vmatpush1.msra.mxu0 0.0
    %1714 = vmatprep.subr.mxu0 0.0
    %1715 = vmatpush1.msra.mxu0 0.0
    %1716 = vmatprep.subr.mxu0 0.0
    %1717 = vmatpush1.msra.mxu0 0.0
    %1718 = vmatprep.subr.mxu0 0.0
    %1719 = vmatpush1.msra.mxu0 0.0
    %1720 = vmatprep.mubr.f32.mxu0 0.0
    %1721 = vmatmul.mubr.f32.gmra.mrb[0].mxu0 %v1654
    %v1722 = vpop.f32.mrb[0].mxu0
    %v1723 = vadd.f32 0.0, %v1722
    %v1724 = vpop.f32.mrb[0].mxu0
    %1725 = vdwg.mxu0
    %v1727 = vsel %vm1433, %v1429, 0
    %1729 = vmatprep.subr.mxu0 0.0
    %1730 = vmatpush1.msra.mxu0 %v91
    %1731 = vmatprep.subr.mxu0 0.0
    %1732 = vmatpush1.msra.mxu0 0.0
    %1733 = vmatprep.subr.mxu0 0.0
    %1734 = vmatpush1.msra.mxu0 0.0
    %1735 = vmatprep.subr.mxu0 0.0
    %1736 = vmatpush1.msra.mxu0 0.0
    %1737 = vmatprep.subr.mxu0 0.0
    %1738 = vmatpush1.msra.mxu0 0.0
    %1739 = vmatprep.subr.mxu0 0.0
    %1740 = vmatpush1.msra.mxu0 0.0
    %1741 = vmatprep.subr.mxu0 0.0
    %1742 = vmatpush1.msra.mxu0 0.0
    %1743 = vmatprep.subr.mxu0 0.0
    %1744 = vmatpush1.msra.mxu0 0.0
    %1745 = vmatprep.subr.mxu0 0.0
    %1746 = vmatpush1.msra.mxu0 0.0
    %1747 = vmatprep.subr.mxu0 0.0
    %1748 = vmatpush1.msra.mxu0 0.0
    %1749 = vmatprep.subr.mxu0 0.0
    %1750 = vmatpush1.msra.mxu0 0.0
    %1751 = vmatprep.subr.mxu0 0.0
    %1752 = vmatpush1.msra.mxu0 0.0
    %1753 = vmatprep.subr.mxu0 0.0
    %1754 = vmatpush1.msra.mxu0 0.0
    %1755 = vmatprep.subr.mxu0 0.0
    %1756 = vmatpush1.msra.mxu0 0.0
    %1757 = vmatprep.subr.mxu0 0.0
    %1758 = vmatpush1.msra.mxu0 0.0
    %1759 = vmatprep.subr.mxu0 0.0
    %1760 = vmatpush1.msra.mxu0 0.0
    %1761 = vmatprep.subr.mxu0 0.0
    %1762 = vmatpush1.msra.mxu0 0.0
    %1763 = vmatprep.subr.mxu0 0.0
    %1764 = vmatpush1.msra.mxu0 0.0
    %1765 = vmatprep.subr.mxu0 0.0
    %1766 = vmatpush1.msra.mxu0 0.0
    %1767 = vmatprep.subr.mxu0 0.0
    %1768 = vmatpush1.msra.mxu0 0.0
    %1769 = vmatprep.subr.mxu0 0.0
    %1770 = vmatpush1.msra.mxu0 0.0
    %1771 = vmatprep.subr.mxu0 0.0
    %1772 = vmatpush1.msra.mxu0 0.0
    %1773 = vmatprep.subr.mxu0 0.0
    %1774 = vmatpush1.msra.mxu0 0.0
    %1775 = vmatprep.subr.mxu0 0.0
    %1776 = vmatpush1.msra.mxu0 0.0
    %1777 = vmatprep.subr.mxu0 0.0
    %1778 = vmatpush1.msra.mxu0 0.0
    %1779 = vmatprep.subr.mxu0 0.0
    %1780 = vmatpush1.msra.mxu0 0.0
    %1781 = vmatprep.subr.mxu0 0.0
    %1782 = vmatpush1.msra.mxu0 0.0
    %1783 = vmatprep.subr.mxu0 0.0
    %1784 = vmatpush1.msra.mxu0 0.0
    %1785 = vmatprep.subr.mxu0 0.0
    %1786 = vmatpush1.msra.mxu0 0.0
    %1787 = vmatprep.subr.mxu0 0.0
    %1788 = vmatpush1.msra.mxu0 0.0
    %1789 = vmatprep.subr.mxu0 0.0
    %1790 = vmatpush1.msra.mxu0 0.0
    %1791 = vmatprep.subr.mxu0 0.0
    %1792 = vmatpush1.msra.mxu0 0.0
    %1793 = vmatprep.mubr.f32.mxu0 0.0
    %1794 = vmatmul.mubr.f32.gmra.mrb[0].mxu0 %v1727
    %v1795 = vpop.f32.mrb[0].mxu0
    %v1796 = vadd.f32 0.0, %v1795
    %v1797 = vpop.f32.mrb[0].mxu0
    %1798 = vdwg.mxu0
    %v1800 = vsel %vm1433, %v1430, 0
    %1802 = vmatprep.subr.mxu0 0.0
    %1803 = vmatpush1.msra.mxu0 %v92
    %1804 = vmatprep.subr.mxu0 0.0
    %1805 = vmatpush1.msra.mxu0 0.0
    %1806 = vmatprep.subr.mxu0 0.0
    %1807 = vmatpush1.msra.mxu0 0.0
    %1808 = vmatprep.subr.mxu0 0.0
    %1809 = vmatpush1.msra.mxu0 0.0
    %1810 = vmatprep.subr.mxu0 0.0
    %1811 = vmatpush1.msra.mxu0 0.0
    %1812 = vmatprep.subr.mxu0 0.0
    %1813 = vmatpush1.msra.mxu0 0.0
    %1814 = vmatprep.subr.mxu0 0.0
    %1815 = vmatpush1.msra.mxu0 0.0
    %1816 = vmatprep.subr.mxu0 0.0
    %1817 = vmatpush1.msra.mxu0 0.0
    %1818 = vmatprep.subr.mxu0 0.0
    %1819 = vmatpush1.msra.mxu0 0.0
    %1820 = vmatprep.subr.mxu0 0.0
    %1821 = vmatpush1.msra.mxu0 0.0
    %1822 = vmatprep.subr.mxu0 0.0
    %1823 = vmatpush1.msra.mxu0 0.0
    %1824 = vmatprep.subr.mxu0 0.0
    %1825 = vmatpush1.msra.mxu0 0.0
    %1826 = vmatprep.subr.mxu0 0.0
    %1827 = vmatpush1.msra.mxu0 0.0
    %1828 = vmatprep.subr.mxu0 0.0
    %1829 = vmatpush1.msra.mxu0 0.0
    %1830 = vmatprep.subr.mxu0 0.0
    %1831 = vmatpush1.msra.mxu0 0.0
    %1832 = vmatprep.subr.mxu0 0.0
    %1833 = vmatpush1.msra.mxu0 0.0
    %1834 = vmatprep.subr.mxu0 0.0
    %1835 = vmatpush1.msra.mxu0 0.0
    %1836 = vmatprep.subr.mxu0 0.0
    %1837 = vmatpush1.msra.mxu0 0.0
    %1838 = vmatprep.subr.mxu0 0.0
    %1839 = vmatpush1.msra.mxu0 0.0
    %1840 = vmatprep.subr.mxu0 0.0
    %1841 = vmatpush1.msra.mxu0 0.0
    %1842 = vmatprep.subr.mxu0 0.0
    %1843 = vmatpush1.msra.mxu0 0.0
    %1844 = vmatprep.subr.mxu0 0.0
    %1845 = vmatpush1.msra.mxu0 0.0
    %1846 = vmatprep.subr.mxu0 0.0
    %1847 = vmatpush1.msra.mxu0 0.0
    %1848 = vmatprep.subr.mxu0 0.0
    %1849 = vmatpush1.msra.mxu0 0.0
    %1850 = vmatprep.subr.mxu0 0.0
    %1851 = vmatpush1.msra.mxu0 0.0
    %1852 = vmatprep.subr.mxu0 0.0
    %1853 = vmatpush1.msra.mxu0 0.0
    %1854 = vmatprep.subr.mxu0 0.0
    %1855 = vmatpush1.msra.mxu0 0.0
    %1856 = vmatprep.subr.mxu0 0.0
    %1857 = vmatpush1.msra.mxu0 0.0
    %1858 = vmatprep.subr.mxu0 0.0
    %1859 = vmatpush1.msra.mxu0 0.0
    %1860 = vmatprep.subr.mxu0 0.0
    %1861 = vmatpush1.msra.mxu0 0.0
    %1862 = vmatprep.subr.mxu0 0.0
    %1863 = vmatpush1.msra.mxu0 0.0
    %1864 = vmatprep.subr.mxu0 0.0
    %1865 = vmatpush1.msra.mxu0 0.0
    %1866 = vmatprep.mubr.f32.mxu0 0.0
    %1867 = vmatmul.mubr.f32.gmra.mrb[0].mxu0 %v1800
    %v1868 = vpop.f32.mrb[0].mxu0
    %v1869 = vadd.f32 0.0, %v1868
    %v1870 = vpop.f32.mrb[0].mxu0
    %1871 = vdwg.mxu0
    %v1873 = vsel %vm1433, %v1431, 0
    %1875 = vmatprep.subr.mxu0 0.0
    %1876 = vmatpush1.msra.mxu0 %v93
    %1877 = vmatprep.subr.mxu0 0.0
    %1878 = vmatpush1.msra.mxu0 0.0
    %1879 = vmatprep.subr.mxu0 0.0
    %1880 = vmatpush1.msra.mxu0 0.0
    %1881 = vmatprep.subr.mxu0 0.0
    %1882 = vmatpush1.msra.mxu0 0.0
    %1883 = vmatprep.subr.mxu0 0.0
    %1884 = vmatpush1.msra.mxu0 0.0
    %1885 = vmatprep.subr.mxu0 0.0
    %1886 = vmatpush1.msra.mxu0 0.0
    %1887 = vmatprep.subr.mxu0 0.0
    %1888 = vmatpush1.msra.mxu0 0.0
    %1889 = vmatprep.subr.mxu0 0.0
    %1890 = vmatpush1.msra.mxu0 0.0
    %1891 = vmatprep.subr.mxu0 0.0
    %1892 = vmatpush1.msra.mxu0 0.0
    %1893 = vmatprep.subr.mxu0 0.0
    %1894 = vmatpush1.msra.mxu0 0.0
    %1895 = vmatprep.subr.mxu0 0.0
    %1896 = vmatpush1.msra.mxu0 0.0
    %1897 = vmatprep.subr.mxu0 0.0
    %1898 = vmatpush1.msra.mxu0 0.0
    %1899 = vmatprep.subr.mxu0 0.0
    %1900 = vmatpush1.msra.mxu0 0.0
    %1901 = vmatprep.subr.mxu0 0.0
    %1902 = vmatpush1.msra.mxu0 0.0
    %1903 = vmatprep.subr.mxu0 0.0
    %1904 = vmatpush1.msra.mxu0 0.0
    %1905 = vmatprep.subr.mxu0 0.0
    %1906 = vmatpush1.msra.mxu0 0.0
    %1907 = vmatprep.subr.mxu0 0.0
    %1908 = vmatpush1.msra.mxu0 0.0
    %1909 = vmatprep.subr.mxu0 0.0
    %1910 = vmatpush1.msra.mxu0 0.0
    %1911 = vmatprep.subr.mxu0 0.0
    %1912 = vmatpush1.msra.mxu0 0.0
    %1913 = vmatprep.subr.mxu0 0.0
    %1914 = vmatpush1.msra.mxu0 0.0
    %1915 = vmatprep.subr.mxu0 0.0
    %1916 = vmatpush1.msra.mxu0 0.0
    %1917 = vmatprep.subr.mxu0 0.0
    %1918 = vmatpush1.msra.mxu0 0.0
    %1919 = vmatprep.subr.mxu0 0.0
    %1920 = vmatpush1.msra.mxu0 0.0
    %1921 = vmatprep.subr.mxu0 0.0
    %1922 = vmatpush1.msra.mxu0 0.0
    %1923 = vmatprep.subr.mxu0 0.0
    %1924 = vmatpush1.msra.mxu0 0.0
    %1925 = vmatprep.subr.mxu0 0.0
    %1926 = vmatpush1.msra.mxu0 0.0
    %1927 = vmatprep.subr.mxu0 0.0
    %1928 = vmatpush1.msra.mxu0 0.0
    %1929 = vmatprep.subr.mxu0 0.0
    %1930 = vmatpush1.msra.mxu0 0.0
    %1931 = vmatprep.subr.mxu0 0.0
    %1932 = vmatpush1.msra.mxu0 0.0
    %1933 = vmatprep.subr.mxu0 0.0
    %1934 = vmatpush1.msra.mxu0 0.0
    %1935 = vmatprep.subr.mxu0 0.0
    %1936 = vmatpush1.msra.mxu0 0.0
    %1937 = vmatprep.subr.mxu0 0.0
    %1938 = vmatpush1.msra.mxu0 0.0
    %1939 = vmatprep.mubr.f32.mxu0 0.0
    %1940 = vmatmul.mubr.f32.gmra.mrb[0].mxu0 %v1873
    %v1941 = vpop.f32.mrb[0].mxu0
    %v1942 = vadd.f32 0.0, %v1941
    %v1943 = vpop.f32.mrb[0].mxu0
    %1944 = vdwg.mxu0
    %v1946 = vsel %vm1433, %v1432, 0
    %1948 = vmatprep.subr.mxu0 0.0
    %1949 = vmatpush1.msra.mxu0 %v94
    %1950 = vmatprep.subr.mxu0 0.0
    %1951 = vmatpush1.msra.mxu0 0.0
    %1952 = vmatprep.subr.mxu0 0.0
    %1953 = vmatpush1.msra.mxu0 0.0
    %1954 = vmatprep.subr.mxu0 0.0
    %1955 = vmatpush1.msra.mxu0 0.0
    %1956 = vmatprep.subr.mxu0 0.0
    %1957 = vmatpush1.msra.mxu0 0.0
    %1958 = vmatprep.subr.mxu0 0.0
    %1959 = vmatpush1.msra.mxu0 0.0
    %1960 = vmatprep.subr.mxu0 0.0
    %1961 = vmatpush1.msra.mxu0 0.0
    %1962 = vmatprep.subr.mxu0 0.0
    %1963 = vmatpush1.msra.mxu0 0.0
    %1964 = vmatprep.subr.mxu0 0.0
    %1965 = vmatpush1.msra.mxu0 0.0
    %1966 = vmatprep.subr.mxu0 0.0
    %1967 = vmatpush1.msra.mxu0 0.0
    %1968 = vmatprep.subr.mxu0 0.0
    %1969 = vmatpush1.msra.mxu0 0.0
    %1970 = vmatprep.subr.mxu0 0.0
    %1971 = vmatpush1.msra.mxu0 0.0
    %1972 = vmatprep.subr.mxu0 0.0
    %1973 = vmatpush1.msra.mxu0 0.0
    %1974 = vmatprep.subr.mxu0 0.0
    %1975 = vmatpush1.msra.mxu0 0.0
    %1976 = vmatprep.subr.mxu0 0.0
    %1977 = vmatpush1.msra.mxu0 0.0
    %1978 = vmatprep.subr.mxu0 0.0
    %1979 = vmatpush1.msra.mxu0 0.0
    %1980 = vmatprep.subr.mxu0 0.0
    %1981 = vmatpush1.msra.mxu0 0.0
    %1982 = vmatprep.subr.mxu0 0.0
    %1983 = vmatpush1.msra.mxu0 0.0
    %1984 = vmatprep.subr.mxu0 0.0
    %1985 = vmatpush1.msra.mxu0 0.0
    %1986 = vmatprep.subr.mxu0 0.0
    %1987 = vmatpush1.msra.mxu0 0.0
    %1988 = vmatprep.subr.mxu0 0.0
    %1989 = vmatpush1.msra.mxu0 0.0
    %1990 = vmatprep.subr.mxu0 0.0
    %1991 = vmatpush1.msra.mxu0 0.0
    %1992 = vmatprep.subr.mxu0 0.0
    %1993 = vmatpush1.msra.mxu0 0.0
    %1994 = vmatprep.subr.mxu0 0.0
    %1995 = vmatpush1.msra.mxu0 0.0
    %1996 = vmatprep.subr.mxu0 0.0
    %1997 = vmatpush1.msra.mxu0 0.0
    %1998 = vmatprep.subr.mxu0 0.0
    %1999 = vmatpush1.msra.mxu0 0.0
    %2000 = vmatprep.subr.mxu0 0.0
    %2001 = vmatpush1.msra.mxu0 0.0
    %2002 = vmatprep.subr.mxu0 0.0
    %2003 = vmatpush1.msra.mxu0 0.0
    %2004 = vmatprep.subr.mxu0 0.0
    %2005 = vmatpush1.msra.mxu0 0.0
    %2006 = vmatprep.subr.mxu0 0.0
    %2007 = vmatpush1.msra.mxu0 0.0
    %2008 = vmatprep.subr.mxu0 0.0
    %2009 = vmatpush1.msra.mxu0 0.0
    %2010 = vmatprep.subr.mxu0 0.0
    %2011 = vmatpush1.msra.mxu0 0.0
    %2012 = vmatprep.mubr.f32.mxu0 0.0
    %2013 = vmatmul.mubr.f32.gmra.mrb[0].mxu0 %v1946
    %v2014 = vpop.f32.mrb[0].mxu0
    %v2015 = vadd.f32 0.0, %v2014
    %v2016 = vpop.f32.mrb[0].mxu0
    %2017 = vdwg.mxu0
    %v2026 = vrot.slane %v1577, 7
    %v2027 = vsel %vm304, %v2026, %v1504
    %v2028 = vrot.slane %v1650, 6
    %v2029 = vsel %vm306, %v2028, %v2027
    %v2030 = vrot.slane %v1723, 5
    %v2031 = vsel %vm308, %v2030, %v2029
    %v2032 = vrot.slane %v1796, 4
    %v2033 = vsel %vm310, %v2032, %v2031
    %v2034 = vrot.slane %v1869, 3
    %v2035 = vsel %vm312, %v2034, %v2033
    %v2036 = vrot.slane %v1942, 2
    %v2037 = vsel %vm314, %v2036, %v2035
    %v2038 = vrot.slane %v2015, 1
    %v2039 = vsel %vm316, %v2038, %v2037
    %v2041 = vrot.slane %v1504, 1
    %v2042 = vsel %vm304, %v1577, %v2041
    %v2043 = vrot.slane %v1650, 7
    %v2044 = vsel %vm306, %v2043, %v2042
    %v2045 = vrot.slane %v1723, 6
    %v2046 = vsel %vm308, %v2045, %v2044
    %v2047 = vrot.slane %v1796, 5
    %v2048 = vsel %vm310, %v2047, %v2046
    %v2049 = vrot.slane %v1869, 4
    %v2050 = vsel %vm312, %v2049, %v2048
    %v2051 = vrot.slane %v1942, 3
    %v2052 = vsel %vm314, %v2051, %v2050
    %v2053 = vrot.slane %v2015, 2
    %v2054 = vsel %vm316, %v2053, %v2052
    %2055 = vrot.lane.b32.xlu0 %v2054, 32
    %v2056 = vpop.permute.xlu0 %2055
    %v2058 = vsel %vm228, %v2039, %v2056
    %v2059 = vld [vmem:[%s6] sm:$0xff]
    %v2060 = vld [vmem:[%s6 + $0x8] sm:$0xff]
    %v2061 = vld [vmem:[%s6 + $0x10] sm:$0xff]
    %v2062 = vld [vmem:[%s6 + $0x18] sm:$0xff]
    %v2063 = vld [vmem:[%s6 + $0x20] sm:$0xff]
    %v2064 = vld [vmem:[%s6 + $0x28] sm:$0xff]
    %v2065 = vld [vmem:[%s6 + $0x30] sm:$0xff]
    %v2066 = vld [vmem:[%s6 + $0x38] sm:$0xff]
    %v2067 = vld [vmem:[#allocation8] sm:$0x1]
    %v2069 = vlaneseq
    %v2070 = vshrl.u32 %v2069, 7
    %v2071 = vsub.s32 0, %v2070
    %v2072 = vrot.slane %v2067, %v2071
    %v2075 = vsel %vm639, %v2058, 0
    %2077 = vmatprep.subr.mxu0 0.0
    %2078 = vmatpush1.msra.mxu0 %v2059
    %2079 = vmatprep.subr.mxu0 0.0
    %2080 = vmatpush1.msra.mxu0 %v2060
    %2081 = vmatprep.subr.mxu0 0.0
    %2082 = vmatpush1.msra.mxu0 %v2061
    %2083 = vmatprep.subr.mxu0 0.0
    %2084 = vmatpush1.msra.mxu0 %v2062
    %2085 = vmatprep.subr.mxu0 0.0
    %2086 = vmatpush1.msra.mxu0 %v2063
    %2087 = vmatprep.subr.mxu0 0.0
    %2088 = vmatpush1.msra.mxu0 %v2064
    %2089 = vmatprep.subr.mxu0 0.0
    %2090 = vmatpush1.msra.mxu0 %v2065
    %2091 = vmatprep.subr.mxu0 0.0
    %2092 = vmatpush1.msra.mxu0 %v2066
    %2093 = vmatprep.subr.mxu0 0.0
    %2094 = vmatpush1.msra.mxu0 0.0
    %2095 = vmatprep.subr.mxu0 0.0
    %2096 = vmatpush1.msra.mxu0 0.0
    %2097 = vmatprep.subr.mxu0 0.0
    %2098 = vmatpush1.msra.mxu0 0.0
    %2099 = vmatprep.subr.mxu0 0.0
    %2100 = vmatpush1.msra.mxu0 0.0
    %2101 = vmatprep.subr.mxu0 0.0
    %2102 = vmatpush1.msra.mxu0 0.0
    %2103 = vmatprep.subr.mxu0 0.0
    %2104 = vmatpush1.msra.mxu0 0.0
    %2105 = vmatprep.subr.mxu0 0.0
    %2106 = vmatpush1.msra.mxu0 0.0
    %2107 = vmatprep.subr.mxu0 0.0
    %2108 = vmatpush1.msra.mxu0 0.0
    %2109 = vmatprep.subr.mxu0 0.0
    %2110 = vmatpush1.msra.mxu0 0.0
    %2111 = vmatprep.subr.mxu0 0.0
    %2112 = vmatpush1.msra.mxu0 0.0
    %2113 = vmatprep.subr.mxu0 0.0
    %2114 = vmatpush1.msra.mxu0 0.0
    %2115 = vmatprep.subr.mxu0 0.0
    %2116 = vmatpush1.msra.mxu0 0.0
    %2117 = vmatprep.subr.mxu0 0.0
    %2118 = vmatpush1.msra.mxu0 0.0
    %2119 = vmatprep.subr.mxu0 0.0
    %2120 = vmatpush1.msra.mxu0 0.0
    %2121 = vmatprep.subr.mxu0 0.0
    %2122 = vmatpush1.msra.mxu0 0.0
    %2123 = vmatprep.subr.mxu0 0.0
    %2124 = vmatpush1.msra.mxu0 0.0
    %2125 = vmatprep.subr.mxu0 0.0
    %2126 = vmatpush1.msra.mxu0 0.0
    %2127 = vmatprep.subr.mxu0 0.0
    %2128 = vmatpush1.msra.mxu0 0.0
    %2129 = vmatprep.subr.mxu0 0.0
    %2130 = vmatpush1.msra.mxu0 0.0
    %2131 = vmatprep.subr.mxu0 0.0
    %2132 = vmatpush1.msra.mxu0 0.0
    %2133 = vmatprep.subr.mxu0 0.0
    %2134 = vmatpush1.msra.mxu0 0.0
    %2135 = vmatprep.subr.mxu0 0.0
    %2136 = vmatpush1.msra.mxu0 0.0
    %2137 = vmatprep.subr.mxu0 0.0
    %2138 = vmatpush1.msra.mxu0 0.0
    %2139 = vmatprep.subr.mxu0 0.0
    %2140 = vmatpush1.msra.mxu0 0.0
    %2141 = vmatprep.mubr.f32.mxu0 0.0
    %2142 = vmatmul.mubr.f32.gmra.mrb[0].mxu0 %v2075
    %v2143 = vpop.f32.mrb[0].mxu0
    %v2144 = vadd.f32 %v2072, %v2143
    %v2145 = vpop.f32.mrb[0].mxu0
    %2146 = vdwg.mxu0
    %v2147 = vsel %vm228, %v2144, 0.0
    %2148 = vadd.xlane.f32.xlu0 %v2147
    %v2149 = vpop.xlane.xlu0 %2148
    %v2150 = vrcp.pop 32.0
    %v2151 = vmul.f32 %v2149, %v2150
    %v2152 = vsub.f32 %v2144, %v2151
    %v2153 = vmul.f32 %v2152, %v2152
    %v2154 = vsel %vm228, %v2153, 0.0
    %2155 = vadd.xlane.f32.xlu0 %v2154
    %v2156 = vpop.xlane.xlu0 %2155
    %v2157 = vmul.f32 %v2156, %v2150
    %v2158 = vadd.f32 %v2157, 1e-05
    %v2159 = vrsqrt.pop %v2158
    %v2160 = vmul.f32 %v2152, %v2159
    %v2161 = vld [vmem:[%s8] sm:$0xff]
    %v2162 = vld [vmem:[%s8 + $0x8] sm:$0xff]
    %v2163 = vld [vmem:[%s8 + $0x10] sm:$0xff]
    %v2164 = vld [vmem:[%s8 + $0x18] sm:$0xff]
    %v2165 = vld [vmem:[%s9] sm:$0x1]
    %v2167 = vlaneseq
    %v2168 = vshrl.u32 %v2167, 7
    %v2169 = vsub.s32 0, %v2168
    %v2170 = vrot.slane %v2165, %v2169
    %v2173 = vsel %vm228, %v2160, 0
    %2175 = vmatprep.subr.mxu0 0.0
    %2176 = vmatpush1.msra.mxu0 %v2161
    %2177 = vmatprep.subr.mxu0 0.0
    %2178 = vmatpush1.msra.mxu0 %v2162
    %2179 = vmatprep.subr.mxu0 0.0
    %2180 = vmatpush1.msra.mxu0 %v2163
    %2181 = vmatprep.subr.mxu0 0.0
    %2182 = vmatpush1.msra.mxu0 %v2164
    %2183 = vmatprep.subr.mxu0 0.0
    %2184 = vmatpush1.msra.mxu0 0.0
    %2185 = vmatprep.subr.mxu0 0.0
    %2186 = vmatpush1.msra.mxu0 0.0
    %2187 = vmatprep.subr.mxu0 0.0
    %2188 = vmatpush1.msra.mxu0 0.0
    %2189 = vmatprep.subr.mxu0 0.0
    %2190 = vmatpush1.msra.mxu0 0.0
    %2191 = vmatprep.subr.mxu0 0.0
    %2192 = vmatpush1.msra.mxu0 0.0
    %2193 = vmatprep.subr.mxu0 0.0
    %2194 = vmatpush1.msra.mxu0 0.0
    %2195 = vmatprep.subr.mxu0 0.0
    %2196 = vmatpush1.msra.mxu0 0.0
    %2197 = vmatprep.subr.mxu0 0.0
    %2198 = vmatpush1.msra.mxu0 0.0
    %2199 = vmatprep.subr.mxu0 0.0
    %2200 = vmatpush1.msra.mxu0 0.0
    %2201 = vmatprep.subr.mxu0 0.0
    %2202 = vmatpush1.msra.mxu0 0.0
    %2203 = vmatprep.subr.mxu0 0.0
    %2204 = vmatpush1.msra.mxu0 0.0
    %2205 = vmatprep.subr.mxu0 0.0
    %2206 = vmatpush1.msra.mxu0 0.0
    %2207 = vmatprep.subr.mxu0 0.0
    %2208 = vmatpush1.msra.mxu0 0.0
    %2209 = vmatprep.subr.mxu0 0.0
    %2210 = vmatpush1.msra.mxu0 0.0
    %2211 = vmatprep.subr.mxu0 0.0
    %2212 = vmatpush1.msra.mxu0 0.0
    %2213 = vmatprep.subr.mxu0 0.0
    %2214 = vmatpush1.msra.mxu0 0.0
    %2215 = vmatprep.subr.mxu0 0.0
    %2216 = vmatpush1.msra.mxu0 0.0
    %2217 = vmatprep.subr.mxu0 0.0
    %2218 = vmatpush1.msra.mxu0 0.0
    %2219 = vmatprep.subr.mxu0 0.0
    %2220 = vmatpush1.msra.mxu0 0.0
    %2221 = vmatprep.subr.mxu0 0.0
    %2222 = vmatpush1.msra.mxu0 0.0
    %2223 = vmatprep.subr.mxu0 0.0
    %2224 = vmatpush1.msra.mxu0 0.0
    %2225 = vmatprep.subr.mxu0 0.0
    %2226 = vmatpush1.msra.mxu0 0.0
    %2227 = vmatprep.subr.mxu0 0.0
    %2228 = vmatpush1.msra.mxu0 0.0
    %2229 = vmatprep.subr.mxu0 0.0
    %2230 = vmatpush1.msra.mxu0 0.0
    %2231 = vmatprep.subr.mxu0 0.0
    %2232 = vmatpush1.msra.mxu0 0.0
    %2233 = vmatprep.subr.mxu0 0.0
    %2234 = vmatpush1.msra.mxu0 0.0
    %2235 = vmatprep.subr.mxu0 0.0
    %2236 = vmatpush1.msra.mxu0 0.0
    %2237 = vmatprep.subr.mxu0 0.0
    %2238 = vmatpush1.msra.mxu0 0.0
    %2239 = vmatprep.mubr.f32.mxu0 0.0
    %2240 = vmatmul.mubr.f32.gmra.mrb[0].mxu0 %v2173
    %v2241 = vpop.f32.mrb[0].mxu0
    %v2242 = vadd.f32 %v2170, %v2241
    %v2243 = vpop.f32.mrb[0].mxu0
    %2244 = vdwg.mxu0
    %v2245 = vmax.f32 %v2242, 0.0
    %v2246 = vsel %vm228, %v2245, 0.0
    %2247 = vadd.xlane.f32.xlu0 %v2246
    %v2248 = vpop.xlane.xlu0 %2247
    %v2249 = vmul.f32 %v2248, %v2150
    %v2250 = vsub.f32 %v2245, %v2249
    %v2251 = vmul.f32 %v2250, %v2250
    %v2252 = vsel %vm228, %v2251, 0.0
    %2253 = vadd.xlane.f32.xlu0 %v2252
    %v2254 = vpop.xlane.xlu0 %2253
    %v2255 = vmul.f32 %v2254, %v2150
    %v2256 = vadd.f32 %v2255, 1e-05
    %v2257 = vrsqrt.pop %v2256
    %v2258 = vmul.f32 %v2250, %v2257
    %s2259 = scalar_lea.vmem %s8, 32
    %v2260 = vld [vmem:[%s2259] sm:$0xff]
    %v2261 = vld [vmem:[%s2259 + $0x8] sm:$0xff]
    %v2262 = vld [vmem:[%s2259 + $0x10] sm:$0xff]
    %v2263 = vld [vmem:[%s2259 + $0x18] sm:$0xff]
    %s2264 = scalar_lea.vmem %s9, 1
    %v2265 = vld [vmem:[%s2264] sm:$0x1]
    %v2267 = vlaneseq
    %v2268 = vshrl.u32 %v2267, 7
    %v2269 = vsub.s32 0, %v2268
    %v2270 = vrot.slane %v2265, %v2269
    %v2273 = vsel %vm228, %v2258, 0
    %2275 = vmatprep.subr.mxu0 0.0
    %2276 = vmatpush1.msra.mxu0 %v2260
    %2277 = vmatprep.subr.mxu0 0.0
    %2278 = vmatpush1.msra.mxu0 %v2261
    %2279 = vmatprep.subr.mxu0 0.0
    %2280 = vmatpush1.msra.mxu0 %v2262
    %2281 = vmatprep.subr.mxu0 0.0
    %2282 = vmatpush1.msra.mxu0 %v2263
    %2283 = vmatprep.subr.mxu0 0.0
    %2284 = vmatpush1.msra.mxu0 0.0
    %2285 = vmatprep.subr.mxu0 0.0
    %2286 = vmatpush1.msra.mxu0 0.0
    %2287 = vmatprep.subr.mxu0 0.0
    %2288 = vmatpush1.msra.mxu0 0.0
    %2289 = vmatprep.subr.mxu0 0.0
    %2290 = vmatpush1.msra.mxu0 0.0
    %2291 = vmatprep.subr.mxu0 0.0
    %2292 = vmatpush1.msra.mxu0 0.0
    %2293 = vmatprep.subr.mxu0 0.0
    %2294 = vmatpush1.msra.mxu0 0.0
    %2295 = vmatprep.subr.mxu0 0.0
    %2296 = vmatpush1.msra.mxu0 0.0
    %2297 = vmatprep.subr.mxu0 0.0
    %2298 = vmatpush1.msra.mxu0 0.0
    %2299 = vmatprep.subr.mxu0 0.0
    %2300 = vmatpush1.msra.mxu0 0.0
    %2301 = vmatprep.subr.mxu0 0.0
    %2302 = vmatpush1.msra.mxu0 0.0
    %2303 = vmatprep.subr.mxu0 0.0
    %2304 = vmatpush1.msra.mxu0 0.0
    %2305 = vmatprep.subr.mxu0 0.0
    %2306 = vmatpush1.msra.mxu0 0.0
    %2307 = vmatprep.subr.mxu0 0.0
    %2308 = vmatpush1.msra.mxu0 0.0
    %2309 = vmatprep.subr.mxu0 0.0
    %2310 = vmatpush1.msra.mxu0 0.0
    %2311 = vmatprep.subr.mxu0 0.0
    %2312 = vmatpush1.msra.mxu0 0.0
    %2313 = vmatprep.subr.mxu0 0.0
    %2314 = vmatpush1.msra.mxu0 0.0
    %2315 = vmatprep.subr.mxu0 0.0
    %2316 = vmatpush1.msra.mxu0 0.0
    %2317 = vmatprep.subr.mxu0 0.0
    %2318 = vmatpush1.msra.mxu0 0.0
    %2319 = vmatprep.subr.mxu0 0.0
    %2320 = vmatpush1.msra.mxu0 0.0
    %2321 = vmatprep.subr.mxu0 0.0
    %2322 = vmatpush1.msra.mxu0 0.0
    %2323 = vmatprep.subr.mxu0 0.0
    %2324 = vmatpush1.msra.mxu0 0.0
    %2325 = vmatprep.subr.mxu0 0.0
    %2326 = vmatpush1.msra.mxu0 0.0
    %2327 = vmatprep.subr.mxu0 0.0
    %2328 = vmatpush1.msra.mxu0 0.0
    %2329 = vmatprep.subr.mxu0 0.0
    %2330 = vmatpush1.msra.mxu0 0.0
    %2331 = vmatprep.subr.mxu0 0.0
    %2332 = vmatpush1.msra.mxu0 0.0
    %2333 = vmatprep.subr.mxu0 0.0
    %2334 = vmatpush1.msra.mxu0 0.0
    %2335 = vmatprep.subr.mxu0 0.0
    %2336 = vmatpush1.msra.mxu0 0.0
    %2337 = vmatprep.subr.mxu0 0.0
    %2338 = vmatpush1.msra.mxu0 0.0
    %2339 = vmatprep.mubr.f32.mxu0 0.0
    %2340 = vmatmul.mubr.f32.gmra.mrb[0].mxu0 %v2273
    %v2341 = vpop.f32.mrb[0].mxu0
    %v2342 = vadd.f32 %v2270, %v2341
    %v2343 = vpop.f32.mrb[0].mxu0
    %2344 = vdwg.mxu0
    %v2345 = vmax.f32 %v2342, 0.0
    %2346 = vst.msk [vmem:[#allocation10] sm:$0xff] %vm228, %v2345
    // Predicated region
    $region58: #{tpu_custom_call.1} parent=1 // pred_check
      _
    $region59: #{tpu_custom_call.1} parent=1 // pred_check_branch
      %2348 = sbr.rel (0) target = $region61
    $region60: #{tpu_custom_call.1} parent=1 // pred_region
      %s2350 = ssub.s32 128, 128
      %2351 = vsyncadd [#allocation4], %s2350
      %s2353 = sshll.u32 [#allocation10], 4
      %s2354 = int_to_ptr.vmem [resolvable:$true] %s2353
      %2356 = dma.vmem_to_hbm [thread:$0]  %s2354, 128, %s10, [#allocation4]
    $region61: #{tpu_custom_call.1} parent=1 // pred_fallthru
      _
    // Predicated region
    $region62: #{tpu_custom_call.1} parent=1 // pred_check
      _
    $region63: #{tpu_custom_call.1} parent=1 // pred_check_branch
      %2358 = sbr.rel (0) target = $region65
    $region64: #{tpu_custom_call.1} parent=1 // pred_region
      %2359 = dma.done [#allocation4], 128
    $region65: #{tpu_custom_call.1} parent=1 // pred_fallthru
      _
    %2360 = vsyncpa [#allocation3], 1
    %2361 = vsyncpa [#allocation6], 1
    %2362 = vsyncpa [#allocation9], 1
    %2363 = vsyncpa [#allocation4], 1

// kernel: tpu_custom_call.1
$region0: #{tpu_custom_call.1}
  #allocation0 [shape = 'u32[]', space=smem, size = 0x4, offset = 0x4, fixed_abs, tag = 'smem constant byte address 0x4 - core index']
  #allocation1 [shape = 'u32[144,128]{1,0:T(1,128)}', space=vmem, size = 0x12000, scoped, tag = 'internal scratch']
  %s0 = inlined_call_operand.vmem [shape: s32[8,1,1], index: 0, kind: input, shape index: {}]
  %s1 = inlined_call_operand.vmem [shape: f32[8,8,32], index: 1, kind: input, shape index: {}]
  %s2 = inlined_call_operand.hbm [shape: f32[32,64], index: 2, kind: input, shape index: {}]
  %s3 = inlined_call_operand.vmem [shape: f32[1,64], index: 3, kind: input, shape index: {}]
  %s4 = inlined_call_operand.hbm [shape: f32[32,64], index: 4, kind: input, shape index: {}]
  %s5 = inlined_call_operand.hbm [shape: f32[1,64], index: 5, kind: input, shape index: {}]
  %s6 = inlined_call_operand.vmem [shape: f32[64,32], index: 6, kind: input, shape index: {}]
  %s7 = inlined_call_operand.hbm [shape: f32[1,32], index: 7, kind: input, shape index: {}]
  %s8 = inlined_call_operand.vmem [shape: f32[2,32,32], index: 8, kind: input, shape index: {}]
  %s9 = inlined_call_operand.vmem [shape: f32[2,1,32], index: 9, kind: input, shape index: {}]
  %s10 = inlined_call_operand.hbm [shape: f32[8,32], index: 10, kind: output, shape index: {}]
  %s11 = sld [smem:[#allocation0]]
  $region66: #{tpu_custom_call.1} parent=0
    _
  %s13 = ssub.s32 1, %s11
  %s14 = scalar_select 0, %s13, %s11
  $region1: #{tpu_custom_call.1} parent=0
    #allocation2 [shape = 'u8[16384]{0}', space=vmem, size = 0x4000, scoped, tag = 'input window, operand 2, single buffered']
    #allocation3 [shape = 's32[1]{0}', space=sflag, size = 0x4, scoped, tag = 'scoped memory for tpu_custom_call.1']
    #allocation4 [shape = 's32[1]{0}', space=sflag, size = 0x4, scoped, tag = 'scoped memory for tpu_custom_call.1']
    #allocation5 [shape = 'u8[16384]{0}', space=vmem, size = 0x4000, scoped, tag = 'input window, operand 4, single buffered']
    #allocation6 [shape = 's32[1]{0}', space=sflag, size = 0x4, scoped, tag = 'scoped memory for tpu_custom_call.1']
    #allocation7 [shape = 'u8[512]{0}', space=vmem, size = 0x400, scoped, tag = 'input window, operand 5, single buffered']
    #allocation8 [shape = 'u8[512]{0}', space=vmem, size = 0x400, scoped, tag = 'input window, operand 7, single buffered']
    #allocation9 [shape = 's32[1]{0}', space=sflag, size = 0x4, scoped, tag = 'scoped memory for tpu_custom_call.1']
    #allocation10 [shape = 'u8[4096]{0}', space=vmem, size = 0x1000, scoped, tag = 'output window, operand 0, single buffered']
    %15 = vsyncpa [#allocation3], 0
    %16 = vsyncpa [#allocation6], 0
    %17 = vsyncpa [#allocation9], 0
    %18 = vsyncpa [#allocation4], 0
    // Predicated region
    $region2: #{tpu_custom_call.1} parent=1 // pred_check
      _
    $region3: #{tpu_custom_call.1} parent=1 // pred_check_branch
      %20 = sbr.rel (0) target = $region5
    $region4: #{tpu_custom_call.1} parent=1 // pred_region
      _
    $region5: #{tpu_custom_call.1} parent=1 // pred_fallthru
      _
    // Predicated region
    $region6: #{tpu_custom_call.1} parent=1 // pred_check
      _
    $region7: #{tpu_custom_call.1} parent=1 // pred_check_branch
      %22 = sbr.rel (0) target = $region9
    $region8: #{tpu_custom_call.1} parent=1 // pred_region
      _
    $region9: #{tpu_custom_call.1} parent=1 // pred_fallthru
      _
    // Predicated region
    $region10: #{tpu_custom_call.1} parent=1 // pred_check
      _
    $region11: #{tpu_custom_call.1} parent=1 // pred_check_branch
      %24 = sbr.rel (0) target = $region13
    $region12: #{tpu_custom_call.1} parent=1 // pred_region
      %s26 = ssub.s32 512, 512
      %27 = vsyncadd [#allocation3], %s26
      %s28 = sshll.u32 [#allocation2], 4
      %s29 = int_to_ptr.vmem [resolvable:$true] %s28
      %34 = dma.hbm_to_vmem [thread:$0]  %s2, 512, %s29, [#allocation3], 128, 128, 8
    $region13: #{tpu_custom_call.1} parent=1 // pred_fallthru
      _
    // Predicated region
    $region14: #{tpu_custom_call.1} parent=1 // pred_check
      _
    $region15: #{tpu_custom_call.1} parent=1 // pred_check_branch
      %36 = sbr.rel (0) target = $region17
    $region16: #{tpu_custom_call.1} parent=1 // pred_region
      _
    $region17: #{tpu_custom_call.1} parent=1 // pred_fallthru
      _
    // Predicated region
    $region18: #{tpu_custom_call.1} parent=1 // pred_check
      _
    $region19: #{tpu_custom_call.1} parent=1 // pred_check_branch
      %38 = sbr.rel (0) target = $region21
    $region20: #{tpu_custom_call.1} parent=1 // pred_region
      %s40 = ssub.s32 512, 512
      %41 = vsyncadd [#allocation6], %s40
      %s42 = sshll.u32 [#allocation5], 4
      %s43 = int_to_ptr.vmem [resolvable:$true] %s42
      %48 = dma.hbm_to_vmem [thread:$0]  %s4, 512, %s43, [#allocation6], 128, 128, 8
    $region21: #{tpu_custom_call.1} parent=1 // pred_fallthru
      _
    // Predicated region
    $region22: #{tpu_custom_call.1} parent=1 // pred_check
      _
    $region23: #{tpu_custom_call.1} parent=1 // pred_check_branch
      %50 = sbr.rel (0) target = $region25
    $region24: #{tpu_custom_call.1} parent=1 // pred_region
      %s52 = ssub.s32 16, 16
      %53 = vsyncadd [#allocation6], %s52
      %s55 = sshll.u32 [#allocation7], 4
      %s56 = int_to_ptr.vmem [resolvable:$true] %s55
      %58 = dma.hbm_to_vmem [thread:$0]  %s5, 16, %s56, [#allocation6]
    $region25: #{tpu_custom_call.1} parent=1 // pred_fallthru
      _
    // Predicated region
    $region26: #{tpu_custom_call.1} parent=1 // pred_check
      _
    $region27: #{tpu_custom_call.1} parent=1 // pred_check_branch
      %60 = sbr.rel (0) target = $region29
    $region28: #{tpu_custom_call.1} parent=1 // pred_region
      _
    $region29: #{tpu_custom_call.1} parent=1 // pred_fallthru
      _
    // Predicated region
    $region30: #{tpu_custom_call.1} parent=1 // pred_check
      _
    $region31: #{tpu_custom_call.1} parent=1 // pred_check_branch
      %62 = sbr.rel (0) target = $region33
    $region32: #{tpu_custom_call.1} parent=1 // pred_region
      %s64 = ssub.s32 16, 16
      %65 = vsyncadd [#allocation9], %s64
      %s67 = sshll.u32 [#allocation8], 4
      %s68 = int_to_ptr.vmem [resolvable:$true] %s67
      %70 = dma.hbm_to_vmem [thread:$0]  %s7, 16, %s68, [#allocation9]
    $region33: #{tpu_custom_call.1} parent=1 // pred_fallthru
      _
    // Predicated region
    $region34: #{tpu_custom_call.1} parent=1 // pred_check
      _
    $region35: #{tpu_custom_call.1} parent=1 // pred_check_branch
      %72 = sbr.rel (0) target = $region37
    $region36: #{tpu_custom_call.1} parent=1 // pred_region
      _
    $region37: #{tpu_custom_call.1} parent=1 // pred_fallthru
      _
    // Predicated region
    $region38: #{tpu_custom_call.1} parent=1 // pred_check
      _
    $region39: #{tpu_custom_call.1} parent=1 // pred_check_branch
      %74 = sbr.rel (0) target = $region41
    $region40: #{tpu_custom_call.1} parent=1 // pred_region
      _
    $region41: #{tpu_custom_call.1} parent=1 // pred_fallthru
      _
    // Predicated region
    $region42: #{tpu_custom_call.1} parent=1 // pred_check
      _
    $region43: #{tpu_custom_call.1} parent=1 // pred_check_branch
      %76 = sbr.rel (0) target = $region45
    $region44: #{tpu_custom_call.1} parent=1 // pred_region
      %77 = dma.done [#allocation3], 512
    $region45: #{tpu_custom_call.1} parent=1 // pred_fallthru
      _
    // Predicated region
    $region46: #{tpu_custom_call.1} parent=1 // pred_check
      _
    $region47: #{tpu_custom_call.1} parent=1 // pred_check_branch
      %79 = sbr.rel (0) target = $region49
    $region48: #{tpu_custom_call.1} parent=1 // pred_region
      %80 = dma.done [#allocation6], 512
    $region49: #{tpu_custom_call.1} parent=1 // pred_fallthru
      _
    // Predicated region
    $region50: #{tpu_custom_call.1} parent=1 // pred_check
      _
    $region51: #{tpu_custom_call.1} parent=1 // pred_check_branch
      %82 = sbr.rel (0) target = $region53
    $region52: #{tpu_custom_call.1} parent=1 // pred_region
      %83 = dma.done [#allocation6], 16
    $region53: #{tpu_custom_call.1} parent=1 // pred_fallthru
      _
    // Predicated region
    $region54: #{tpu_custom_call.1} parent=1 // pred_check
      _
    $region55: #{tpu_custom_call.1} parent=1 // pred_check_branch
      %85 = sbr.rel (0) target = $region57
    $region56: #{tpu_custom_call.1} parent=1 // pred_region
      %86 = dma.done [#allocation9], 16
    $region57: #{tpu_custom_call.1} parent=1 // pred_fallthru
      _
    %v87 = vld [vmem:[%s1] sm:$0xff]
    %v88 = vld [vmem:[%s1 + $0x8] sm:$0xff]
    %v89 = vld [vmem:[%s1 + $0x10] sm:$0xff]
    %v90 = vld [vmem:[%s1 + $0x18] sm:$0xff]
    %v91 = vld [vmem:[%s1 + $0x20] sm:$0xff]
    %v92 = vld [vmem:[%s1 + $0x28] sm:$0xff]
    %v93 = vld [vmem:[%s1 + $0x30] sm:$0xff]
    %v94 = vld [vmem:[%s1 + $0x38] sm:$0xff]
    %v95 = vld [vmem:[%s0] sm:$0x1]
    %v96 = vld [vmem:[%s0 + $0x1] sm:$0x1]
    %v97 = vld [vmem:[%s0 + $0x2] sm:$0x1]
    %v98 = vld [vmem:[%s0 + $0x3] sm:$0x1]
    %v99 = vld [vmem:[%s0 + $0x4] sm:$0x1]
    %v100 = vld [vmem:[%s0 + $0x5] sm:$0x1]
    %v101 = vld [vmem:[%s0 + $0x6] sm:$0x1]
    %v102 = vld [vmem:[%s0 + $0x7] sm:$0x1]
    %v103 = vlaneseq
    %v104 = vshrl.u32 %v103, 7
    %vm105 = vcmp.eq.s32.totalorder %v104, 0
    %v106 = vsel %vm105, 1, 0
    %v107 = vcvt.s32.f32 %v106
    %v108 = vsub.s32 %v95, 1
    %v109 = vsub.s32 %v96, 1
    %v110 = vsub.s32 %v97, 1
    %v111 = vsub.s32 %v98, 1
    %v112 = vsub.s32 %v99, 1
    %v113 = vsub.s32 %v100, 1
    %v114 = vsub.s32 %v101, 1
    %v115 = vsub.s32 %v102, 1
    %v116 = vlaneseq
    %v117 = vshrl.u32 %v116, 7
    %v118 = vsub.s32 0, %v117
    %v119 = vrot.slane %v108, %v118
    %v120 = vlaneseq
    %v121 = vshrl.u32 %v120, 7
    %v122 = vsub.s32 0, %v121
    %v123 = vrot.slane %v109, %v122
    %v124 = vlaneseq
    %v125 = vshrl.u32 %v124, 7
    %v126 = vsub.s32 0, %v125
    %v127 = vrot.slane %v110, %v126
    %v128 = vlaneseq
    %v129 = vshrl.u32 %v128, 7
    %v130 = vsub.s32 0, %v129
    %v131 = vrot.slane %v111, %v130
    %v132 = vlaneseq
    %v133 = vshrl.u32 %v132, 7
    %v134 = vsub.s32 0, %v133
    %v135 = vrot.slane %v112, %v134
    %v136 = vlaneseq
    %v137 = vshrl.u32 %v136, 7
    %v138 = vsub.s32 0, %v137
    %v139 = vrot.slane %v113, %v138
    %v140 = vlaneseq
    %v141 = vshrl.u32 %v140, 7
    %v142 = vsub.s32 0, %v141
    %v143 = vrot.slane %v114, %v142
    %v144 = vlaneseq
    %v145 = vshrl.u32 %v144, 7
    %v146 = vsub.s32 0, %v145
    %v147 = vrot.slane %v115, %v146
    %vm148 = vcmp.eq.s32.totalorder %v104, %v119
    %vm149 = vcmp.eq.s32.totalorder %v104, %v123
    %vm150 = vcmp.eq.s32.totalorder %v104, %v127
    %vm151 = vcmp.eq.s32.totalorder %v104, %v131
    %vm152 = vcmp.eq.s32.totalorder %v104, %v135
    %vm153 = vcmp.eq.s32.totalorder %v104, %v139
    %vm154 = vcmp.eq.s32.totalorder %v104, %v143
    %vm155 = vcmp.eq.s32.totalorder %v104, %v147
    %v156 = vsel %vm148, 1, 0
    %v157 = vsel %vm149, 1, 0
    %v158 = vsel %vm150, 1, 0
    %v159 = vsel %vm151, 1, 0
    %v160 = vsel %vm152, 1, 0
    %v161 = vsel %vm153, 1, 0
    %v162 = vsel %vm154, 1, 0
    %v163 = vsel %vm155, 1, 0
    %v164 = vcvt.s32.f32 %v156
    %v165 = vcvt.s32.f32 %v157
    %v166 = vcvt.s32.f32 %v158
    %v167 = vcvt.s32.f32 %v159
    %v168 = vcvt.s32.f32 %v160
    %v169 = vcvt.s32.f32 %v161
    %v170 = vcvt.s32.f32 %v162
    %v171 = vcvt.s32.f32 %v163
    %v172 = vadd.f32 %v107, %v164
    %v173 = vadd.f32 %v107, %v165
    %v174 = vadd.f32 %v107, %v166
    %v175 = vadd.f32 %v107, %v167
    %v176 = vadd.f32 %v107, %v168
    %v177 = vadd.f32 %v107, %v169
    %v178 = vadd.f32 %v107, %v170
    %v179 = vadd.f32 %v107, %v171
    %181 = vset.pattern.permute.xlu0 0
    %182 = vperm.xlu0 %181, %v172
    %v183 = vpop.permute.xlu0 %182
    %186 = vset.pattern.permute.xlu0 0
    %187 = vperm.xlu0 %186, %v173
    %v188 = vpop.permute.xlu0 %187
    %191 = vset.pattern.permute.xlu0 0
    %192 = vperm.xlu0 %191, %v174
    %v193 = vpop.permute.xlu0 %192
    %196 = vset.pattern.permute.xlu0 0
    %197 = vperm.xlu0 %196, %v175
    %v198 = vpop.permute.xlu0 %197
    %201 = vset.pattern.permute.xlu0 0
    %202 = vperm.xlu0 %201, %v176
    %v203 = vpop.permute.xlu0 %202
    %206 = vset.pattern.permute.xlu0 0
    %207 = vperm.xlu0 %206, %v177
    %v208 = vpop.permute.xlu0 %207
    %211 = vset.pattern.permute.xlu0 0
    %212 = vperm.xlu0 %211, %v178
    %v213 = vpop.permute.xlu0 %212
    %216 = vset.pattern.permute.xlu0 0
    %217 = vperm.xlu0 %216, %v179
    %v218 = vpop.permute.xlu0 %217
    %v220 = vmul.f32 %v87, %v183
    %v221 = vmul.f32 %v88, %v188
    %v222 = vmul.f32 %v89, %v193
    %v223 = vmul.f32 %v90, %v198
    %v224 = vmul.f32 %v91, %v203
    %v225 = vmul.f32 %v92, %v208
    %v226 = vmul.f32 %v93, %v213
    %v227 = vmul.f32 %v94, %v218
    %vm228 = vcmask 261120
    %v229 = vsel %vm228, %v220, 0.0
    %v230 = vrot.slane %v229, 4
    %v231 = vadd.f32 %v229, %v230
    %v232 = vrot.slane %v231, 2
    %v233 = vadd.f32 %v231, %v232
    %v234 = vrot.slane %v233, 1
    %v235 = vadd.f32 %v233, %v234
    %v236 = vsel %vm228, %v221, 0.0
    %v237 = vrot.slane %v236, 4
    %v238 = vadd.f32 %v236, %v237
    %v239 = vrot.slane %v238, 2
    %v240 = vadd.f32 %v238, %v239
    %v241 = vrot.slane %v240, 1
    %v242 = vadd.f32 %v240, %v241
    %v243 = vsel %vm228, %v222, 0.0
    %v244 = vrot.slane %v243, 4
    %v245 = vadd.f32 %v243, %v244
    %v246 = vrot.slane %v245, 2
    %v247 = vadd.f32 %v245, %v246
    %v248 = vrot.slane %v247, 1
    %v249 = vadd.f32 %v247, %v248
    %v250 = vsel %vm228, %v223, 0.0
    %v251 = vrot.slane %v250, 4
    %v252 = vadd.f32 %v250, %v251
    %v253 = vrot.slane %v252, 2
    %v254 = vadd.f32 %v252, %v253
    %v255 = vrot.slane %v254, 1
    %v256 = vadd.f32 %v254, %v255
    %v257 = vsel %vm228, %v224, 0.0
    %v258 = vrot.slane %v257, 4
    %v259 = vadd.f32 %v257, %v258
    %v260 = vrot.slane %v259, 2
    %v261 = vadd.f32 %v259, %v260
    %v262 = vrot.slane %v261, 1
    %v263 = vadd.f32 %v261, %v262
    %v264 = vsel %vm228, %v225, 0.0
    %v265 = vrot.slane %v264, 4
    %v266 = vadd.f32 %v264, %v265
    %v267 = vrot.slane %v266, 2
    %v268 = vadd.f32 %v266, %v267
    %v269 = vrot.slane %v268, 1
    %v270 = vadd.f32 %v268, %v269
    %v271 = vsel %vm228, %v226, 0.0
    %v272 = vrot.slane %v271, 4
    %v273 = vadd.f32 %v271, %v272
    %v274 = vrot.slane %v273, 2
    %v275 = vadd.f32 %v273, %v274
    %v276 = vrot.slane %v275, 1
    %v277 = vadd.f32 %v275, %v276
    %v278 = vsel %vm228, %v227, 0.0
    %v279 = vrot.slane %v278, 4
    %v280 = vadd.f32 %v278, %v279
    %v281 = vrot.slane %v280, 2
    %v282 = vadd.f32 %v280, %v281
    %v283 = vrot.slane %v282, 1
    %v284 = vadd.f32 %v282, %v283
    %v285 = vld [vmem:[#allocation2] sm:$0xff]
    %v286 = vld [vmem:[#allocation2 + $0x8] sm:$0xff]
    %v287 = vld [vmem:[#allocation2 + $0x10] sm:$0xff]
    %v288 = vld [vmem:[#allocation2 + $0x18] sm:$0xff]
    %v289 = vld [vmem:[%s3] sm:$0x1]
    %v291 = vlaneseq
    %v292 = vshrl.u32 %v291, 7
    %v293 = vsub.s32 0, %v292
    %v294 = vrot.slane %v289, %v293
    %vm304 = vcmask 1041409
    %v305 = vsel %vm304, %v242, %v235
    %vm306 = vcmask 1042434
    %v307 = vsel %vm306, %v249, %v305
    %vm308 = vcmask 1043459
    %v309 = vsel %vm308, %v256, %v307
    %vm310 = vcmask 1044484
    %v311 = vsel %vm310, %v263, %v309
    %vm312 = vcmask 1045509
    %v313 = vsel %vm312, %v270, %v311
    %vm314 = vcmask 1046534
    %v315 = vsel %vm314, %v277, %v313
    %vm316 = vcmask 1047559
    %v317 = vsel %vm316, %v284, %v315
    %v318 = vsel %vm228, %v317, 0
    %320 = vmatprep.subr.mxu0 0.0
    %321 = vmatpush1.msra.mxu0 %v285
    %322 = vmatprep.subr.mxu0 0.0
    %323 = vmatpush1.msra.mxu0 %v286
    %324 = vmatprep.subr.mxu0 0.0
    %325 = vmatpush1.msra.mxu0 %v287
    %326 = vmatprep.subr.mxu0 0.0
    %327 = vmatpush1.msra.mxu0 %v288
    %328 = vmatprep.subr.mxu0 0.0
    %329 = vmatpush1.msra.mxu0 0.0
    %330 = vmatprep.subr.mxu0 0.0
    %331 = vmatpush1.msra.mxu0 0.0
    %332 = vmatprep.subr.mxu0 0.0
    %333 = vmatpush1.msra.mxu0 0.0
    %334 = vmatprep.subr.mxu0 0.0
    %335 = vmatpush1.msra.mxu0 0.0
    %336 = vmatprep.subr.mxu0 0.0
    %337 = vmatpush1.msra.mxu0 0.0
    %338 = vmatprep.subr.mxu0 0.0
    %339 = vmatpush1.msra.mxu0 0.0
    %340 = vmatprep.subr.mxu0 0.0
    %341 = vmatpush1.msra.mxu0 0.0
    %342 = vmatprep.subr.mxu0 0.0
    %343 = vmatpush1.msra.mxu0 0.0
    %344 = vmatprep.subr.mxu0 0.0
    %345 = vmatpush1.msra.mxu0 0.0
    %346 = vmatprep.subr.mxu0 0.0
    %347 = vmatpush1.msra.mxu0 0.0
    %348 = vmatprep.subr.mxu0 0.0
    %349 = vmatpush1.msra.mxu0 0.0
    %350 = vmatprep.subr.mxu0 0.0
    %351 = vmatpush1.msra.mxu0 0.0
    %352 = vmatprep.subr.mxu0 0.0
    %353 = vmatpush1.msra.mxu0 0.0
    %354 = vmatprep.subr.mxu0 0.0
    %355 = vmatpush1.msra.mxu0 0.0
    %356 = vmatprep.subr.mxu0 0.0
    %357 = vmatpush1.msra.mxu0 0.0
    %358 = vmatprep.subr.mxu0 0.0
    %359 = vmatpush1.msra.mxu0 0.0
    %360 = vmatprep.subr.mxu0 0.0
    %361 = vmatpush1.msra.mxu0 0.0
    %362 = vmatprep.subr.mxu0 0.0
    %363 = vmatpush1.msra.mxu0 0.0
    %364 = vmatprep.subr.mxu0 0.0
    %365 = vmatpush1.msra.mxu0 0.0
    %366 = vmatprep.subr.mxu0 0.0
    %367 = vmatpush1.msra.mxu0 0.0
    %368 = vmatprep.subr.mxu0 0.0
    %369 = vmatpush1.msra.mxu0 0.0
    %370 = vmatprep.subr.mxu0 0.0
    %371 = vmatpush1.msra.mxu0 0.0
    %372 = vmatprep.subr.mxu0 0.0
    %373 = vmatpush1.msra.mxu0 0.0
    %374 = vmatprep.subr.mxu0 0.0
    %375 = vmatpush1.msra.mxu0 0.0
    %376 = vmatprep.subr.mxu0 0.0
    %377 = vmatpush1.msra.mxu0 0.0
    %378 = vmatprep.subr.mxu0 0.0
    %379 = vmatpush1.msra.mxu0 0.0
    %380 = vmatprep.subr.mxu0 0.0
    %381 = vmatpush1.msra.mxu0 0.0
    %382 = vmatprep.subr.mxu0 0.0
    %383 = vmatpush1.msra.mxu0 0.0
    %384 = vmatprep.mubr.f32.mxu0 0.0
    %385 = vmatmul.mubr.f32.gmra.mrb[0].mxu0 %v318
    %v386 = vpop.f32.mrb[0].mxu0
    %v387 = vadd.f32 %v294, %v386
    %v388 = vpop.f32.mrb[0].mxu0
    %389 = vdwg.mxu0
    %v390 = vmul.f32 %v387, 0.17677669
    %v391 = vld [vmem:[#allocation5] sm:$0xff]
    %v392 = vld [vmem:[#allocation5 + $0x8] sm:$0xff]
    %v393 = vld [vmem:[#allocation5 + $0x10] sm:$0xff]
    %v394 = vld [vmem:[#allocation5 + $0x18] sm:$0xff]
    %v395 = vld [vmem:[#allocation7] sm:$0x1]
    %v397 = vlaneseq
    %v398 = vshrl.u32 %v397, 7
    %v399 = vsub.s32 0, %v398
    %v400 = vrot.slane %v395, %v399
    %v403 = vsel %vm228, %v87, 0
    %v406 = vsel %vm228, %v88, 0
    %v409 = vsel %vm228, %v89, 0
    %v412 = vsel %vm228, %v90, 0
    %v415 = vsel %vm228, %v91, 0
    %v418 = vsel %vm228, %v92, 0
    %v421 = vsel %vm228, %v93, 0
    %v424 = vsel %vm228, %v94, 0
    %426 = vmatprep.subr.mxu0 0.0
    %427 = vmatpush1.msra.mxu0 %v391
    %428 = vmatprep.subr.mxu0 0.0
    %429 = vmatpush1.msra.mxu0 %v392
    %430 = vmatprep.subr.mxu0 0.0
    %431 = vmatpush1.msra.mxu0 %v393
    %432 = vmatprep.subr.mxu0 0.0
    %433 = vmatpush1.msra.mxu0 %v394
    %434 = vmatprep.subr.mxu0 0.0
    %435 = vmatpush1.msra.mxu0 0.0
    %436 = vmatprep.subr.mxu0 0.0
    %437 = vmatpush1.msra.mxu0 0.0
    %438 = vmatprep.subr.mxu0 0.0
    %439 = vmatpush1.msra.mxu0 0.0
    %440 = vmatprep.subr.mxu0 0.0
    %441 = vmatpush1.msra.mxu0 0.0
    %442 = vmatprep.subr.mxu0 0.0
    %443 = vmatpush1.msra.mxu0 0.0
    %444 = vmatprep.subr.mxu0 0.0
    %445 = vmatpush1.msra.mxu0 0.0
    %446 = vmatprep.subr.mxu0 0.0
    %447 = vmatpush1.msra.mxu0 0.0
    %448 = vmatprep.subr.mxu0 0.0
    %449 = vmatpush1.msra.mxu0 0.0
    %450 = vmatprep.subr.mxu0 0.0
    %451 = vmatpush1.msra.mxu0 0.0
    %452 = vmatprep.subr.mxu0 0.0
    %453 = vmatpush1.msra.mxu0 0.0
    %454 = vmatprep.subr.mxu0 0.0
    %455 = vmatpush1.msra.mxu0 0.0
    %456 = vmatprep.subr.mxu0 0.0
    %457 = vmatpush1.msra.mxu0 0.0
    %458 = vmatprep.subr.mxu0 0.0
    %459 = vmatpush1.msra.mxu0 0.0
    %460 = vmatprep.subr.mxu0 0.0
    %461 = vmatpush1.msra.mxu0 0.0
    %462 = vmatprep.subr.mxu0 0.0
    %463 = vmatpush1.msra.mxu0 0.0
    %464 = vmatprep.subr.mxu0 0.0
    %465 = vmatpush1.msra.mxu0 0.0
    %466 = vmatprep.subr.mxu0 0.0
    %467 = vmatpush1.msra.mxu0 0.0
    %468 = vmatprep.subr.mxu0 0.0
    %469 = vmatpush1.msra.mxu0 0.0
    %470 = vmatprep.subr.mxu0 0.0
    %471 = vmatpush1.msra.mxu0 0.0
    %472 = vmatprep.subr.mxu0 0.0
    %473 = vmatpush1.msra.mxu0 0.0
    %474 = vmatprep.subr.mxu0 0.0
    %475 = vmatpush1.msra.mxu0 0.0
    %476 = vmatprep.subr.mxu0 0.0
    %477 = vmatpush1.msra.mxu0 0.0
    %478 = vmatprep.subr.mxu0 0.0
    %479 = vmatpush1.msra.mxu0 0.0
    %480 = vmatprep.subr.mxu0 0.0
    %481 = vmatpush1.msra.mxu0 0.0
    %482 = vmatprep.subr.mxu0 0.0
    %483 = vmatpush1.msra.mxu0 0.0
    %484 = vmatprep.subr.mxu0 0.0
    %485 = vmatpush1.msra.mxu0 0.0
    %486 = vmatprep.subr.mxu0 0.0
    %487 = vmatpush1.msra.mxu0 0.0
    %488 = vmatprep.subr.mxu0 0.0
    %489 = vmatpush1.msra.mxu0 0.0
    %490 = vmatprep.mubr.f32.mxu0 0.0
    %491 = vmatmul.mubr.f32.gmra.mrb[0].mxu0 %v403
    %v492 = vpop.f32.mrb[0].mxu0
    %v493 = vadd.f32 %v400, %v492
    %v494 = vpop.f32.mrb[0].mxu0
    %495 = vmatprep.mubr.f32.mxu0 0.0
    %496 = vmatmul.mubr.f32.gmra.mrb[0].mxu0 %v406
    %v497 = vpop.f32.mrb[0].mxu0
    %v498 = vadd.f32 %v400, %v497
    %v499 = vpop.f32.mrb[0].mxu0
    %500 = vmatprep.mubr.f32.mxu0 0.0
    %501 = vmatmul.mubr.f32.gmra.mrb[0].mxu0 %v409
    %v502 = vpop.f32.mrb[0].mxu0
    %v503 = vadd.f32 %v400, %v502
    %v504 = vpop.f32.mrb[0].mxu0
    %505 = vmatprep.mubr.f32.mxu0 0.0
    %506 = vmatmul.mubr.f32.gmra.mrb[0].mxu0 %v412
    %v507 = vpop.f32.mrb[0].mxu0
    %v508 = vadd.f32 %v400, %v507
    %v509 = vpop.f32.mrb[0].mxu0
    %510 = vmatprep.mubr.f32.mxu0 0.0
    %511 = vmatmul.mubr.f32.gmra.mrb[0].mxu0 %v415
    %v512 = vpop.f32.mrb[0].mxu0
    %v513 = vadd.f32 %v400, %v512
    %v514 = vpop.f32.mrb[0].mxu0
    %515 = vmatprep.mubr.f32.mxu0 0.0
    %516 = vmatmul.mubr.f32.gmra.mrb[0].mxu0 %v418
    %v517 = vpop.f32.mrb[0].mxu0
    %v518 = vadd.f32 %v400, %v517
    %v519 = vpop.f32.mrb[0].mxu0
    %520 = vmatprep.mubr.f32.mxu0 0.0
    %521 = vmatmul.mubr.f32.gmra.mrb[0].mxu0 %v421
    %v522 = vpop.f32.mrb[0].mxu0
    %v523 = vadd.f32 %v400, %v522
    %v524 = vpop.f32.mrb[0].mxu0
    %525 = vmatprep.mubr.f32.mxu0 0.0
    %526 = vmatmul.mubr.f32.gmra.mrb[0].mxu0 %v424
    %v527 = vpop.f32.mrb[0].mxu0
    %v528 = vadd.f32 %v400, %v527
    %v529 = vpop.f32.mrb[0].mxu0
    %530 = vdwg.mxu0
    %v531 = vlaneseq
    %v532 = vand.u32 %v531, 127
    %v533 = vmul.u32 %v104, 32
    %vm534 = vcmp.ge.s32.totalorder %v532, %v533
    %v535 = vadd.s32 %v104, 1
    %v536 = vmul.u32 %v535, 32
    %vm537 = vcmp.lt.s32.totalorder %v532, %v536
    %vm538 = vmand %vm534, %vm537
    %v539 = vsel %vm538, 1, 0
    %v540 = vcvt.s32.f32 %v539
    %v542 = vcombine.high %v390, %v390
    %v544 = vunpack.c.l.s4 1966171168
    %v545 = vunpack.c.0.s8 %v544
    %v546 = vlaneseq
    %v547 = vshrl.u32 %v546, 7
    %v548 = vsub.s32 %v545, %v547
    %v549 = vrot.slane %v390, %v548
    %v551 = vunpack.c.l.s4 1966171168
    %v552 = vunpack.c.0.s8 %v551
    %v553 = vlaneseq
    %v554 = vshrl.u32 %v553, 7
    %v555 = vsub.s32 %v552, %v554
    %v556 = vrot.slane %v542, %v555
    %v557 = vcombine.high %v549, %v549
    %v558 = vcombine.high %v556, %v556
    %v560 = vunpack.c.l.s4 1966171168
    %v561 = vunpack.c.0.s8 %v560
    %v562 = vlaneseq
    %v563 = vshrl.u32 %v562, 7
    %v564 = vsub.s32 %v561, %v563
    %v565 = vrot.slane %v549, %v564
    %v567 = vunpack.c.l.s4 1966171168
    %v568 = vunpack.c.0.s8 %v567
    %v569 = vlaneseq
    %v570 = vshrl.u32 %v569, 7
    %v571 = vsub.s32 %v568, %v570
    %v572 = vrot.slane %v556, %v571
    %v574 = vunpack.c.l.s4 1966171168
    %v575 = vunpack.c.0.s8 %v574
    %v576 = vlaneseq
    %v577 = vshrl.u32 %v576, 7
    %v578 = vsub.s32 %v575, %v577
    %v579 = vrot.slane %v557, %v578
    %v581 = vunpack.c.l.s4 1966171168
    %v582 = vunpack.c.0.s8 %v581
    %v583 = vlaneseq
    %v584 = vshrl.u32 %v583, 7
    %v585 = vsub.s32 %v582, %v584
    %v586 = vrot.slane %v558, %v585
    %v587 = vcombine.high %v565, %v565
    %v588 = vcombine.high %v572, %v572
    %v589 = vcombine.high %v579, %v579
    %v590 = vcombine.high %v586, %v586
    %v591 = vlaneseq
    %v592 = vshrl.u32 %v591, 7
    %v593 = vsub.s32 0, %v592
    %v594 = vrot.slane %v565, %v593
    %v595 = vlaneseq
    %v596 = vshrl.u32 %v595, 7
    %v597 = vsub.s32 0, %v596
    %v598 = vrot.slane %v579, %v597
    %v599 = vlaneseq
    %v600 = vshrl.u32 %v599, 7
    %v601 = vsub.s32 0, %v600
    %v602 = vrot.slane %v587, %v601
    %v603 = vlaneseq
    %v604 = vshrl.u32 %v603, 7
    %v605 = vsub.s32 0, %v604
    %v606 = vrot.slane %v589, %v605
    %v607 = vlaneseq
    %v608 = vshrl.u32 %v607, 7
    %v609 = vsub.s32 0, %v608
    %v610 = vrot.slane %v572, %v609
    %v611 = vlaneseq
    %v612 = vshrl.u32 %v611, 7
    %v613 = vsub.s32 0, %v612
    %v614 = vrot.slane %v586, %v613
    %v615 = vlaneseq
    %v616 = vshrl.u32 %v615, 7
    %v617 = vsub.s32 0, %v616
    %v618 = vrot.slane %v588, %v617
    %v619 = vlaneseq
    %v620 = vshrl.u32 %v619, 7
    %v621 = vsub.s32 0, %v620
    %v622 = vrot.slane %v590, %v621
    %v631 = vmul.f32 %v594, %v540
    %v632 = vmul.f32 %v598, %v540
    %v633 = vmul.f32 %v602, %v540
    %v634 = vmul.f32 %v606, %v540
    %v635 = vmul.f32 %v610, %v540
    %v636 = vmul.f32 %v614, %v540
    %v637 = vmul.f32 %v618, %v540
    %v638 = vmul.f32 %v622, %v540
    %vm639 = vcmask 523264
    %v641 = vsel %vm639, %v631, 0
    %v644 = vsel %vm639, %v493, 0
    %646 = vmatprep.subr.mxu0 0.0
    %647 = vmatpush1.xpose.msra.mxu0 %v644
    %648 = vmatprep.subr.mxu0 0.0
    %649 = vmatpush1.xpose.msra.mxu0 0.0
    %650 = vmatprep.subr.mxu0 0.0
    %651 = vmatpush1.xpose.msra.mxu0 0.0
    %652 = vmatprep.subr.mxu0 0.0
    %653 = vmatpush1.xpose.msra.mxu0 0.0
    %654 = vmatprep.subr.mxu0 0.0
    %655 = vmatpush1.xpose.msra.mxu0 0.0
    %656 = vmatprep.subr.mxu0 0.0
    %657 = vmatpush1.xpose.msra.mxu0 0.0
    %658 = vmatprep.subr.mxu0 0.0
    %659 = vmatpush1.xpose.msra.mxu0 0.0
    %660 = vmatprep.subr.mxu0 0.0
    %661 = vmatpush1.xpose.msra.mxu0 0.0
    %662 = vmatprep.subr.mxu0 0.0
    %663 = vmatpush1.xpose.msra.mxu0 0.0
    %664 = vmatprep.subr.mxu0 0.0
    %665 = vmatpush1.xpose.msra.mxu0 0.0
    %666 = vmatprep.subr.mxu0 0.0
    %667 = vmatpush1.xpose.msra.mxu0 0.0
    %668 = vmatprep.subr.mxu0 0.0
    %669 = vmatpush1.xpose.msra.mxu0 0.0
    %670 = vmatprep.subr.mxu0 0.0
    %671 = vmatpush1.xpose.msra.mxu0 0.0
    %672 = vmatprep.subr.mxu0 0.0
    %673 = vmatpush1.xpose.msra.mxu0 0.0
    %674 = vmatprep.subr.mxu0 0.0
    %675 = vmatpush1.xpose.msra.mxu0 0.0
    %676 = vmatprep.subr.mxu0 0.0
    %677 = vmatpush1.xpose.msra.mxu0 0.0
    %678 = vmatprep.subr.mxu0 0.0
    %679 = vmatpush1.xpose.msra.mxu0 0.0
    %680 = vmatprep.subr.mxu0 0.0
    %681 = vmatpush1.xpose.msra.mxu0 0.0
    %682 = vmatprep.subr.mxu0 0.0
    %683 = vmatpush1.xpose.msra.mxu0 0.0
    %684 = vmatprep.subr.mxu0 0.0
    %685 = vmatpush1.xpose.msra.mxu0 0.0
    %686 = vmatprep.subr.mxu0 0.0
    %687 = vmatpush1.xpose.msra.mxu0 0.0
    %688 = vmatprep.subr.mxu0 0.0
    %689 = vmatpush1.xpose.msra.mxu0 0.0
    %690 = vmatprep.subr.mxu0 0.0
    %691 = vmatpush1.xpose.msra.mxu0 0.0
    %692 = vmatprep.subr.mxu0 0.0
    %693 = vmatpush1.xpose.msra.mxu0 0.0
    %694 = vmatprep.subr.mxu0 0.0
    %695 = vmatpush1.xpose.msra.mxu0 0.0
    %696 = vmatprep.subr.mxu0 0.0
    %697 = vmatpush1.xpose.msra.mxu0 0.0
    %698 = vmatprep.subr.mxu0 0.0
    %699 = vmatpush1.xpose.msra.mxu0 0.0
    %700 = vmatprep.subr.mxu0 0.0
    %701 = vmatpush1.xpose.msra.mxu0 0.0
    %702 = vmatprep.subr.mxu0 0.0
    %703 = vmatpush1.xpose.msra.mxu0 0.0
    %704 = vmatprep.subr.mxu0 0.0
    %705 = vmatpush1.xpose.msra.mxu0 0.0
    %706 = vmatprep.subr.mxu0 0.0
    %707 = vmatpush1.xpose.msra.mxu0 0.0
    %708 = vmatprep.subr.mxu0 0.0
    %709 = vmatpush1.xpose.msra.mxu0 0.0
    %710 = vmatprep.mubr.f32.mxu0 0.0
    %711 = vmatmul.mubr.f32.gmra.mrb[0].mxu0 %v641
    %v712 = vpop.f32.mrb[0].mxu0
    %v713 = vadd.f32 0.0, %v712
    %v714 = vpop.f32.mrb[0].mxu0
    %715 = vdwg.mxu0
    %v717 = vsel %vm639, %v632, 0
    %v720 = vsel %vm639, %v498, 0
    %722 = vmatprep.subr.mxu0 0.0
    %723 = vmatpush1.xpose.msra.mxu0 %v720
    %724 = vmatprep.subr.mxu0 0.0
    %725 = vmatpush1.xpose.msra.mxu0 0.0
    %726 = vmatprep.subr.mxu0 0.0
    %727 = vmatpush1.xpose.msra.mxu0 0.0
    %728 = vmatprep.subr.mxu0 0.0
    %729 = vmatpush1.xpose.msra.mxu0 0.0
    %730 = vmatprep.subr.mxu0 0.0
    %731 = vmatpush1.xpose.msra.mxu0 0.0
    %732 = vmatprep.subr.mxu0 0.0
    %733 = vmatpush1.xpose.msra.mxu0 0.0
    %734 = vmatprep.subr.mxu0 0.0
    %735 = vmatpush1.xpose.msra.mxu0 0.0
    %736 = vmatprep.subr.mxu0 0.0
    %737 = vmatpush1.xpose.msra.mxu0 0.0
    %738 = vmatprep.subr.mxu0 0.0
    %739 = vmatpush1.xpose.msra.mxu0 0.0
    %740 = vmatprep.subr.mxu0 0.0
    %741 = vmatpush1.xpose.msra.mxu0 0.0
    %742 = vmatprep.subr.mxu0 0.0
    %743 = vmatpush1.xpose.msra.mxu0 0.0
    %744 = vmatprep.subr.mxu0 0.0
    %745 = vmatpush1.xpose.msra.mxu0 0.0
    %746 = vmatprep.subr.mxu0 0.0
    %747 = vmatpush1.xpose.msra.mxu0 0.0
    %748 = vmatprep.subr.mxu0 0.0
    %749 = vmatpush1.xpose.msra.mxu0 0.0
    %750 = vmatprep.subr.mxu0 0.0
    %751 = vmatpush1.xpose.msra.mxu0 0.0
    %752 = vmatprep.subr.mxu0 0.0
    %753 = vmatpush1.xpose.msra.mxu0 0.0
    %754 = vmatprep.subr.mxu0 0.0
    %755 = vmatpush1.xpose.msra.mxu0 0.0
    %756 = vmatprep.subr.mxu0 0.0
    %757 = vmatpush1.xpose.msra.mxu0 0.0
    %758 = vmatprep.subr.mxu0 0.0
    %759 = vmatpush1.xpose.msra.mxu0 0.0
    %760 = vmatprep.subr.mxu0 0.0
    %761 = vmatpush1.xpose.msra.mxu0 0.0
    %762 = vmatprep.subr.mxu0 0.0
    %763 = vmatpush1.xpose.msra.mxu0 0.0
    %764 = vmatprep.subr.mxu0 0.0
    %765 = vmatpush1.xpose.msra.mxu0 0.0
    %766 = vmatprep.subr.mxu0 0.0
    %767 = vmatpush1.xpose.msra.mxu0 0.0
    %768 = vmatprep.subr.mxu0 0.0
    %769 = vmatpush1.xpose.msra.mxu0 0.0
    %770 = vmatprep.subr.mxu0 0.0
    %771 = vmatpush1.xpose.msra.mxu0 0.0
    %772 = vmatprep.subr.mxu0 0.0
    %773 = vmatpush1.xpose.msra.mxu0 0.0
    %774 = vmatprep.subr.mxu0 0.0
    %775 = vmatpush1.xpose.msra.mxu0 0.0
    %776 = vmatprep.subr.mxu0 0.0
    %777 = vmatpush1.xpose.msra.mxu0 0.0
    %778 = vmatprep.subr.mxu0 0.0
    %779 = vmatpush1.xpose.msra.mxu0 0.0
    %780 = vmatprep.subr.mxu0 0.0
    %781 = vmatpush1.xpose.msra.mxu0 0.0
    %782 = vmatprep.subr.mxu0 0.0
    %783 = vmatpush1.xpose.msra.mxu0 0.0
    %784 = vmatprep.subr.mxu0 0.0
    %785 = vmatpush1.xpose.msra.mxu0 0.0
    %786 = vmatprep.mubr.f32.mxu0 0.0
    %787 = vmatmul.mubr.f32.gmra.mrb[0].mxu0 %v717
    %v788 = vpop.f32.mrb[0].mxu0
    %v789 = vadd.f32 0.0, %v788
    %v790 = vpop.f32.mrb[0].mxu0
    %791 = vdwg.mxu0
    %v793 = vsel %vm639, %v633, 0
    %v796 = vsel %vm639, %v503, 0
    %798 = vmatprep.subr.mxu0 0.0
    %799 = vmatpush1.xpose.msra.mxu0 %v796
    %800 = vmatprep.subr.mxu0 0.0
    %801 = vmatpush1.xpose.msra.mxu0 0.0
    %802 = vmatprep.subr.mxu0 0.0
    %803 = vmatpush1.xpose.msra.mxu0 0.0
    %804 = vmatprep.subr.mxu0 0.0
    %805 = vmatpush1.xpose.msra.mxu0 0.0
    %806 = vmatprep.subr.mxu0 0.0
    %807 = vmatpush1.xpose.msra.mxu0 0.0
    %808 = vmatprep.subr.mxu0 0.0
    %809 = vmatpush1.xpose.msra.mxu0 0.0
    %810 = vmatprep.subr.mxu0 0.0
    %811 = vmatpush1.xpose.msra.mxu0 0.0
    %812 = vmatprep.subr.mxu0 0.0
    %813 = vmatpush1.xpose.msra.mxu0 0.0
    %814 = vmatprep.subr.mxu0 0.0
    %815 = vmatpush1.xpose.msra.mxu0 0.0
    %816 = vmatprep.subr.mxu0 0.0
    %817 = vmatpush1.xpose.msra.mxu0 0.0
    %818 = vmatprep.subr.mxu0 0.0
    %819 = vmatpush1.xpose.msra.mxu0 0.0
    %820 = vmatprep.subr.mxu0 0.0
    %821 = vmatpush1.xpose.msra.mxu0 0.0
    %822 = vmatprep.subr.mxu0 0.0
    %823 = vmatpush1.xpose.msra.mxu0 0.0
    %824 = vmatprep.subr.mxu0 0.0
    %825 = vmatpush1.xpose.msra.mxu0 0.0
    %826 = vmatprep.subr.mxu0 0.0
    %827 = vmatpush1.xpose.msra.mxu0 0.0
    %828 = vmatprep.subr.mxu0 0.0
    %829 = vmatpush1.xpose.msra.mxu0 0.0
    %830 = vmatprep.subr.mxu0 0.0
    %831 = vmatpush1.xpose.msra.mxu0 0.0
    %832 = vmatprep.subr.mxu0 0.0
    %833 = vmatpush1.xpose.msra.mxu0 0.0
    %834 = vmatprep.subr.mxu0 0.0
    %835 = vmatpush1.xpose.msra.mxu0 0.0
    %836 = vmatprep.subr.mxu0 0.0
    %837 = vmatpush1.xpose.msra.mxu0 0.0
    %838 = vmatprep.subr.mxu0 0.0
    %839 = vmatpush1.xpose.msra.mxu0 0.0
    %840 = vmatprep.subr.mxu0 0.0
    %841 = vmatpush1.xpose.msra.mxu0 0.0
    %842 = vmatprep.subr.mxu0 0.0
    %843 = vmatpush1.xpose.msra.mxu0 0.0
    %844 = vmatprep.subr.mxu0 0.0
    %845 = vmatpush1.xpose.msra.mxu0 0.0
    %846 = vmatprep.subr.mxu0 0.0
    %847 = vmatpush1.xpose.msra.mxu0 0.0
    %848 = vmatprep.subr.mxu0 0.0
    %849 = vmatpush1.xpose.msra.mxu0 0.0
    %850 = vmatprep.subr.mxu0 0.0
    %851 = vmatpush1.xpose.msra.mxu0 0.0
    %852 = vmatprep.subr.mxu0 0.0
    %853 = vmatpush1.xpose.msra.mxu0 0.0
    %854 = vmatprep.subr.mxu0 0.0
    %855 = vmatpush1.xpose.msra.mxu0 0.0
    %856 = vmatprep.subr.mxu0 0.0
    %857 = vmatpush1.xpose.msra.mxu0 0.0
    %858 = vmatprep.subr.mxu0 0.0
    %859 = vmatpush1.xpose.msra.mxu0 0.0
    %860 = vmatprep.subr.mxu0 0.0
    %861 = vmatpush1.xpose.msra.mxu0 0.0
    %862 = vmatprep.mubr.f32.mxu0 0.0
    %863 = vmatmul.mubr.f32.gmra.mrb[0].mxu0 %v793
    %v864 = vpop.f32.mrb[0].mxu0
    %v865 = vadd.f32 0.0, %v864
    %v866 = vpop.f32.mrb[0].mxu0
    %867 = vdwg.mxu0
    %v869 = vsel %vm639, %v634, 0
    %v872 = vsel %vm639, %v508, 0
    %874 = vmatprep.subr.mxu0 0.0
    %875 = vmatpush1.xpose.msra.mxu0 %v872
    %876 = vmatprep.subr.mxu0 0.0
    %877 = vmatpush1.xpose.msra.mxu0 0.0
    %878 = vmatprep.subr.mxu0 0.0
    %879 = vmatpush1.xpose.msra.mxu0 0.0
    %880 = vmatprep.subr.mxu0 0.0
    %881 = vmatpush1.xpose.msra.mxu0 0.0
    %882 = vmatprep.subr.mxu0 0.0
    %883 = vmatpush1.xpose.msra.mxu0 0.0
    %884 = vmatprep.subr.mxu0 0.0
    %885 = vmatpush1.xpose.msra.mxu0 0.0
    %886 = vmatprep.subr.mxu0 0.0
    %887 = vmatpush1.xpose.msra.mxu0 0.0
    %888 = vmatprep.subr.mxu0 0.0
    %889 = vmatpush1.xpose.msra.mxu0 0.0
    %890 = vmatprep.subr.mxu0 0.0
    %891 = vmatpush1.xpose.msra.mxu0 0.0
    %892 = vmatprep.subr.mxu0 0.0
    %893 = vmatpush1.xpose.msra.mxu0 0.0
    %894 = vmatprep.subr.mxu0 0.0
    %895 = vmatpush1.xpose.msra.mxu0 0.0
    %896 = vmatprep.subr.mxu0 0.0
    %897 = vmatpush1.xpose.msra.mxu0 0.0
    %898 = vmatprep.subr.mxu0 0.0
    %899 = vmatpush1.xpose.msra.mxu0 0.0
    %900 = vmatprep.subr.mxu0 0.0
    %901 = vmatpush1.xpose.msra.mxu0 0.0
    %902 = vmatprep.subr.mxu0 0.0
    %903 = vmatpush1.xpose.msra.mxu0 0.0
    %904 = vmatprep.subr.mxu0 0.0
    %905 = vmatpush1.xpose.msra.mxu0 0.0
    %906 = vmatprep.subr.mxu0 0.0
    %907 = vmatpush1.xpose.msra.mxu0 0.0
    %908 = vmatprep.subr.mxu0 0.0
    %909 = vmatpush1.xpose.msra.mxu0 0.0
    %910 = vmatprep.subr.mxu0 0.0
    %911 = vmatpush1.xpose.msra.mxu0 0.0
    %912 = vmatprep.subr.mxu0 0.0
    %913 = vmatpush1.xpose.msra.mxu0 0.0
    %914 = vmatprep.subr.mxu0 0.0
    %915 = vmatpush1.xpose.msra.mxu0 0.0
    %916 = vmatprep.subr.mxu0 0.0
    %917 = vmatpush1.xpose.msra.mxu0 0.0
    %918 = vmatprep.subr.mxu0 0.0
    %919 = vmatpush1.xpose.msra.mxu0 0.0
    %920 = vmatprep.subr.mxu0 0.0
    %921 = vmatpush1.xpose.msra.mxu0 0.0
    %922 = vmatprep.subr.mxu0 0.0
    %923 = vmatpush1.xpose.msra.mxu0 0.0
    %924 = vmatprep.subr.mxu0 0.0
    %925 = vmatpush1.xpose.msra.mxu0 0.0
    %926 = vmatprep.subr.mxu0 0.0
    %927 = vmatpush1.xpose.msra.mxu0 0.0
    %928 = vmatprep.subr.mxu0 0.0
    %929 = vmatpush1.xpose.msra.mxu0 0.0
    %930 = vmatprep.subr.mxu0 0.0
    %931 = vmatpush1.xpose.msra.mxu0 0.0
    %932 = vmatprep.subr.mxu0 0.0
    %933 = vmatpush1.xpose.msra.mxu0 0.0
    %934 = vmatprep.subr.mxu0 0.0
    %935 = vmatpush1.xpose.msra.mxu0 0.0
    %936 = vmatprep.subr.mxu0 0.0
    %937 = vmatpush1.xpose.msra.mxu0 0.0
    %938 = vmatprep.mubr.f32.mxu0 0.0
    %939 = vmatmul.mubr.f32.gmra.mrb[0].mxu0 %v869
    %v940 = vpop.f32.mrb[0].mxu0
    %v941 = vadd.f32 0.0, %v940
    %v942 = vpop.f32.mrb[0].mxu0
    %943 = vdwg.mxu0
    %v945 = vsel %vm639, %v635, 0
    %v948 = vsel %vm639, %v513, 0
    %950 = vmatprep.subr.mxu0 0.0
    %951 = vmatpush1.xpose.msra.mxu0 %v948
    %952 = vmatprep.subr.mxu0 0.0
    %953 = vmatpush1.xpose.msra.mxu0 0.0
    %954 = vmatprep.subr.mxu0 0.0
    %955 = vmatpush1.xpose.msra.mxu0 0.0
    %956 = vmatprep.subr.mxu0 0.0
    %957 = vmatpush1.xpose.msra.mxu0 0.0
    %958 = vmatprep.subr.mxu0 0.0
    %959 = vmatpush1.xpose.msra.mxu0 0.0
    %960 = vmatprep.subr.mxu0 0.0
    %961 = vmatpush1.xpose.msra.mxu0 0.0
    %962 = vmatprep.subr.mxu0 0.0
    %963 = vmatpush1.xpose.msra.mxu0 0.0
    %964 = vmatprep.subr.mxu0 0.0
    %965 = vmatpush1.xpose.msra.mxu0 0.0
    %966 = vmatprep.subr.mxu0 0.0
    %967 = vmatpush1.xpose.msra.mxu0 0.0
    %968 = vmatprep.subr.mxu0 0.0
    %969 = vmatpush1.xpose.msra.mxu0 0.0
    %970 = vmatprep.subr.mxu0 0.0
    %971 = vmatpush1.xpose.msra.mxu0 0.0
    %972 = vmatprep.subr.mxu0 0.0
    %973 = vmatpush1.xpose.msra.mxu0 0.0
    %974 = vmatprep.subr.mxu0 0.0
    %975 = vmatpush1.xpose.msra.mxu0 0.0
    %976 = vmatprep.subr.mxu0 0.0
    %977 = vmatpush1.xpose.msra.mxu0 0.0
    %978 = vmatprep.subr.mxu0 0.0
    %979 = vmatpush1.xpose.msra.mxu0 0.0
    %980 = vmatprep.subr.mxu0 0.0
    %981 = vmatpush1.xpose.msra.mxu0 0.0
    %982 = vmatprep.subr.mxu0 0.0
    %983 = vmatpush1.xpose.msra.mxu0 0.0
    %984 = vmatprep.subr.mxu0 0.0
    %985 = vmatpush1.xpose.msra.mxu0 0.0
    %986 = vmatprep.subr.mxu0 0.0
    %987 = vmatpush1.xpose.msra.mxu0 0.0
    %988 = vmatprep.subr.mxu0 0.0
    %989 = vmatpush1.xpose.msra.mxu0 0.0
    %990 = vmatprep.subr.mxu0 0.0
    %991 = vmatpush1.xpose.msra.mxu0 0.0
    %992 = vmatprep.subr.mxu0 0.0
    %993 = vmatpush1.xpose.msra.mxu0 0.0
    %994 = vmatprep.subr.mxu0 0.0
    %995 = vmatpush1.xpose.msra.mxu0 0.0
    %996 = vmatprep.subr.mxu0 0.0
    %997 = vmatpush1.xpose.msra.mxu0 0.0
    %998 = vmatprep.subr.mxu0 0.0
    %999 = vmatpush1.xpose.msra.mxu0 0.0
    %1000 = vmatprep.subr.mxu0 0.0
    %1001 = vmatpush1.xpose.msra.mxu0 0.0
    %1002 = vmatprep.subr.mxu0 0.0
    %1003 = vmatpush1.xpose.msra.mxu0 0.0
    %1004 = vmatprep.subr.mxu0 0.0
    %1005 = vmatpush1.xpose.msra.mxu0 0.0
    %1006 = vmatprep.subr.mxu0 0.0
    %1007 = vmatpush1.xpose.msra.mxu0 0.0
    %1008 = vmatprep.subr.mxu0 0.0
    %1009 = vmatpush1.xpose.msra.mxu0 0.0
    %1010 = vmatprep.subr.mxu0 0.0
    %1011 = vmatpush1.xpose.msra.mxu0 0.0
    %1012 = vmatprep.subr.mxu0 0.0
    %1013 = vmatpush1.xpose.msra.mxu0 0.0
    %1014 = vmatprep.mubr.f32.mxu0 0.0
    %1015 = vmatmul.mubr.f32.gmra.mrb[0].mxu0 %v945
    %v1016 = vpop.f32.mrb[0].mxu0
    %v1017 = vadd.f32 0.0, %v1016
    %v1018 = vpop.f32.mrb[0].mxu0
    %1019 = vdwg.mxu0
    %v1021 = vsel %vm639, %v636, 0
    %v1024 = vsel %vm639, %v518, 0
    %1026 = vmatprep.subr.mxu0 0.0
    %1027 = vmatpush1.xpose.msra.mxu0 %v1024
    %1028 = vmatprep.subr.mxu0 0.0
    %1029 = vmatpush1.xpose.msra.mxu0 0.0
    %1030 = vmatprep.subr.mxu0 0.0
    %1031 = vmatpush1.xpose.msra.mxu0 0.0
    %1032 = vmatprep.subr.mxu0 0.0
    %1033 = vmatpush1.xpose.msra.mxu0 0.0
    %1034 = vmatprep.subr.mxu0 0.0
    %1035 = vmatpush1.xpose.msra.mxu0 0.0
    %1036 = vmatprep.subr.mxu0 0.0
    %1037 = vmatpush1.xpose.msra.mxu0 0.0
    %1038 = vmatprep.subr.mxu0 0.0
    %1039 = vmatpush1.xpose.msra.mxu0 0.0
    %1040 = vmatprep.subr.mxu0 0.0
    %1041 = vmatpush1.xpose.msra.mxu0 0.0
    %1042 = vmatprep.subr.mxu0 0.0
    %1043 = vmatpush1.xpose.msra.mxu0 0.0
    %1044 = vmatprep.subr.mxu0 0.0
    %1045 = vmatpush1.xpose.msra.mxu0 0.0
    %1046 = vmatprep.subr.mxu0 0.0
    %1047 = vmatpush1.xpose.msra.mxu0 0.0
    %1048 = vmatprep.subr.mxu0 0.0
    %1049 = vmatpush1.xpose.msra.mxu0 0.0
    %1050 = vmatprep.subr.mxu0 0.0
    %1051 = vmatpush1.xpose.msra.mxu0 0.0
    %1052 = vmatprep.subr.mxu0 0.0
    %1053 = vmatpush1.xpose.msra.mxu0 0.0
    %1054 = vmatprep.subr.mxu0 0.0
    %1055 = vmatpush1.xpose.msra.mxu0 0.0
    %1056 = vmatprep.subr.mxu0 0.0
    %1057 = vmatpush1.xpose.msra.mxu0 0.0
    %1058 = vmatprep.subr.mxu0 0.0
    %1059 = vmatpush1.xpose.msra.mxu0 0.0
    %1060 = vmatprep.subr.mxu0 0.0
    %1061 = vmatpush1.xpose.msra.mxu0 0.0
    %1062 = vmatprep.subr.mxu0 0.0
    %1063 = vmatpush1.xpose.msra.mxu0 0.0
    %1064 = vmatprep.subr.mxu0 0.0
    %1065 = vmatpush1.xpose.msra.mxu0 0.0
    %1066 = vmatprep.subr.mxu0 0.0
    %1067 = vmatpush1.xpose.msra.mxu0 0.0
    %1068 = vmatprep.subr.mxu0 0.0
    %1069 = vmatpush1.xpose.msra.mxu0 0.0
    %1070 = vmatprep.subr.mxu0 0.0
    %1071 = vmatpush1.xpose.msra.mxu0 0.0
    %1072 = vmatprep.subr.mxu0 0.0
    %1073 = vmatpush1.xpose.msra.mxu0 0.0
    %1074 = vmatprep.subr.mxu0 0.0
    %1075 = vmatpush1.xpose.msra.mxu0 0.0
    %1076 = vmatprep.subr.mxu0 0.0
    %1077 = vmatpush1.xpose.msra.mxu0 0.0
    %1078 = vmatprep.subr.mxu0 0.0
    %1079 = vmatpush1.xpose.msra.mxu0 0.0
    %1080 = vmatprep.subr.mxu0 0.0
    %1081 = vmatpush1.xpose.msra.mxu0 0.0
    %1082 = vmatprep.subr.mxu0 0.0
    %1083 = vmatpush1.xpose.msra.mxu0 0.0
    %1084 = vmatprep.subr.mxu0 0.0
    %1085 = vmatpush1.xpose.msra.mxu0 0.0
    %1086 = vmatprep.subr.mxu0 0.0
    %1087 = vmatpush1.xpose.msra.mxu0 0.0
    %1088 = vmatprep.subr.mxu0 0.0
    %1089 = vmatpush1.xpose.msra.mxu0 0.0
    %1090 = vmatprep.mubr.f32.mxu0 0.0
    %1091 = vmatmul.mubr.f32.gmra.mrb[0].mxu0 %v1021
    %v1092 = vpop.f32.mrb[0].mxu0
    %v1093 = vadd.f32 0.0, %v1092
    %v1094 = vpop.f32.mrb[0].mxu0
    %1095 = vdwg.mxu0
    %v1097 = vsel %vm639, %v637, 0
    %v1100 = vsel %vm639, %v523, 0
    %1102 = vmatprep.subr.mxu0 0.0
    %1103 = vmatpush1.xpose.msra.mxu0 %v1100
    %1104 = vmatprep.subr.mxu0 0.0
    %1105 = vmatpush1.xpose.msra.mxu0 0.0
    %1106 = vmatprep.subr.mxu0 0.0
    %1107 = vmatpush1.xpose.msra.mxu0 0.0
    %1108 = vmatprep.subr.mxu0 0.0
    %1109 = vmatpush1.xpose.msra.mxu0 0.0
    %1110 = vmatprep.subr.mxu0 0.0
    %1111 = vmatpush1.xpose.msra.mxu0 0.0
    %1112 = vmatprep.subr.mxu0 0.0
    %1113 = vmatpush1.xpose.msra.mxu0 0.0
    %1114 = vmatprep.subr.mxu0 0.0
    %1115 = vmatpush1.xpose.msra.mxu0 0.0
    %1116 = vmatprep.subr.mxu0 0.0
    %1117 = vmatpush1.xpose.msra.mxu0 0.0
    %1118 = vmatprep.subr.mxu0 0.0
    %1119 = vmatpush1.xpose.msra.mxu0 0.0
    %1120 = vmatprep.subr.mxu0 0.0
    %1121 = vmatpush1.xpose.msra.mxu0 0.0
    %1122 = vmatprep.subr.mxu0 0.0
    %1123 = vmatpush1.xpose.msra.mxu0 0.0
    %1124 = vmatprep.subr.mxu0 0.0
    %1125 = vmatpush1.xpose.msra.mxu0 0.0
    %1126 = vmatprep.subr.mxu0 0.0
    %1127 = vmatpush1.xpose.msra.mxu0 0.0
    %1128 = vmatprep.subr.mxu0 0.0
    %1129 = vmatpush1.xpose.msra.mxu0 0.0
    %1130 = vmatprep.subr.mxu0 0.0
    %1131 = vmatpush1.xpose.msra.mxu0 0.0
    %1132 = vmatprep.subr.mxu0 0.0
    %1133 = vmatpush1.xpose.msra.mxu0 0.0
    %1134 = vmatprep.subr.mxu0 0.0
    %1135 = vmatpush1.xpose.msra.mxu0 0.0
    %1136 = vmatprep.subr.mxu0 0.0
    %1137 = vmatpush1.xpose.msra.mxu0 0.0
    %1138 = vmatprep.subr.mxu0 0.0
    %1139 = vmatpush1.xpose.msra.mxu0 0.0
    %1140 = vmatprep.subr.mxu0 0.0
    %1141 = vmatpush1.xpose.msra.mxu0 0.0
    %1142 = vmatprep.subr.mxu0 0.0
    %1143 = vmatpush1.xpose.msra.mxu0 0.0
    %1144 = vmatprep.subr.mxu0 0.0
    %1145 = vmatpush1.xpose.msra.mxu0 0.0
    %1146 = vmatprep.subr.mxu0 0.0
    %1147 = vmatpush1.xpose.msra.mxu0 0.0
    %1148 = vmatprep.subr.mxu0 0.0
    %1149 = vmatpush1.xpose.msra.mxu0 0.0
    %1150 = vmatprep.subr.mxu0 0.0
    %1151 = vmatpush1.xpose.msra.mxu0 0.0
    %1152 = vmatprep.subr.mxu0 0.0
    %1153 = vmatpush1.xpose.msra.mxu0 0.0
    %1154 = vmatprep.subr.mxu0 0.0
    %1155 = vmatpush1.xpose.msra.mxu0 0.0
    %1156 = vmatprep.subr.mxu0 0.0
    %1157 = vmatpush1.xpose.msra.mxu0 0.0
    %1158 = vmatprep.subr.mxu0 0.0
    %1159 = vmatpush1.xpose.msra.mxu0 0.0
    %1160 = vmatprep.subr.mxu0 0.0
    %1161 = vmatpush1.xpose.msra.mxu0 0.0
    %1162 = vmatprep.subr.mxu0 0.0
    %1163 = vmatpush1.xpose.msra.mxu0 0.0
    %1164 = vmatprep.subr.mxu0 0.0
    %1165 = vmatpush1.xpose.msra.mxu0 0.0
    %1166 = vmatprep.mubr.f32.mxu0 0.0
    %1167 = vmatmul.mubr.f32.gmra.mrb[0].mxu0 %v1097
    %v1168 = vpop.f32.mrb[0].mxu0
    %v1169 = vadd.f32 0.0, %v1168
    %v1170 = vpop.f32.mrb[0].mxu0
    %1171 = vdwg.mxu0
    %v1173 = vsel %vm639, %v638, 0
    %v1176 = vsel %vm639, %v528, 0
    %1178 = vmatprep.subr.mxu0 0.0
    %1179 = vmatpush1.xpose.msra.mxu0 %v1176
    %1180 = vmatprep.subr.mxu0 0.0
    %1181 = vmatpush1.xpose.msra.mxu0 0.0
    %1182 = vmatprep.subr.mxu0 0.0
    %1183 = vmatpush1.xpose.msra.mxu0 0.0
    %1184 = vmatprep.subr.mxu0 0.0
    %1185 = vmatpush1.xpose.msra.mxu0 0.0
    %1186 = vmatprep.subr.mxu0 0.0
    %1187 = vmatpush1.xpose.msra.mxu0 0.0
    %1188 = vmatprep.subr.mxu0 0.0
    %1189 = vmatpush1.xpose.msra.mxu0 0.0
    %1190 = vmatprep.subr.mxu0 0.0
    %1191 = vmatpush1.xpose.msra.mxu0 0.0
    %1192 = vmatprep.subr.mxu0 0.0
    %1193 = vmatpush1.xpose.msra.mxu0 0.0
    %1194 = vmatprep.subr.mxu0 0.0
    %1195 = vmatpush1.xpose.msra.mxu0 0.0
    %1196 = vmatprep.subr.mxu0 0.0
    %1197 = vmatpush1.xpose.msra.mxu0 0.0
    %1198 = vmatprep.subr.mxu0 0.0
    %1199 = vmatpush1.xpose.msra.mxu0 0.0
    %1200 = vmatprep.subr.mxu0 0.0
    %1201 = vmatpush1.xpose.msra.mxu0 0.0
    %1202 = vmatprep.subr.mxu0 0.0
    %1203 = vmatpush1.xpose.msra.mxu0 0.0
    %1204 = vmatprep.subr.mxu0 0.0
    %1205 = vmatpush1.xpose.msra.mxu0 0.0
    %1206 = vmatprep.subr.mxu0 0.0
    %1207 = vmatpush1.xpose.msra.mxu0 0.0
    %1208 = vmatprep.subr.mxu0 0.0
    %1209 = vmatpush1.xpose.msra.mxu0 0.0
    %1210 = vmatprep.subr.mxu0 0.0
    %1211 = vmatpush1.xpose.msra.mxu0 0.0
    %1212 = vmatprep.subr.mxu0 0.0
    %1213 = vmatpush1.xpose.msra.mxu0 0.0
    %1214 = vmatprep.subr.mxu0 0.0
    %1215 = vmatpush1.xpose.msra.mxu0 0.0
    %1216 = vmatprep.subr.mxu0 0.0
    %1217 = vmatpush1.xpose.msra.mxu0 0.0
    %1218 = vmatprep.subr.mxu0 0.0
    %1219 = vmatpush1.xpose.msra.mxu0 0.0
    %1220 = vmatprep.subr.mxu0 0.0
    %1221 = vmatpush1.xpose.msra.mxu0 0.0
    %1222 = vmatprep.subr.mxu0 0.0
    %1223 = vmatpush1.xpose.msra.mxu0 0.0
    %1224 = vmatprep.subr.mxu0 0.0
    %1225 = vmatpush1.xpose.msra.mxu0 0.0
    %1226 = vmatprep.subr.mxu0 0.0
    %1227 = vmatpush1.xpose.msra.mxu0 0.0
    %1228 = vmatprep.subr.mxu0 0.0
    %1229 = vmatpush1.xpose.msra.mxu0 0.0
    %1230 = vmatprep.subr.mxu0 0.0
    %1231 = vmatpush1.xpose.msra.mxu0 0.0
    %1232 = vmatprep.subr.mxu0 0.0
    %1233 = vmatpush1.xpose.msra.mxu0 0.0
    %1234 = vmatprep.subr.mxu0 0.0
    %1235 = vmatpush1.xpose.msra.mxu0 0.0
    %1236 = vmatprep.subr.mxu0 0.0
    %1237 = vmatpush1.xpose.msra.mxu0 0.0
    %1238 = vmatprep.subr.mxu0 0.0
    %1239 = vmatpush1.xpose.msra.mxu0 0.0
    %1240 = vmatprep.subr.mxu0 0.0
    %1241 = vmatpush1.xpose.msra.mxu0 0.0
    %1242 = vmatprep.mubr.f32.mxu0 0.0
    %1243 = vmatmul.mubr.f32.gmra.mrb[0].mxu0 %v1173
    %v1244 = vpop.f32.mrb[0].mxu0
    %v1245 = vadd.f32 0.0, %v1244
    %v1246 = vpop.f32.mrb[0].mxu0
    %1247 = vdwg.mxu0
    %1248 = vset.pattern.permute.xlu0 0
    %1249 = vperm.xlu0 %1248, %v95
    %v1250 = vpop.permute.xlu0 %1249
    %v1251 = vlaneseq
    %v1252 = vshrl.u32 %v1251, 7
    %v1253 = vsub.s32 0, %v1252
    %v1254 = vrot.slane %v1250, %v1253
    %1255 = vset.pattern.permute.xlu0 0
    %1256 = vperm.xlu0 %1255, %v96
    %v1257 = vpop.permute.xlu0 %1256
    %v1258 = vlaneseq
    %v1259 = vshrl.u32 %v1258, 7
    %v1260 = vsub.s32 0, %v1259
    %v1261 = vrot.slane %v1257, %v1260
    %1262 = vset.pattern.permute.xlu0 0
    %1263 = vperm.xlu0 %1262, %v97
    %v1264 = vpop.permute.xlu0 %1263
    %v1265 = vlaneseq
    %v1266 = vshrl.u32 %v1265, 7
    %v1267 = vsub.s32 0, %v1266
    %v1268 = vrot.slane %v1264, %v1267
    %1269 = vset.pattern.permute.xlu0 0
    %1270 = vperm.xlu0 %1269, %v98
    %v1271 = vpop.permute.xlu0 %1270
    %v1272 = vlaneseq
    %v1273 = vshrl.u32 %v1272, 7
    %v1274 = vsub.s32 0, %v1273
    %v1275 = vrot.slane %v1271, %v1274
    %1276 = vset.pattern.permute.xlu0 0
    %1277 = vperm.xlu0 %1276, %v99
    %v1278 = vpop.permute.xlu0 %1277
    %v1279 = vlaneseq
    %v1280 = vshrl.u32 %v1279, 7
    %v1281 = vsub.s32 0, %v1280
    %v1282 = vrot.slane %v1278, %v1281
    %1283 = vset.pattern.permute.xlu0 0
    %1284 = vperm.xlu0 %1283, %v100
    %v1285 = vpop.permute.xlu0 %1284
    %v1286 = vlaneseq
    %v1287 = vshrl.u32 %v1286, 7
    %v1288 = vsub.s32 0, %v1287
    %v1289 = vrot.slane %v1285, %v1288
    %1290 = vset.pattern.permute.xlu0 0
    %1291 = vperm.xlu0 %1290, %v101
    %v1292 = vpop.permute.xlu0 %1291
    %v1293 = vlaneseq
    %v1294 = vshrl.u32 %v1293, 7
    %v1295 = vsub.s32 0, %v1294
    %v1296 = vrot.slane %v1292, %v1295
    %1297 = vset.pattern.permute.xlu0 0
    %1298 = vperm.xlu0 %1297, %v102
    %v1299 = vpop.permute.xlu0 %1298
    %v1300 = vlaneseq
    %v1301 = vshrl.u32 %v1300, 7
    %v1302 = vsub.s32 0, %v1301
    %v1303 = vrot.slane %v1299, %v1302
    %vm1304 = vcmp.lt.s32.totalorder %v532, %v1254
    %vm1305 = vcmp.lt.s32.totalorder %v532, %v1261
    %vm1306 = vcmp.lt.s32.totalorder %v532, %v1268
    %vm1307 = vcmp.lt.s32.totalorder %v532, %v1275
    %vm1308 = vcmp.lt.s32.totalorder %v532, %v1282
    %vm1309 = vcmp.lt.s32.totalorder %v532, %v1289
    %vm1310 = vcmp.lt.s32.totalorder %v532, %v1296
    %vm1311 = vcmp.lt.s32.totalorder %v532, %v1303
    %v1312 = vsel %vm1304, 1, 0
    %v1313 = vsel %vm1305, 1, 0
    %v1314 = vsel %vm1306, 1, 0
    %v1315 = vsel %vm1307, 1, 0
    %v1316 = vsel %vm1308, 1, 0
    %v1317 = vsel %vm1309, 1, 0
    %v1318 = vsel %vm1310, 1, 0
    %v1319 = vsel %vm1311, 1, 0
    %vm1320 = vcmp.eq.s32.totalorder %v1312, 1
    %vm1321 = vcmp.eq.s32.totalorder %v1313, 1
    %vm1322 = vcmp.eq.s32.totalorder %v1314, 1
    %vm1323 = vcmp.eq.s32.totalorder %v1315, 1
    %vm1324 = vcmp.eq.s32.totalorder %v1316, 1
    %vm1325 = vcmp.eq.s32.totalorder %v1317, 1
    %vm1326 = vcmp.eq.s32.totalorder %v1318, 1
    %vm1327 = vcmp.eq.s32.totalorder %v1319, 1
    %v1328 = vsel %vm1320, %v713, -1e+30
    %v1329 = vsel %vm1321, %v789, -1e+30
    %v1330 = vsel %vm1322, %v865, -1e+30
    %v1331 = vsel %vm1323, %v941, -1e+30
    %v1332 = vsel %vm1324, %v1017, -1e+30
    %v1333 = vsel %vm1325, %v1093, -1e+30
    %v1334 = vsel %vm1326, %v1169, -1e+30
    %v1335 = vsel %vm1327, %v1245, -1e+30
    %vm1336 = vcmask 58368
    %v1337 = vsel %vm1336, %v1328, -inf
    %1338 = vmax.xlane.f32.xlu0 %v1337
    %v1339 = vpop.xlane.xlu0 %1338
    %v1340 = vsel %vm1336, %v1329, -inf
    %1341 = vmax.xlane.f32.xlu0 %v1340
    %v1342 = vpop.xlane.xlu0 %1341
    %v1343 = vsel %vm1336, %v1330, -inf
    %1344 = vmax.xlane.f32.xlu0 %v1343
    %v1345 = vpop.xlane.xlu0 %1344
    %v1346 = vsel %vm1336, %v1331, -inf
    %1347 = vmax.xlane.f32.xlu0 %v1346
    %v1348 = vpop.xlane.xlu0 %1347
    %v1349 = vsel %vm1336, %v1332, -inf
    %1350 = vmax.xlane.f32.xlu0 %v1349
    %v1351 = vpop.xlane.xlu0 %1350
    %v1352 = vsel %vm1336, %v1333, -inf
    %1353 = vmax.xlane.f32.xlu0 %v1352
    %v1354 = vpop.xlane.xlu0 %1353
    %v1355 = vsel %vm1336, %v1334, -inf
    %1356 = vmax.xlane.f32.xlu0 %v1355
    %v1357 = vpop.xlane.xlu0 %1356
    %v1358 = vsel %vm1336, %v1335, -inf
    %1359 = vmax.xlane.f32.xlu0 %v1358
    %v1360 = vpop.xlane.xlu0 %1359
    %v1361 = vsub.f32 %v1328, %v1339
    %v1362 = vsub.f32 %v1329, %v1342
    %v1363 = vsub.f32 %v1330, %v1345
    %v1364 = vsub.f32 %v1331, %v1348
    %v1365 = vsub.f32 %v1332, %v1351
    %v1366 = vsub.f32 %v1333, %v1354
    %v1367 = vsub.f32 %v1334, %v1357
    %v1368 = vsub.f32 %v1335, %v1360
    %v1369 = vmul.f32 %v1361, 1.442695
    %v1370 = vpow.pop %v1369
    %v1371 = vmul.f32 %v1362, 1.442695
    %v1372 = vpow.pop %v1371
    %v1373 = vmul.f32 %v1363, 1.442695
    %v1374 = vpow.pop %v1373
    %v1375 = vmul.f32 %v1364, 1.442695
    %v1376 = vpow.pop %v1375
    %v1377 = vmul.f32 %v1365, 1.442695
    %v1378 = vpow.pop %v1377
    %v1379 = vmul.f32 %v1366, 1.442695
    %v1380 = vpow.pop %v1379
    %v1381 = vmul.f32 %v1367, 1.442695
    %v1382 = vpow.pop %v1381
    %v1383 = vmul.f32 %v1368, 1.442695
    %v1384 = vpow.pop %v1383
    %v1385 = vsel %vm1320, %v1370, 0.0
    %v1386 = vsel %vm1321, %v1372, 0.0
    %v1387 = vsel %vm1322, %v1374, 0.0
    %v1388 = vsel %vm1323, %v1376, 0.0
    %v1389 = vsel %vm1324, %v1378, 0.0
    %v1390 = vsel %vm1325, %v1380, 0.0
    %v1391 = vsel %vm1326, %v1382, 0.0
    %v1392 = vsel %vm1327, %v1384, 0.0
    %v1393 = vsel %vm1336, %v1385, 0.0
    %1394 = vadd.xlane.f32.xlu0 %v1393
    %v1395 = vpop.xlane.xlu0 %1394
    %v1396 = vsel %vm1336, %v1386, 0.0
    %1397 = vadd.xlane.f32.xlu0 %v1396
    %v1398 = vpop.xlane.xlu0 %1397
    %v1399 = vsel %vm1336, %v1387, 0.0
    %1400 = vadd.xlane.f32.xlu0 %v1399
    %v1401 = vpop.xlane.xlu0 %1400
    %v1402 = vsel %vm1336, %v1388, 0.0
    %1403 = vadd.xlane.f32.xlu0 %v1402
    %v1404 = vpop.xlane.xlu0 %1403
    %v1405 = vsel %vm1336, %v1389, 0.0
    %1406 = vadd.xlane.f32.xlu0 %v1405
    %v1407 = vpop.xlane.xlu0 %1406
    %v1408 = vsel %vm1336, %v1390, 0.0
    %1409 = vadd.xlane.f32.xlu0 %v1408
    %v1410 = vpop.xlane.xlu0 %1409
    %v1411 = vsel %vm1336, %v1391, 0.0
    %1412 = vadd.xlane.f32.xlu0 %v1411
    %v1413 = vpop.xlane.xlu0 %1412
    %v1414 = vsel %vm1336, %v1392, 0.0
    %1415 = vadd.xlane.f32.xlu0 %v1414
    %v1416 = vpop.xlane.xlu0 %1415
    %v1417 = vrcp.pop %v1395
    %v1418 = vrcp.pop %v1398
    %v1419 = vrcp.pop %v1401
    %v1420 = vrcp.pop %v1404
    %v1421 = vrcp.pop %v1407
    %v1422 = vrcp.pop %v1410
    %v1423 = vrcp.pop %v1413
    %v1424 = vrcp.pop %v1416
    %v1425 = vmul.f32 %v1385, %v1417
    %v1426 = vmul.f32 %v1386, %v1418
    %v1427 = vmul.f32 %v1387, %v1419
    %v1428 = vmul.f32 %v1388, %v1420
    %v1429 = vmul.f32 %v1389, %v1421
    %v1430 = vmul.f32 %v1390, %v1422
    %v1431 = vmul.f32 %v1391, %v1423
    %v1432 = vmul.f32 %v1392, %v1424
    %vm1433 = vcmask 64512
    %v1435 = vsel %vm1433, %v1425, 0
    %1437 = vmatprep.subr.mxu0 0.0
    %1438 = vmatpush1.msra.mxu0 %v87
    %1439 = vmatprep.subr.mxu0 0.0
    %1440 = vmatpush1.msra.mxu0 0.0
    %1441 = vmatprep.subr.mxu0 0.0
    %1442 = vmatpush1.msra.mxu0 0.0
    %1443 = vmatprep.subr.mxu0 0.0
    %1444 = vmatpush1.msra.mxu0 0.0
    %1445 = vmatprep.subr.mxu0 0.0
    %1446 = vmatpush1.msra.mxu0 0.0
    %1447 = vmatprep.subr.mxu0 0.0
    %1448 = vmatpush1.msra.mxu0 0.0
    %1449 = vmatprep.subr.mxu0 0.0
    %1450 = vmatpush1.msra.mxu0 0.0
    %1451 = vmatprep.subr.mxu0 0.0
    %1452 = vmatpush1.msra.mxu0 0.0
    %1453 = vmatprep.subr.mxu0 0.0
    %1454 = vmatpush1.msra.mxu0 0.0
    %1455 = vmatprep.subr.mxu0 0.0
    %1456 = vmatpush1.msra.mxu0 0.0
    %1457 = vmatprep.subr.mxu0 0.0
    %1458 = vmatpush1.msra.mxu0 0.0
    %1459 = vmatprep.subr.mxu0 0.0
    %1460 = vmatpush1.msra.mxu0 0.0
    %1461 = vmatprep.subr.mxu0 0.0
    %1462 = vmatpush1.msra.mxu0 0.0
    %1463 = vmatprep.subr.mxu0 0.0
    %1464 = vmatpush1.msra.mxu0 0.0
    %1465 = vmatprep.subr.mxu0 0.0
    %1466 = vmatpush1.msra.mxu0 0.0
    %1467 = vmatprep.subr.mxu0 0.0
    %1468 = vmatpush1.msra.mxu0 0.0
    %1469 = vmatprep.subr.mxu0 0.0
    %1470 = vmatpush1.msra.mxu0 0.0
    %1471 = vmatprep.subr.mxu0 0.0
    %1472 = vmatpush1.msra.mxu0 0.0
    %1473 = vmatprep.subr.mxu0 0.0
    %1474 = vmatpush1.msra.mxu0 0.0
    %1475 = vmatprep.subr.mxu0 0.0
    %1476 = vmatpush1.msra.mxu0 0.0
    %1477 = vmatprep.subr.mxu0 0.0
    %1478 = vmatpush1.msra.mxu0 0.0
    %1479 = vmatprep.subr.mxu0 0.0
    %1480 = vmatpush1.msra.mxu0 0.0
    %1481 = vmatprep.subr.mxu0 0.0
    %1482 = vmatpush1.msra.mxu0 0.0
    %1483 = vmatprep.subr.mxu0 0.0
    %1484 = vmatpush1.msra.mxu0 0.0
    %1485 = vmatprep.subr.mxu0 0.0
    %1486 = vmatpush1.msra.mxu0 0.0
    %1487 = vmatprep.subr.mxu0 0.0
    %1488 = vmatpush1.msra.mxu0 0.0
    %1489 = vmatprep.subr.mxu0 0.0
    %1490 = vmatpush1.msra.mxu0 0.0
    %1491 = vmatprep.subr.mxu0 0.0
    %1492 = vmatpush1.msra.mxu0 0.0
    %1493 = vmatprep.subr.mxu0 0.0
    %1494 = vmatpush1.msra.mxu0 0.0
    %1495 = vmatprep.subr.mxu0 0.0
    %1496 = vmatpush1.msra.mxu0 0.0
    %1497 = vmatprep.subr.mxu0 0.0
    %1498 = vmatpush1.msra.mxu0 0.0
    %1499 = vmatprep.subr.mxu0 0.0
    %1500 = vmatpush1.msra.mxu0 0.0
    %1501 = vmatprep.mubr.f32.mxu0 0.0
    %1502 = vmatmul.mubr.f32.gmra.mrb[0].mxu0 %v1435
    %v1503 = vpop.f32.mrb[0].mxu0
    %v1504 = vadd.f32 0.0, %v1503
    %v1505 = vpop.f32.mrb[0].mxu0
    %1506 = vdwg.mxu0
    %v1508 = vsel %vm1433, %v1426, 0
    %1510 = vmatprep.subr.mxu0 0.0
    %1511 = vmatpush1.msra.mxu0 %v88
    %1512 = vmatprep.subr.mxu0 0.0
    %1513 = vmatpush1.msra.mxu0 0.0
    %1514 = vmatprep.subr.mxu0 0.0
    %1515 = vmatpush1.msra.mxu0 0.0
    %1516 = vmatprep.subr.mxu0 0.0
    %1517 = vmatpush1.msra.mxu0 0.0
    %1518 = vmatprep.subr.mxu0 0.0
    %1519 = vmatpush1.msra.mxu0 0.0
    %1520 = vmatprep.subr.mxu0 0.0
    %1521 = vmatpush1.msra.mxu0 0.0
    %1522 = vmatprep.subr.mxu0 0.0
    %1523 = vmatpush1.msra.mxu0 0.0
    %1524 = vmatprep.subr.mxu0 0.0
    %1525 = vmatpush1.msra.mxu0 0.0
    %1526 = vmatprep.subr.mxu0 0.0
    %1527 = vmatpush1.msra.mxu0 0.0
    %1528 = vmatprep.subr.mxu0 0.0
    %1529 = vmatpush1.msra.mxu0 0.0
    %1530 = vmatprep.subr.mxu0 0.0
    %1531 = vmatpush1.msra.mxu0 0.0
    %1532 = vmatprep.subr.mxu0 0.0
    %1533 = vmatpush1.msra.mxu0 0.0
    %1534 = vmatprep.subr.mxu0 0.0
    %1535 = vmatpush1.msra.mxu0 0.0
    %1536 = vmatprep.subr.mxu0 0.0
    %1537 = vmatpush1.msra.mxu0 0.0
    %1538 = vmatprep.subr.mxu0 0.0
    %1539 = vmatpush1.msra.mxu0 0.0
    %1540 = vmatprep.subr.mxu0 0.0
    %1541 = vmatpush1.msra.mxu0 0.0
    %1542 = vmatprep.subr.mxu0 0.0
    %1543 = vmatpush1.msra.mxu0 0.0
    %1544 = vmatprep.subr.mxu0 0.0
    %1545 = vmatpush1.msra.mxu0 0.0
    %1546 = vmatprep.subr.mxu0 0.0
    %1547 = vmatpush1.msra.mxu0 0.0
    %1548 = vmatprep.subr.mxu0 0.0
    %1549 = vmatpush1.msra.mxu0 0.0
    %1550 = vmatprep.subr.mxu0 0.0
    %1551 = vmatpush1.msra.mxu0 0.0
    %1552 = vmatprep.subr.mxu0 0.0
    %1553 = vmatpush1.msra.mxu0 0.0
    %1554 = vmatprep.subr.mxu0 0.0
    %1555 = vmatpush1.msra.mxu0 0.0
    %1556 = vmatprep.subr.mxu0 0.0
    %1557 = vmatpush1.msra.mxu0 0.0
    %1558 = vmatprep.subr.mxu0 0.0
    %1559 = vmatpush1.msra.mxu0 0.0
    %1560 = vmatprep.subr.mxu0 0.0
    %1561 = vmatpush1.msra.mxu0 0.0
    %1562 = vmatprep.subr.mxu0 0.0
    %1563 = vmatpush1.msra.mxu0 0.0
    %1564 = vmatprep.subr.mxu0 0.0
    %1565 = vmatpush1.msra.mxu0 0.0
    %1566 = vmatprep.subr.mxu0 0.0
    %1567 = vmatpush1.msra.mxu0 0.0
    %1568 = vmatprep.subr.mxu0 0.0
    %1569 = vmatpush1.msra.mxu0 0.0
    %1570 = vmatprep.subr.mxu0 0.0
    %1571 = vmatpush1.msra.mxu0 0.0
    %1572 = vmatprep.subr.mxu0 0.0
    %1573 = vmatpush1.msra.mxu0 0.0
    %1574 = vmatprep.mubr.f32.mxu0 0.0
    %1575 = vmatmul.mubr.f32.gmra.mrb[0].mxu0 %v1508
    %v1576 = vpop.f32.mrb[0].mxu0
    %v1577 = vadd.f32 0.0, %v1576
    %v1578 = vpop.f32.mrb[0].mxu0
    %1579 = vdwg.mxu0
    %v1581 = vsel %vm1433, %v1427, 0
    %1583 = vmatprep.subr.mxu0 0.0
    %1584 = vmatpush1.msra.mxu0 %v89
    %1585 = vmatprep.subr.mxu0 0.0
    %1586 = vmatpush1.msra.mxu0 0.0
    %1587 = vmatprep.subr.mxu0 0.0
    %1588 = vmatpush1.msra.mxu0 0.0
    %1589 = vmatprep.subr.mxu0 0.0
    %1590 = vmatpush1.msra.mxu0 0.0
    %1591 = vmatprep.subr.mxu0 0.0
    %1592 = vmatpush1.msra.mxu0 0.0
    %1593 = vmatprep.subr.mxu0 0.0
    %1594 = vmatpush1.msra.mxu0 0.0
    %1595 = vmatprep.subr.mxu0 0.0
    %1596 = vmatpush1.msra.mxu0 0.0
    %1597 = vmatprep.subr.mxu0 0.0
    %1598 = vmatpush1.msra.mxu0 0.0
    %1599 = vmatprep.subr.mxu0 0.0
    %1600 = vmatpush1.msra.mxu0 0.0
    %1601 = vmatprep.subr.mxu0 0.0
    %1602 = vmatpush1.msra.mxu0 0.0
    %1603 = vmatprep.subr.mxu0 0.0
    %1604 = vmatpush1.msra.mxu0 0.0
    %1605 = vmatprep.subr.mxu0 0.0
    %1606 = vmatpush1.msra.mxu0 0.0
    %1607 = vmatprep.subr.mxu0 0.0
    %1608 = vmatpush1.msra.mxu0 0.0
    %1609 = vmatprep.subr.mxu0 0.0
    %1610 = vmatpush1.msra.mxu0 0.0
    %1611 = vmatprep.subr.mxu0 0.0
    %1612 = vmatpush1.msra.mxu0 0.0
    %1613 = vmatprep.subr.mxu0 0.0
    %1614 = vmatpush1.msra.mxu0 0.0
    %1615 = vmatprep.subr.mxu0 0.0
    %1616 = vmatpush1.msra.mxu0 0.0
    %1617 = vmatprep.subr.mxu0 0.0
    %1618 = vmatpush1.msra.mxu0 0.0
    %1619 = vmatprep.subr.mxu0 0.0
    %1620 = vmatpush1.msra.mxu0 0.0
    %1621 = vmatprep.subr.mxu0 0.0
    %1622 = vmatpush1.msra.mxu0 0.0
    %1623 = vmatprep.subr.mxu0 0.0
    %1624 = vmatpush1.msra.mxu0 0.0
    %1625 = vmatprep.subr.mxu0 0.0
    %1626 = vmatpush1.msra.mxu0 0.0
    %1627 = vmatprep.subr.mxu0 0.0
    %1628 = vmatpush1.msra.mxu0 0.0
    %1629 = vmatprep.subr.mxu0 0.0
    %1630 = vmatpush1.msra.mxu0 0.0
    %1631 = vmatprep.subr.mxu0 0.0
    %1632 = vmatpush1.msra.mxu0 0.0
    %1633 = vmatprep.subr.mxu0 0.0
    %1634 = vmatpush1.msra.mxu0 0.0
    %1635 = vmatprep.subr.mxu0 0.0
    %1636 = vmatpush1.msra.mxu0 0.0
    %1637 = vmatprep.subr.mxu0 0.0
    %1638 = vmatpush1.msra.mxu0 0.0
    %1639 = vmatprep.subr.mxu0 0.0
    %1640 = vmatpush1.msra.mxu0 0.0
    %1641 = vmatprep.subr.mxu0 0.0
    %1642 = vmatpush1.msra.mxu0 0.0
    %1643 = vmatprep.subr.mxu0 0.0
    %1644 = vmatpush1.msra.mxu0 0.0
    %1645 = vmatprep.subr.mxu0 0.0
    %1646 = vmatpush1.msra.mxu0 0.0
    %1647 = vmatprep.mubr.f32.mxu0 0.0
    %1648 = vmatmul.mubr.f32.gmra.mrb[0].mxu0 %v1581
    %v1649 = vpop.f32.mrb[0].mxu0
    %v1650 = vadd.f32 0.0, %v1649
    %v1651 = vpop.f32.mrb[0].mxu0
    %1652 = vdwg.mxu0
    %v1654 = vsel %vm1433, %v1428, 0
    %1656 = vmatprep.subr.mxu0 0.0
    %1657 = vmatpush1.msra.mxu0 %v90
    %1658 = vmatprep.subr.mxu0 0.0
    %1659 = vmatpush1.msra.mxu0 0.0
    %1660 = vmatprep.subr.mxu0 0.0
    %1661 = vmatpush1.msra.mxu0 0.0
    %1662 = vmatprep.subr.mxu0 0.0
    %1663 = vmatpush1.msra.mxu0 0.0
    %1664 = vmatprep.subr.mxu0 0.0
    %1665 = vmatpush1.msra.mxu0 0.0
    %1666 = vmatprep.subr.mxu0 0.0
    %1667 = vmatpush1.msra.mxu0 0.0
    %1668 = vmatprep.subr.mxu0 0.0
    %1669 = vmatpush1.msra.mxu0 0.0
    %1670 = vmatprep.subr.mxu0 0.0
    %1671 = vmatpush1.msra.mxu0 0.0
    %1672 = vmatprep.subr.mxu0 0.0
    %1673 = vmatpush1.msra.mxu0 0.0
    %1674 = vmatprep.subr.mxu0 0.0
    %1675 = vmatpush1.msra.mxu0 0.0
    %1676 = vmatprep.subr.mxu0 0.0
    %1677 = vmatpush1.msra.mxu0 0.0
    %1678 = vmatprep.subr.mxu0 0.0
    %1679 = vmatpush1.msra.mxu0 0.0
    %1680 = vmatprep.subr.mxu0 0.0
    %1681 = vmatpush1.msra.mxu0 0.0
    %1682 = vmatprep.subr.mxu0 0.0
    %1683 = vmatpush1.msra.mxu0 0.0
    %1684 = vmatprep.subr.mxu0 0.0
    %1685 = vmatpush1.msra.mxu0 0.0
    %1686 = vmatprep.subr.mxu0 0.0
    %1687 = vmatpush1.msra.mxu0 0.0
    %1688 = vmatprep.subr.mxu0 0.0
    %1689 = vmatpush1.msra.mxu0 0.0
    %1690 = vmatprep.subr.mxu0 0.0
    %1691 = vmatpush1.msra.mxu0 0.0
    %1692 = vmatprep.subr.mxu0 0.0
    %1693 = vmatpush1.msra.mxu0 0.0
    %1694 = vmatprep.subr.mxu0 0.0
    %1695 = vmatpush1.msra.mxu0 0.0
    %1696 = vmatprep.subr.mxu0 0.0
    %1697 = vmatpush1.msra.mxu0 0.0
    %1698 = vmatprep.subr.mxu0 0.0
    %1699 = vmatpush1.msra.mxu0 0.0
    %1700 = vmatprep.subr.mxu0 0.0
    %1701 = vmatpush1.msra.mxu0 0.0
    %1702 = vmatprep.subr.mxu0 0.0
    %1703 = vmatpush1.msra.mxu0 0.0
    %1704 = vmatprep.subr.mxu0 0.0
    %1705 = vmatpush1.msra.mxu0 0.0
    %1706 = vmatprep.subr.mxu0 0.0
    %1707 = vmatpush1.msra.mxu0 0.0
    %1708 = vmatprep.subr.mxu0 0.0
    %1709 = vmatpush1.msra.mxu0 0.0
    %1710 = vmatprep.subr.mxu0 0.0
    %1711 = vmatpush1.msra.mxu0 0.0
    %1712 = vmatprep.subr.mxu0 0.0
    %1713 = vmatpush1.msra.mxu0 0.0
    %1714 = vmatprep.subr.mxu0 0.0
    %1715 = vmatpush1.msra.mxu0 0.0
    %1716 = vmatprep.subr.mxu0 0.0
    %1717 = vmatpush1.msra.mxu0 0.0
    %1718 = vmatprep.subr.mxu0 0.0
    %1719 = vmatpush1.msra.mxu0 0.0
    %1720 = vmatprep.mubr.f32.mxu0 0.0
    %1721 = vmatmul.mubr.f32.gmra.mrb[0].mxu0 %v1654
    %v1722 = vpop.f32.mrb[0].mxu0
    %v1723 = vadd.f32 0.0, %v1722
    %v1724 = vpop.f32.mrb[0].mxu0
    %1725 = vdwg.mxu0
    %v1727 = vsel %vm1433, %v1429, 0
    %1729 = vmatprep.subr.mxu0 0.0
    %1730 = vmatpush1.msra.mxu0 %v91
    %1731 = vmatprep.subr.mxu0 0.0
    %1732 = vmatpush1.msra.mxu0 0.0
    %1733 = vmatprep.subr.mxu0 0.0
    %1734 = vmatpush1.msra.mxu0 0.0
    %1735 = vmatprep.subr.mxu0 0.0
    %1736 = vmatpush1.msra.mxu0 0.0
    %1737 = vmatprep.subr.mxu0 0.0
    %1738 = vmatpush1.msra.mxu0 0.0
    %1739 = vmatprep.subr.mxu0 0.0
    %1740 = vmatpush1.msra.mxu0 0.0
    %1741 = vmatprep.subr.mxu0 0.0
    %1742 = vmatpush1.msra.mxu0 0.0
    %1743 = vmatprep.subr.mxu0 0.0
    %1744 = vmatpush1.msra.mxu0 0.0
    %1745 = vmatprep.subr.mxu0 0.0
    %1746 = vmatpush1.msra.mxu0 0.0
    %1747 = vmatprep.subr.mxu0 0.0
    %1748 = vmatpush1.msra.mxu0 0.0
    %1749 = vmatprep.subr.mxu0 0.0
    %1750 = vmatpush1.msra.mxu0 0.0
    %1751 = vmatprep.subr.mxu0 0.0
    %1752 = vmatpush1.msra.mxu0 0.0
    %1753 = vmatprep.subr.mxu0 0.0
    %1754 = vmatpush1.msra.mxu0 0.0
    %1755 = vmatprep.subr.mxu0 0.0
    %1756 = vmatpush1.msra.mxu0 0.0
    %1757 = vmatprep.subr.mxu0 0.0
    %1758 = vmatpush1.msra.mxu0 0.0
    %1759 = vmatprep.subr.mxu0 0.0
    %1760 = vmatpush1.msra.mxu0 0.0
    %1761 = vmatprep.subr.mxu0 0.0
    %1762 = vmatpush1.msra.mxu0 0.0
    %1763 = vmatprep.subr.mxu0 0.0
    %1764 = vmatpush1.msra.mxu0 0.0
    %1765 = vmatprep.subr.mxu0 0.0
    %1766 = vmatpush1.msra.mxu0 0.0
    %1767 = vmatprep.subr.mxu0 0.0
    %1768 = vmatpush1.msra.mxu0 0.0
    %1769 = vmatprep.subr.mxu0 0.0
    %1770 = vmatpush1.msra.mxu0 0.0
    %1771 = vmatprep.subr.mxu0 0.0
    %1772 = vmatpush1.msra.mxu0 0.0
    %1773 = vmatprep.subr.mxu0 0.0
    %1774 = vmatpush1.msra.mxu0 0.0
    %1775 = vmatprep.subr.mxu0 0.0
    %1776 = vmatpush1.msra.mxu0 0.0
    %1777 = vmatprep.subr.mxu0 0.0
    %1778 = vmatpush1.msra.mxu0 0.0
    %1779 = vmatprep.subr.mxu0 0.0
    %1780 = vmatpush1.msra.mxu0 0.0
    %1781 = vmatprep.subr.mxu0 0.0
    %1782 = vmatpush1.msra.mxu0 0.0
    %1783 = vmatprep.subr.mxu0 0.0
    %1784 = vmatpush1.msra.mxu0 0.0
    %1785 = vmatprep.subr.mxu0 0.0
    %1786 = vmatpush1.msra.mxu0 0.0
    %1787 = vmatprep.subr.mxu0 0.0
    %1788 = vmatpush1.msra.mxu0 0.0
    %1789 = vmatprep.subr.mxu0 0.0
    %1790 = vmatpush1.msra.mxu0 0.0
    %1791 = vmatprep.subr.mxu0 0.0
    %1792 = vmatpush1.msra.mxu0 0.0
    %1793 = vmatprep.mubr.f32.mxu0 0.0
    %1794 = vmatmul.mubr.f32.gmra.mrb[0].mxu0 %v1727
    %v1795 = vpop.f32.mrb[0].mxu0
    %v1796 = vadd.f32 0.0, %v1795
    %v1797 = vpop.f32.mrb[0].mxu0
    %1798 = vdwg.mxu0
    %v1800 = vsel %vm1433, %v1430, 0
    %1802 = vmatprep.subr.mxu0 0.0
    %1803 = vmatpush1.msra.mxu0 %v92
    %1804 = vmatprep.subr.mxu0 0.0
    %1805 = vmatpush1.msra.mxu0 0.0
    %1806 = vmatprep.subr.mxu0 0.0
    %1807 = vmatpush1.msra.mxu0 0.0
    %1808 = vmatprep.subr.mxu0 0.0
    %1809 = vmatpush1.msra.mxu0 0.0
    %1810 = vmatprep.subr.mxu0 0.0
    %1811 = vmatpush1.msra.mxu0 0.0
    %1812 = vmatprep.subr.mxu0 0.0
    %1813 = vmatpush1.msra.mxu0 0.0
    %1814 = vmatprep.subr.mxu0 0.0
    %1815 = vmatpush1.msra.mxu0 0.0
    %1816 = vmatprep.subr.mxu0 0.0
    %1817 = vmatpush1.msra.mxu0 0.0
    %1818 = vmatprep.subr.mxu0 0.0
    %1819 = vmatpush1.msra.mxu0 0.0
    %1820 = vmatprep.subr.mxu0 0.0
    %1821 = vmatpush1.msra.mxu0 0.0
    %1822 = vmatprep.subr.mxu0 0.0
    %1823 = vmatpush1.msra.mxu0 0.0
    %1824 = vmatprep.subr.mxu0 0.0
    %1825 = vmatpush1.msra.mxu0 0.0
    %1826 = vmatprep.subr.mxu0 0.0
    %1827 = vmatpush1.msra.mxu0 0.0
    %1828 = vmatprep.subr.mxu0 0.0
    %1829 = vmatpush1.msra.mxu0 0.0
    %1830 = vmatprep.subr.mxu0 0.0
    %1831 = vmatpush1.msra.mxu0 0.0
    %1832 = vmatprep.subr.mxu0 0.0
    %1833 = vmatpush1.msra.mxu0 0.0
    %1834 = vmatprep.subr.mxu0 0.0
    %1835 = vmatpush1.msra.mxu0 0.0
    %1836 = vmatprep.subr.mxu0 0.0
    %1837 = vmatpush1.msra.mxu0 0.0
    %1838 = vmatprep.subr.mxu0 0.0
    %1839 = vmatpush1.msra.mxu0 0.0
    %1840 = vmatprep.subr.mxu0 0.0
    %1841 = vmatpush1.msra.mxu0 0.0
    %1842 = vmatprep.subr.mxu0 0.0
    %1843 = vmatpush1.msra.mxu0 0.0
    %1844 = vmatprep.subr.mxu0 0.0
    %1845 = vmatpush1.msra.mxu0 0.0
    %1846 = vmatprep.subr.mxu0 0.0
    %1847 = vmatpush1.msra.mxu0 0.0
    %1848 = vmatprep.subr.mxu0 0.0
    %1849 = vmatpush1.msra.mxu0 0.0
    %1850 = vmatprep.subr.mxu0 0.0
    %1851 = vmatpush1.msra.mxu0 0.0
    %1852 = vmatprep.subr.mxu0 0.0
    %1853 = vmatpush1.msra.mxu0 0.0
    %1854 = vmatprep.subr.mxu0 0.0
    %1855 = vmatpush1.msra.mxu0 0.0
    %1856 = vmatprep.subr.mxu0 0.0
    %1857 = vmatpush1.msra.mxu0 0.0
    %1858 = vmatprep.subr.mxu0 0.0
    %1859 = vmatpush1.msra.mxu0 0.0
    %1860 = vmatprep.subr.mxu0 0.0
    %1861 = vmatpush1.msra.mxu0 0.0
    %1862 = vmatprep.subr.mxu0 0.0
    %1863 = vmatpush1.msra.mxu0 0.0
    %1864 = vmatprep.subr.mxu0 0.0
    %1865 = vmatpush1.msra.mxu0 0.0
    %1866 = vmatprep.mubr.f32.mxu0 0.0
    %1867 = vmatmul.mubr.f32.gmra.mrb[0].mxu0 %v1800
    %v1868 = vpop.f32.mrb[0].mxu0
    %v1869 = vadd.f32 0.0, %v1868
    %v1870 = vpop.f32.mrb[0].mxu0
    %1871 = vdwg.mxu0
    %v1873 = vsel %vm1433, %v1431, 0
    %1875 = vmatprep.subr.mxu0 0.0
    %1876 = vmatpush1.msra.mxu0 %v93
    %1877 = vmatprep.subr.mxu0 0.0
    %1878 = vmatpush1.msra.mxu0 0.0
    %1879 = vmatprep.subr.mxu0 0.0
    %1880 = vmatpush1.msra.mxu0 0.0
    %1881 = vmatprep.subr.mxu0 0.0
    %1882 = vmatpush1.msra.mxu0 0.0
    %1883 = vmatprep.subr.mxu0 0.0
    %1884 = vmatpush1.msra.mxu0 0.0
    %1885 = vmatprep.subr.mxu0 0.0
    %1886 = vmatpush1.msra.mxu0 0.0
    %1887 = vmatprep.subr.mxu0 0.0
    %1888 = vmatpush1.msra.mxu0 0.0
    %1889 = vmatprep.subr.mxu0 0.0
    %1890 = vmatpush1.msra.mxu0 0.0
    %1891 = vmatprep.subr.mxu0 0.0
    %1892 = vmatpush1.msra.mxu0 0.0
    %1893 = vmatprep.subr.mxu0 0.0
    %1894 = vmatpush1.msra.mxu0 0.0
    %1895 = vmatprep.subr.mxu0 0.0
    %1896 = vmatpush1.msra.mxu0 0.0
    %1897 = vmatprep.subr.mxu0 0.0
    %1898 = vmatpush1.msra.mxu0 0.0
    %1899 = vmatprep.subr.mxu0 0.0
    %1900 = vmatpush1.msra.mxu0 0.0
    %1901 = vmatprep.subr.mxu0 0.0
    %1902 = vmatpush1.msra.mxu0 0.0
    %1903 = vmatprep.subr.mxu0 0.0
    %1904 = vmatpush1.msra.mxu0 0.0
    %1905 = vmatprep.subr.mxu0 0.0
    %1906 = vmatpush1.msra.mxu0 0.0
    %1907 = vmatprep.subr.mxu0 0.0
    %1908 = vmatpush1.msra.mxu0 0.0
    %1909 = vmatprep.subr.mxu0 0.0
    %1910 = vmatpush1.msra.mxu0 0.0
    %1911 = vmatprep.subr.mxu0 0.0
    %1912 = vmatpush1.msra.mxu0 0.0
    %1913 = vmatprep.subr.mxu0 0.0
    %1914 = vmatpush1.msra.mxu0 0.0
    %1915 = vmatprep.subr.mxu0 0.0
    %1916 = vmatpush1.msra.mxu0 0.0
    %1917 = vmatprep.subr.mxu0 0.0
    %1918 = vmatpush1.msra.mxu0 0.0
    %1919 = vmatprep.subr.mxu0 0.0
    %1920 = vmatpush1.msra.mxu0 0.0
    %1921 = vmatprep.subr.mxu0 0.0
    %1922 = vmatpush1.msra.mxu0 0.0
    %1923 = vmatprep.subr.mxu0 0.0
    %1924 = vmatpush1.msra.mxu0 0.0
    %1925 = vmatprep.subr.mxu0 0.0
    %1926 = vmatpush1.msra.mxu0 0.0
    %1927 = vmatprep.subr.mxu0 0.0
    %1928 = vmatpush1.msra.mxu0 0.0
    %1929 = vmatprep.subr.mxu0 0.0
    %1930 = vmatpush1.msra.mxu0 0.0
    %1931 = vmatprep.subr.mxu0 0.0
    %1932 = vmatpush1.msra.mxu0 0.0
    %1933 = vmatprep.subr.mxu0 0.0
    %1934 = vmatpush1.msra.mxu0 0.0
    %1935 = vmatprep.subr.mxu0 0.0
    %1936 = vmatpush1.msra.mxu0 0.0
    %1937 = vmatprep.subr.mxu0 0.0
    %1938 = vmatpush1.msra.mxu0 0.0
    %1939 = vmatprep.mubr.f32.mxu0 0.0
    %1940 = vmatmul.mubr.f32.gmra.mrb[0].mxu0 %v1873
    %v1941 = vpop.f32.mrb[0].mxu0
    %v1942 = vadd.f32 0.0, %v1941
    %v1943 = vpop.f32.mrb[0].mxu0
    %1944 = vdwg.mxu0
    %v1946 = vsel %vm1433, %v1432, 0
    %1948 = vmatprep.subr.mxu0 0.0
    %1949 = vmatpush1.msra.mxu0 %v94
    %1950 = vmatprep.subr.mxu0 0.0
    %1951 = vmatpush1.msra.mxu0 0.0
    %1952 = vmatprep.subr.mxu0 0.0
    %1953 = vmatpush1.msra.mxu0 0.0
    %1954 = vmatprep.subr.mxu0 0.0
    %1955 = vmatpush1.msra.mxu0 0.0
    %1956 = vmatprep.subr.mxu0 0.0
    %1957 = vmatpush1.msra.mxu0 0.0
    %1958 = vmatprep.subr.mxu0 0.0
    %1959 = vmatpush1.msra.mxu0 0.0
    %1960 = vmatprep.subr.mxu0 0.0
    %1961 = vmatpush1.msra.mxu0 0.0
    %1962 = vmatprep.subr.mxu0 0.0
    %1963 = vmatpush1.msra.mxu0 0.0
    %1964 = vmatprep.subr.mxu0 0.0
    %1965 = vmatpush1.msra.mxu0 0.0
    %1966 = vmatprep.subr.mxu0 0.0
    %1967 = vmatpush1.msra.mxu0 0.0
    %1968 = vmatprep.subr.mxu0 0.0
    %1969 = vmatpush1.msra.mxu0 0.0
    %1970 = vmatprep.subr.mxu0 0.0
    %1971 = vmatpush1.msra.mxu0 0.0
    %1972 = vmatprep.subr.mxu0 0.0
    %1973 = vmatpush1.msra.mxu0 0.0
    %1974 = vmatprep.subr.mxu0 0.0
    %1975 = vmatpush1.msra.mxu0 0.0
    %1976 = vmatprep.subr.mxu0 0.0
    %1977 = vmatpush1.msra.mxu0 0.0
    %1978 = vmatprep.subr.mxu0 0.0
    %1979 = vmatpush1.msra.mxu0 0.0
    %1980 = vmatprep.subr.mxu0 0.0
    %1981 = vmatpush1.msra.mxu0 0.0
    %1982 = vmatprep.subr.mxu0 0.0
    %1983 = vmatpush1.msra.mxu0 0.0
    %1984 = vmatprep.subr.mxu0 0.0
    %1985 = vmatpush1.msra.mxu0 0.0
    %1986 = vmatprep.subr.mxu0 0.0
    %1987 = vmatpush1.msra.mxu0 0.0
    %1988 = vmatprep.subr.mxu0 0.0
    %1989 = vmatpush1.msra.mxu0 0.0
    %1990 = vmatprep.subr.mxu0 0.0
    %1991 = vmatpush1.msra.mxu0 0.0
    %1992 = vmatprep.subr.mxu0 0.0
    %1993 = vmatpush1.msra.mxu0 0.0
    %1994 = vmatprep.subr.mxu0 0.0
    %1995 = vmatpush1.msra.mxu0 0.0
    %1996 = vmatprep.subr.mxu0 0.0
    %1997 = vmatpush1.msra.mxu0 0.0
    %1998 = vmatprep.subr.mxu0 0.0
    %1999 = vmatpush1.msra.mxu0 0.0
    %2000 = vmatprep.subr.mxu0 0.0
    %2001 = vmatpush1.msra.mxu0 0.0
    %2002 = vmatprep.subr.mxu0 0.0
    %2003 = vmatpush1.msra.mxu0 0.0
    %2004 = vmatprep.subr.mxu0 0.0
    %2005 = vmatpush1.msra.mxu0 0.0
    %2006 = vmatprep.subr.mxu0 0.0
    %2007 = vmatpush1.msra.mxu0 0.0
    %2008 = vmatprep.subr.mxu0 0.0
    %2009 = vmatpush1.msra.mxu0 0.0
    %2010 = vmatprep.subr.mxu0 0.0
    %2011 = vmatpush1.msra.mxu0 0.0
    %2012 = vmatprep.mubr.f32.mxu0 0.0
    %2013 = vmatmul.mubr.f32.gmra.mrb[0].mxu0 %v1946
    %v2014 = vpop.f32.mrb[0].mxu0
    %v2015 = vadd.f32 0.0, %v2014
    %v2016 = vpop.f32.mrb[0].mxu0
    %2017 = vdwg.mxu0
    %v2026 = vrot.slane %v1577, 7
    %v2027 = vsel %vm304, %v2026, %v1504
    %v2028 = vrot.slane %v1650, 6
    %v2029 = vsel %vm306, %v2028, %v2027
    %v2030 = vrot.slane %v1723, 5
    %v2031 = vsel %vm308, %v2030, %v2029
    %v2032 = vrot.slane %v1796, 4
    %v2033 = vsel %vm310, %v2032, %v2031
    %v2034 = vrot.slane %v1869, 3
    %v2035 = vsel %vm312, %v2034, %v2033
    %v2036 = vrot.slane %v1942, 2
    %v2037 = vsel %vm314, %v2036, %v2035
    %v2038 = vrot.slane %v2015, 1
    %v2039 = vsel %vm316, %v2038, %v2037
    %v2041 = vrot.slane %v1504, 1
    %v2042 = vsel %vm304, %v1577, %v2041
    %v2043 = vrot.slane %v1650, 7
    %v2044 = vsel %vm306, %v2043, %v2042
    %v2045 = vrot.slane %v1723, 6
    %v2046 = vsel %vm308, %v2045, %v2044
    %v2047 = vrot.slane %v1796, 5
    %v2048 = vsel %vm310, %v2047, %v2046
    %v2049 = vrot.slane %v1869, 4
    %v2050 = vsel %vm312, %v2049, %v2048
    %v2051 = vrot.slane %v1942, 3
    %v2052 = vsel %vm314, %v2051, %v2050
    %v2053 = vrot.slane %v2015, 2
    %v2054 = vsel %vm316, %v2053, %v2052
    %2055 = vrot.lane.b32.xlu0 %v2054, 32
    %v2056 = vpop.permute.xlu0 %2055
    %v2058 = vsel %vm228, %v2039, %v2056
    %v2059 = vld [vmem:[%s6] sm:$0xff]
    %v2060 = vld [vmem:[%s6 + $0x8] sm:$0xff]
    %v2061 = vld [vmem:[%s6 + $0x10] sm:$0xff]
    %v2062 = vld [vmem:[%s6 + $0x18] sm:$0xff]
    %v2063 = vld [vmem:[%s6 + $0x20] sm:$0xff]
    %v2064 = vld [vmem:[%s6 + $0x28] sm:$0xff]
    %v2065 = vld [vmem:[%s6 + $0x30] sm:$0xff]
    %v2066 = vld [vmem:[%s6 + $0x38] sm:$0xff]
    %v2067 = vld [vmem:[#allocation8] sm:$0x1]
    %v2069 = vlaneseq
    %v2070 = vshrl.u32 %v2069, 7
    %v2071 = vsub.s32 0, %v2070
    %v2072 = vrot.slane %v2067, %v2071
    %v2075 = vsel %vm639, %v2058, 0
    %2077 = vmatprep.subr.mxu0 0.0
    %2078 = vmatpush1.msra.mxu0 %v2059
    %2079 = vmatprep.subr.mxu0 0.0
    %2080 = vmatpush1.msra.mxu0 %v2060
    %2081 = vmatprep.subr.mxu0 0.0
    %2082 = vmatpush1.msra.mxu0 %v2061
    %2083 = vmatprep.subr.mxu0 0.0
    %2084 = vmatpush1.msra.mxu0 %v2062
    %2085 = vmatprep.subr.mxu0 0.0
    %2086 = vmatpush1.msra.mxu0 %v2063
    %2087 = vmatprep.subr.mxu0 0.0
    %2088 = vmatpush1.msra.mxu0 %v2064
    %2089 = vmatprep.subr.mxu0 0.0
    %2090 = vmatpush1.msra.mxu0 %v2065
    %2091 = vmatprep.subr.mxu0 0.0
    %2092 = vmatpush1.msra.mxu0 %v2066
    %2093 = vmatprep.subr.mxu0 0.0
    %2094 = vmatpush1.msra.mxu0 0.0
    %2095 = vmatprep.subr.mxu0 0.0
    %2096 = vmatpush1.msra.mxu0 0.0
    %2097 = vmatprep.subr.mxu0 0.0
    %2098 = vmatpush1.msra.mxu0 0.0
    %2099 = vmatprep.subr.mxu0 0.0
    %2100 = vmatpush1.msra.mxu0 0.0
    %2101 = vmatprep.subr.mxu0 0.0
    %2102 = vmatpush1.msra.mxu0 0.0
    %2103 = vmatprep.subr.mxu0 0.0
    %2104 = vmatpush1.msra.mxu0 0.0
    %2105 = vmatprep.subr.mxu0 0.0
    %2106 = vmatpush1.msra.mxu0 0.0
    %2107 = vmatprep.subr.mxu0 0.0
    %2108 = vmatpush1.msra.mxu0 0.0
    %2109 = vmatprep.subr.mxu0 0.0
    %2110 = vmatpush1.msra.mxu0 0.0
    %2111 = vmatprep.subr.mxu0 0.0
    %2112 = vmatpush1.msra.mxu0 0.0
    %2113 = vmatprep.subr.mxu0 0.0
    %2114 = vmatpush1.msra.mxu0 0.0
    %2115 = vmatprep.subr.mxu0 0.0
    %2116 = vmatpush1.msra.mxu0 0.0
    %2117 = vmatprep.subr.mxu0 0.0
    %2118 = vmatpush1.msra.mxu0 0.0
    %2119 = vmatprep.subr.mxu0 0.0
    %2120 = vmatpush1.msra.mxu0 0.0
    %2121 = vmatprep.subr.mxu0 0.0
    %2122 = vmatpush1.msra.mxu0 0.0
    %2123 = vmatprep.subr.mxu0 0.0
    %2124 = vmatpush1.msra.mxu0 0.0
    %2125 = vmatprep.subr.mxu0 0.0
    %2126 = vmatpush1.msra.mxu0 0.0
    %2127 = vmatprep.subr.mxu0 0.0
    %2128 = vmatpush1.msra.mxu0 0.0
    %2129 = vmatprep.subr.mxu0 0.0
    %2130 = vmatpush1.msra.mxu0 0.0
    %2131 = vmatprep.subr.mxu0 0.0
    %2132 = vmatpush1.msra.mxu0 0.0
    %2133 = vmatprep.subr.mxu0 0.0
    %2134 = vmatpush1.msra.mxu0 0.0
    %2135 = vmatprep.subr.mxu0 0.0
    %2136 = vmatpush1.msra.mxu0 0.0
    %2137 = vmatprep.subr.mxu0 0.0
    %2138 = vmatpush1.msra.mxu0 0.0
    %2139 = vmatprep.subr.mxu0 0.0
    %2140 = vmatpush1.msra.mxu0 0.0
    %2141 = vmatprep.mubr.f32.mxu0 0.0
    %2142 = vmatmul.mubr.f32.gmra.mrb[0].mxu0 %v2075
    %v2143 = vpop.f32.mrb[0].mxu0
    %v2144 = vadd.f32 %v2072, %v2143
    %v2145 = vpop.f32.mrb[0].mxu0
    %2146 = vdwg.mxu0
    %v2147 = vsel %vm228, %v2144, 0.0
    %2148 = vadd.xlane.f32.xlu0 %v2147
    %v2149 = vpop.xlane.xlu0 %2148
    %v2150 = vrcp.pop 32.0
    %v2151 = vmul.f32 %v2149, %v2150
    %v2152 = vsub.f32 %v2144, %v2151
    %v2153 = vmul.f32 %v2152, %v2152
    %v2154 = vsel %vm228, %v2153, 0.0
    %2155 = vadd.xlane.f32.xlu0 %v2154
    %v2156 = vpop.xlane.xlu0 %2155
    %v2157 = vmul.f32 %v2156, %v2150
    %v2158 = vadd.f32 %v2157, 1e-05
    %v2159 = vrsqrt.pop %v2158
    %v2160 = vmul.f32 %v2152, %v2159
    %v2161 = vld [vmem:[%s8] sm:$0xff]
    %v2162 = vld [vmem:[%s8 + $0x8] sm:$0xff]
    %v2163 = vld [vmem:[%s8 + $0x10] sm:$0xff]
    %v2164 = vld [vmem:[%s8 + $0x18] sm:$0xff]
    %v2165 = vld [vmem:[%s9] sm:$0x1]
    %v2167 = vlaneseq
    %v2168 = vshrl.u32 %v2167, 7
    %v2169 = vsub.s32 0, %v2168
    %v2170 = vrot.slane %v2165, %v2169
    %v2173 = vsel %vm228, %v2160, 0
    %2175 = vmatprep.subr.mxu0 0.0
    %2176 = vmatpush1.msra.mxu0 %v2161
    %2177 = vmatprep.subr.mxu0 0.0
    %2178 = vmatpush1.msra.mxu0 %v2162
    %2179 = vmatprep.subr.mxu0 0.0
    %2180 = vmatpush1.msra.mxu0 %v2163
    %2181 = vmatprep.subr.mxu0 0.0
    %2182 = vmatpush1.msra.mxu0 %v2164
    %2183 = vmatprep.subr.mxu0 0.0
    %2184 = vmatpush1.msra.mxu0 0.0
    %2185 = vmatprep.subr.mxu0 0.0
    %2186 = vmatpush1.msra.mxu0 0.0
    %2187 = vmatprep.subr.mxu0 0.0
    %2188 = vmatpush1.msra.mxu0 0.0
    %2189 = vmatprep.subr.mxu0 0.0
    %2190 = vmatpush1.msra.mxu0 0.0
    %2191 = vmatprep.subr.mxu0 0.0
    %2192 = vmatpush1.msra.mxu0 0.0
    %2193 = vmatprep.subr.mxu0 0.0
    %2194 = vmatpush1.msra.mxu0 0.0
    %2195 = vmatprep.subr.mxu0 0.0
    %2196 = vmatpush1.msra.mxu0 0.0
    %2197 = vmatprep.subr.mxu0 0.0
    %2198 = vmatpush1.msra.mxu0 0.0
    %2199 = vmatprep.subr.mxu0 0.0
    %2200 = vmatpush1.msra.mxu0 0.0
    %2201 = vmatprep.subr.mxu0 0.0
    %2202 = vmatpush1.msra.mxu0 0.0
    %2203 = vmatprep.subr.mxu0 0.0
    %2204 = vmatpush1.msra.mxu0 0.0
    %2205 = vmatprep.subr.mxu0 0.0
    %2206 = vmatpush1.msra.mxu0 0.0
    %2207 = vmatprep.subr.mxu0 0.0
    %2208 = vmatpush1.msra.mxu0 0.0
    %2209 = vmatprep.subr.mxu0 0.0
    %2210 = vmatpush1.msra.mxu0 0.0
    %2211 = vmatprep.subr.mxu0 0.0
    %2212 = vmatpush1.msra.mxu0 0.0
    %2213 = vmatprep.subr.mxu0 0.0
    %2214 = vmatpush1.msra.mxu0 0.0
    %2215 = vmatprep.subr.mxu0 0.0
    %2216 = vmatpush1.msra.mxu0 0.0
    %2217 = vmatprep.subr.mxu0 0.0
    %2218 = vmatpush1.msra.mxu0 0.0
    %2219 = vmatprep.subr.mxu0 0.0
    %2220 = vmatpush1.msra.mxu0 0.0
    %2221 = vmatprep.subr.mxu0 0.0
    %2222 = vmatpush1.msra.mxu0 0.0
    %2223 = vmatprep.subr.mxu0 0.0
    %2224 = vmatpush1.msra.mxu0 0.0
    %2225 = vmatprep.subr.mxu0 0.0
    %2226 = vmatpush1.msra.mxu0 0.0
    %2227 = vmatprep.subr.mxu0 0.0
    %2228 = vmatpush1.msra.mxu0 0.0
    %2229 = vmatprep.subr.mxu0 0.0
    %2230 = vmatpush1.msra.mxu0 0.0
    %2231 = vmatprep.subr.mxu0 0.0
    %2232 = vmatpush1.msra.mxu0 0.0
    %2233 = vmatprep.subr.mxu0 0.0
    %2234 = vmatpush1.msra.mxu0 0.0
    %2235 = vmatprep.subr.mxu0 0.0
    %2236 = vmatpush1.msra.mxu0 0.0
    %2237 = vmatprep.subr.mxu0 0.0
    %2238 = vmatpush1.msra.mxu0 0.0
    %2239 = vmatprep.mubr.f32.mxu0 0.0
    %2240 = vmatmul.mubr.f32.gmra.mrb[0].mxu0 %v2173
    %v2241 = vpop.f32.mrb[0].mxu0
    %v2242 = vadd.f32 %v2170, %v2241
    %v2243 = vpop.f32.mrb[0].mxu0
    %2244 = vdwg.mxu0
    %v2245 = vmax.f32 %v2242, 0.0
    %v2246 = vsel %vm228, %v2245, 0.0
    %2247 = vadd.xlane.f32.xlu0 %v2246
    %v2248 = vpop.xlane.xlu0 %2247
    %v2249 = vmul.f32 %v2248, %v2150
    %v2250 = vsub.f32 %v2245, %v2249
    %v2251 = vmul.f32 %v2250, %v2250
    %v2252 = vsel %vm228, %v2251, 0.0
    %2253 = vadd.xlane.f32.xlu0 %v2252
    %v2254 = vpop.xlane.xlu0 %2253
    %v2255 = vmul.f32 %v2254, %v2150
    %v2256 = vadd.f32 %v2255, 1e-05
    %v2257 = vrsqrt.pop %v2256
    %v2258 = vmul.f32 %v2250, %v2257
    %s2259 = scalar_lea.vmem %s8, 32
    %v2260 = vld [vmem:[%s2259] sm:$0xff]
    %v2261 = vld [vmem:[%s2259 + $0x8] sm:$0xff]
    %v2262 = vld [vmem:[%s2259 + $0x10] sm:$0xff]
    %v2263 = vld [vmem:[%s2259 + $0x18] sm:$0xff]
    %s2264 = scalar_lea.vmem %s9, 1
    %v2265 = vld [vmem:[%s2264] sm:$0x1]
    %v2267 = vlaneseq
    %v2268 = vshrl.u32 %v2267, 7
    %v2269 = vsub.s32 0, %v2268
    %v2270 = vrot.slane %v2265, %v2269
    %v2273 = vsel %vm228, %v2258, 0
    %2275 = vmatprep.subr.mxu0 0.0
    %2276 = vmatpush1.msra.mxu0 %v2260
    %2277 = vmatprep.subr.mxu0 0.0
    %2278 = vmatpush1.msra.mxu0 %v2261
    %2279 = vmatprep.subr.mxu0 0.0
    %2280 = vmatpush1.msra.mxu0 %v2262
    %2281 = vmatprep.subr.mxu0 0.0
    %2282 = vmatpush1.msra.mxu0 %v2263
    %2283 = vmatprep.subr.mxu0 0.0
    %2284 = vmatpush1.msra.mxu0 0.0
    %2285 = vmatprep.subr.mxu0 0.0
    %2286 = vmatpush1.msra.mxu0 0.0
    %2287 = vmatprep.subr.mxu0 0.0
    %2288 = vmatpush1.msra.mxu0 0.0
    %2289 = vmatprep.subr.mxu0 0.0
    %2290 = vmatpush1.msra.mxu0 0.0
    %2291 = vmatprep.subr.mxu0 0.0
    %2292 = vmatpush1.msra.mxu0 0.0
    %2293 = vmatprep.subr.mxu0 0.0
    %2294 = vmatpush1.msra.mxu0 0.0
    %2295 = vmatprep.subr.mxu0 0.0
    %2296 = vmatpush1.msra.mxu0 0.0
    %2297 = vmatprep.subr.mxu0 0.0
    %2298 = vmatpush1.msra.mxu0 0.0
    %2299 = vmatprep.subr.mxu0 0.0
    %2300 = vmatpush1.msra.mxu0 0.0
    %2301 = vmatprep.subr.mxu0 0.0
    %2302 = vmatpush1.msra.mxu0 0.0
    %2303 = vmatprep.subr.mxu0 0.0
    %2304 = vmatpush1.msra.mxu0 0.0
    %2305 = vmatprep.subr.mxu0 0.0
    %2306 = vmatpush1.msra.mxu0 0.0
    %2307 = vmatprep.subr.mxu0 0.0
    %2308 = vmatpush1.msra.mxu0 0.0
    %2309 = vmatprep.subr.mxu0 0.0
    %2310 = vmatpush1.msra.mxu0 0.0
    %2311 = vmatprep.subr.mxu0 0.0
    %2312 = vmatpush1.msra.mxu0 0.0
    %2313 = vmatprep.subr.mxu0 0.0
    %2314 = vmatpush1.msra.mxu0 0.0
    %2315 = vmatprep.subr.mxu0 0.0
    %2316 = vmatpush1.msra.mxu0 0.0
    %2317 = vmatprep.subr.mxu0 0.0
    %2318 = vmatpush1.msra.mxu0 0.0
    %2319 = vmatprep.subr.mxu0 0.0
    %2320 = vmatpush1.msra.mxu0 0.0
    %2321 = vmatprep.subr.mxu0 0.0
    %2322 = vmatpush1.msra.mxu0 0.0
    %2323 = vmatprep.subr.mxu0 0.0
    %2324 = vmatpush1.msra.mxu0 0.0
    %2325 = vmatprep.subr.mxu0 0.0
    %2326 = vmatpush1.msra.mxu0 0.0
    %2327 = vmatprep.subr.mxu0 0.0
    %2328 = vmatpush1.msra.mxu0 0.0
    %2329 = vmatprep.subr.mxu0 0.0
    %2330 = vmatpush1.msra.mxu0 0.0
    %2331 = vmatprep.subr.mxu0 0.0
    %2332 = vmatpush1.msra.mxu0 0.0
    %2333 = vmatprep.subr.mxu0 0.0
    %2334 = vmatpush1.msra.mxu0 0.0
    %2335 = vmatprep.subr.mxu0 0.0
    %2336 = vmatpush1.msra.mxu0 0.0
    %2337 = vmatprep.subr.mxu0 0.0
    %2338 = vmatpush1.msra.mxu0 0.0
    %2339 = vmatprep.mubr.f32.mxu0 0.0
    %2340 = vmatmul.mubr.f32.gmra.mrb[0].mxu0 %v2273
    %v2341 = vpop.f32.mrb[0].mxu0
    %v2342 = vadd.f32 %v2270, %v2341
    %v2343 = vpop.f32.mrb[0].mxu0
    %2344 = vdwg.mxu0
    %v2345 = vmax.f32 %v2342, 0.0
    %2346 = vst.msk [vmem:[#allocation10] sm:$0xff] %vm228, %v2345
    // Predicated region
    $region58: #{tpu_custom_call.1} parent=1 // pred_check
      _
    $region59: #{tpu_custom_call.1} parent=1 // pred_check_branch
      %2348 = sbr.rel (0) target = $region61
    $region60: #{tpu_custom_call.1} parent=1 // pred_region
      %s2350 = ssub.s32 128, 128
      %2351 = vsyncadd [#allocation4], %s2350
      %s2353 = sshll.u32 [#allocation10], 4
      %s2354 = int_to_ptr.vmem [resolvable:$true] %s2353
      %2356 = dma.vmem_to_hbm [thread:$0]  %s2354, 128, %s10, [#allocation4]
    $region61: #{tpu_custom_call.1} parent=1 // pred_fallthru
      _
    // Predicated region
    $region62: #{tpu_custom_call.1} parent=1 // pred_check
      _
    $region63: #{tpu_custom_call.1} parent=1 // pred_check_branch
      %2358 = sbr.rel (0) target = $region65
    $region64: #{tpu_custom_call.1} parent=1 // pred_region
      %2359 = dma.done [#allocation4], 128
    $region65: #{tpu_custom_call.1} parent=1 // pred_fallthru
      _
    %2360 = vsyncpa [#allocation3], 1
    %2361 = vsyncpa [#allocation6], 1
    %2362 = vsyncpa [#allocation9], 1
    %2363 = vsyncpa [#allocation4], 1

</llo_original>
